<compile_context>
chip_gen: v7x
topology: tpu7x:2x2x1
jax: 0.10.0
libtpu: 0.0.40
codegen_flags: <defaults>
</compile_context>

<pallas_src>
import functools

import jax
import jax.numpy as jnp
import numpy as np
from jax import lax
from jax.experimental import pallas as pl
from jax.experimental.pallas import tpu as pltpu

THETA0 = 3                      # first boundary-extraction pooling kernel
THETA = 5                       # boundary-extension pooling kernel
EPS = 1e-7
_TARGET_BLOCK_BYTES = 1 << 20   # ~1 MiB per input block per pipeline buffer


def _round_up(x, m):
    return ((x + m - 1) // m) * m


def _boundary_sums_kernel(pred_ref, tgt_ref, out_ref, *,
                          h, w, h_pad, lp, theta0, theta):
    """Per-plane boundary sums on a lane/row packed block.

    pred_ref, tgt_ref: (BB*h_pad, LWP) blocks; each group of h_pad rows holds
        `lp` planes packed side-by-side along the lane axis (w lanes each).
    out_ref: (BB, OUT_W) block; columns [q*lp + l] for q in 0..3 hold, for
        plane slot l of each group,
        [sum(pred_b*gt_b_ext), sum(pred_b), sum(pred_b_ext*gt_b), sum(gt_b)].
    """
    pred = pred_ref[...]
    tgt = tgt_ref[...]
    r_rows, lwp = pred.shape
    bb = out_ref.shape[0]
    out_w = out_ref.shape[1]
    lw = lp * w
    neg_inf = jnp.float32(-jnp.inf)

    # Within-plane coordinates of every lane / row of the packed block.
    lane_iota = lax.broadcasted_iota(jnp.int32, (1, lwp), 1)
    if (w & (w - 1)) == 0:
        lane_pos = lane_iota & (w - 1)
    else:
        lane_pos = lane_iota % w
    if lwp != lw:  # dead padding lanes at the end -> never valid
        lane_pos = jnp.where(lane_iota < lw, lane_pos, jnp.int32(-(1 << 20)))

    row_iota = lax.broadcasted_iota(jnp.int32, (r_rows, 1), 0)
    if (h_pad & (h_pad - 1)) == 0:
        row_pos = row_iota & (h_pad - 1)
    else:
        row_pos = row_iota % h_pad

    def maxpool_same(x, k):
        """stride-1 'same' KxK max pool with -inf padding, per packed plane.

        Separable: lane (W) axis first, then row (H) axis.  Shifts are done
        with pltpu.roll (XLU slot); plane edges / dead padding are handled by
        masking the rolled values to -inf, which matches torch max_pool2d's
        implicit -inf padding.
        """
        p = (k - 1) // 2
        pooled_w = x
        for s in range(1, p + 1):
            for ss in (s, -s):
                rolled = pltpu.roll(x, (-ss) % lwp, axis=1)   # rolled[j] = x[j+ss]
                valid = jnp.logical_and(lane_pos + ss >= 0, lane_pos + ss < w)
                pooled_w = jnp.maximum(pooled_w, jnp.where(valid, rolled, neg_inf))
        pooled = pooled_w
        for s in range(1, p + 1):
            for ss in (s, -s):
                rolled = pltpu.roll(pooled_w, (-ss) % r_rows, axis=0)
                valid = jnp.logical_and(row_pos + ss >= 0, row_pos + ss < h)
                pooled = jnp.maximum(pooled, jnp.where(valid, rolled, neg_inf))
        return pooled

    onem_t = 1.0 - tgt
    onem_p = 1.0 - pred
    gt_b = maxpool_same(onem_t, theta0) - onem_t
    pred_b = maxpool_same(onem_p, theta0) - onem_p
    gt_b_ext = maxpool_same(gt_b, theta)
    pred_b_ext = maxpool_same(pred_b, theta)

    # Per-plane sums: plane (group g, slot l) occupies rows
    # [g*h_pad, g*h_pad + h) and lanes [l*w, (l+1)*w).
    row_live = (row_pos < h) if h_pad != h else None

    def plane_sums(q):                                     # (R, LWP) -> (BB, LP)
        if row_live is not None:
            q = jnp.where(row_live, q, 0.0)                # drop padded rows
        rowsum = jnp.sum(q.reshape(bb, h_pad, lwp), axis=1)        # (BB, LWP)
        segs = [jnp.sum(rowsum[:, l * w:(l + 1) * w], axis=1, keepdims=True)
                for l in range(lp)]
        return segs[0] if lp == 1 else jnp.concatenate(segs, axis=1)

    vals = jnp.concatenate(
        [plane_sums(pred_b * gt_b_ext),   # P numerator
         plane_sums(pred_b),              # P denominator
         plane_sums(pred_b_ext * gt_b),   # R numerator
         plane_sums(gt_b)],               # R denominator
        axis=1)                                            # (BB, 4*LP)
    if out_w > 4 * lp:                                     # lane-dense output slab
        vals = jnp.concatenate(
            [vals, jnp.zeros((bb, out_w - 4 * lp), jnp.float32)], axis=1)
    out_ref[...] = vals


@functools.partial(jax.jit, static_argnames=("theta0", "theta"))
def boundary_loss(predict, targets, theta0=THETA0, theta=THETA):
    """Pallas implementation of BoundaryLoss.forward.

    predict: (N, C, H, W) raw logits (used as-is, matching the PyTorch code).
    targets: (N, C, H, W) one-hot / soft ground-truth maps.
    Returns a scalar float32 loss.
    """
    n, c, h, w = predict.shape
    assert targets.shape == (n, c, h, w), "targets must be (N, C, H, W)"
    b = n * c

    # ---- packed layout parameters -------------------------------------------
    lp = max(1, 128 // w)            # planes packed along the 128-lane axis
    lw = lp * w
    lwp = _round_up(lw, 128)         # lane width of the packed block
    h_pad = _round_up(h, 8)          # sublane-aligned plane height

    g = -(-b // lp)                  # number of lane-packed plane groups
    row_bytes = h_pad * lwp * 4
    bb = (_TARGET_BLOCK_BYTES // row_bytes) // 8 * 8   # groups per grid step
    bb = max(8, min(256, bb))
    bb = min(bb, _round_up(g, 8))    # don't allocate more than needed
    if g >= 16:                      # keep >=2 grid steps (v7x has 2 TCs)
        bb = min(bb, _round_up(-(-g // 2), 8))
    bb = max(bb, 8)
    g_pad = _round_up(g, bb)
    b_pad = g_pad * lp
    block_bytes = bb * row_bytes
    out_w = max(128, _round_up(4 * lp, 128))

    # ---- pack (B, H, W) planes into a 2-D (G_pad*h_pad, LWP) slab ------------
    def pack(x):
        x = x.reshape(b, h, w).astype(jnp.float32)
        x = jnp.pad(x, ((0, b_pad - b), (0, h_pad - h), (0, 0)))
        x = x.reshape(g_pad, lp, h_pad, w).transpose(0, 2, 1, 3)
        x = x.reshape(g_pad, h_pad, lw)
        if lwp != lw:
            x = jnp.pad(x, ((0, 0), (0, 0), (0, lwp - lw)))
        return x.reshape(g_pad * h_pad, lwp)

    pred2d = pack(predict)
    tgt2d = pack(targets)

    kernel = functools.partial(_boundary_sums_kernel, h=h, w=w, h_pad=h_pad,
                               lp=lp, theta0=theta0, theta=theta)
    # TODO(synk): very large planes (e.g. 512x512 f32) would still need spatial
    # (halo) tiling to stay inside v7x's 64 MiB VMEM; only plane-count tiling
    # is implemented here.
    vmem_limit = int(min(100 * 2**20, max(32 * 2**20, 14 * block_bytes)))

    out = pl.pallas_call(
        kernel,
        out_shape=jax.ShapeDtypeStruct((g_pad, out_w), jnp.float32),
        grid=(g_pad // bb,),
        in_specs=[pl.BlockSpec((bb * h_pad, lwp), lambda i: (i, 0)),
                  pl.BlockSpec((bb * h_pad, lwp), lambda i: (i, 0))],
        out_specs=pl.BlockSpec((bb, out_w), lambda i: (i, 0)),
        compiler_params=pltpu.CompilerParams(
            dimension_semantics=("parallel",),
            vmem_limit_bytes=vmem_limit),
    )(pred2d, tgt2d)

    # ---- tiny per-(n, c) glue: P, R, BF1 and mean ----------------------------
    sums = out[:, :4 * lp].reshape(g_pad, 4, lp).transpose(0, 2, 1)
    sums = sums.reshape(g_pad * lp, 4)[:b]                # plane-major, (B, 4)
    P = (sums[:, 0] / (sums[:, 1] + EPS)).reshape(n, c)
    R = (sums[:, 2] / (sums[:, 3] + EPS)).reshape(n, c)
    BF1 = 2.0 * P * R / (P + R + EPS)
    return jnp.mean(1.0 - BF1)


def _boundary_loss_ref(predict, targets, theta0=THETA0, theta=THETA):
    """Pure-JAX reference mirroring the PyTorch forward (for verification)."""
    def mp(x, k):
        p = (k - 1) // 2
        return lax.reduce_window(
            x, -jnp.inf, lax.max,
            (1, 1, k, k), (1, 1, 1, 1),
            [(0, 0), (0, 0), (p, p), (p, p)])

    n, c, _, _ = predict.shape
    gt_b = mp(1.0 - targets, theta0) - (1.0 - targets)
    pred_b = mp(1.0 - predict, theta0) - (1.0 - predict)
    gt_b_ext = mp(gt_b, theta)
    pred_b_ext = mp(pred_b, theta)

    gt_b = gt_b.reshape(n, c, -1)
    pred_b = pred_b.reshape(n, c, -1)
    gt_b_ext = gt_b_ext.reshape(n, c, -1)
    pred_b_ext = pred_b_ext.reshape(n, c, -1)

    P = jnp.sum(pred_b * gt_b_ext, axis=2) / (jnp.sum(pred_b, axis=2) + EPS)
    R = jnp.sum(pred_b_ext * gt_b, axis=2) / (jnp.sum(gt_b, axis=2) + EPS)
    BF1 = 2.0 * P * R / (P + R + EPS)
    return jnp.mean(1.0 - BF1)


if __name__ == "__main__":
    # BoundaryLoss has no learnable parameters; theta0=3, theta=5 are the
    # module's __init__ defaults.
    key = jax.random.PRNGKey(0)
    k1, k2 = jax.random.split(key)

    N, C, H, W = 2, 4, 16, 16
    predict = jax.random.normal(k1, (N, C, H, W), dtype=jnp.float32)
    labels = jax.random.randint(k2, (N, H, W), 0, C)
    targets = jnp.transpose(
        jax.nn.one_hot(labels, C, dtype=jnp.float32), (0, 3, 1, 2))  # (N, C, H, W)

    loss = boundary_loss(predict, targets)
    loss = jax.block_until_ready(loss)

    ref = _boundary_loss_ref(predict, targets)
    assert np.allclose(np.asarray(loss), np.asarray(ref), atol=1e-5, rtol=1e-5), (
        float(loss), float(ref))

    print("KERNEL_OK")
</pallas_src>

<mosaic_0001>
module attributes {stable_mosaic.version = 11 : i64} {
  func.func @_boundary_sums_kernel(%arg0: i32, %arg1: memref<128x128xf32, #tpu.memory_space<vmem>>, %arg2: memref<128x128xf32, #tpu.memory_space<vmem>>, %arg3: memref<8x128xf32, #tpu.memory_space<vmem>>) attributes {dimension_semantics = [#tpu.dimension_semantics<parallel>], iteration_bounds = array<i64: 1>, scalar_prefetch = 0 : i64, scratch_operands = 0 : i64, tpu.core_type = #tpu.core_type<tc>, window_params = [{transform_indices = @transform_0, window_bounds = array<i64: 128, 128>}, {transform_indices = @transform_1, window_bounds = array<i64: 128, 128>}, {transform_indices = @transform_2, window_bounds = array<i64: 8, 128>}]} {
    %c0 = arith.constant 0 : index
    %c0_0 = arith.constant 0 : index
    %0 = vector.load %arg1[%c0, %c0_0] : memref<128x128xf32, #tpu.memory_space<vmem>>, vector<128x128xf32>
    %c0_1 = arith.constant 0 : index
    %c0_2 = arith.constant 0 : index
    %1 = vector.load %arg2[%c0_1, %c0_2] : memref<128x128xf32, #tpu.memory_space<vmem>>, vector<128x128xf32>
    %2 = tpu.iota {dimensions = array<i32: 1>} : vector<1x128xi32>
    %c15_i32 = arith.constant 15 : i32
    %3 = vector.broadcast %c15_i32 : i32 to vector<1x128xi32>
    %4 = arith.andi %2, %3 : vector<1x128xi32>
    %5 = tpu.iota {dimensions = array<i32: 0>} : vector<128x1xi32>
    %c15_i32_3 = arith.constant 15 : i32
    %6 = vector.broadcast %c15_i32_3 : i32 to vector<128x1xi32>
    %7 = arith.andi %5, %6 : vector<128x1xi32>
    %cst = arith.constant 1.000000e+00 : f32
    %8 = vector.broadcast %cst : f32 to vector<128x128xf32>
    %9 = arith.subf %8, %1 : vector<128x128xf32>
    %cst_4 = arith.constant 1.000000e+00 : f32
    %10 = vector.broadcast %cst_4 : f32 to vector<128x128xf32>
    %11 = arith.subf %10, %0 : vector<128x128xf32>
    %c127_i32 = arith.constant 127 : i32
    %12 = tpu.dynamic_rotate %9 by %c127_i32 dim 1 : vector<128x128xf32>, i32 -> vector<128x128xf32>
    %c1_i32 = arith.constant 1 : i32
    %13 = vector.broadcast %c1_i32 : i32 to vector<1x128xi32>
    %14 = arith.addi %4, %13 : vector<1x128xi32>
    %c0_i32 = arith.constant 0 : i32
    %15 = vector.broadcast %c0_i32 : i32 to vector<1x128xi32>
    %16 = arith.cmpi sge, %14, %15 : vector<1x128xi32>
    %c1_i32_5 = arith.constant 1 : i32
    %17 = vector.broadcast %c1_i32_5 : i32 to vector<1x128xi32>
    %18 = arith.addi %4, %17 : vector<1x128xi32>
    %c16_i32 = arith.constant 16 : i32
    %19 = vector.broadcast %c16_i32 : i32 to vector<1x128xi32>
    %20 = arith.cmpi slt, %18, %19 : vector<1x128xi32>
    %21 = arith.andi %16, %20 : vector<1x128xi1>
    %cst_6 = arith.constant 0xFF800000 : f32
    %22 = vector.shape_cast %21 : vector<1x128xi1> to vector<1x128xi1>
    %23 = vector.broadcast %22 : vector<1x128xi1> to vector<128x128xi1>
    %24 = vector.broadcast %cst_6 : f32 to vector<128x128xf32>
    %25 = arith.select %23, %12, %24 : vector<128x128xi1>, vector<128x128xf32>
    %26 = arith.maximumf %9, %25 : vector<128x128xf32>
    %c1_i32_7 = arith.constant 1 : i32
    %27 = tpu.dynamic_rotate %9 by %c1_i32_7 dim 1 : vector<128x128xf32>, i32 -> vector<128x128xf32>
    %c-1_i32 = arith.constant -1 : i32
    %28 = vector.broadcast %c-1_i32 : i32 to vector<1x128xi32>
    %29 = arith.addi %4, %28 : vector<1x128xi32>
    %c0_i32_8 = arith.constant 0 : i32
    %30 = vector.broadcast %c0_i32_8 : i32 to vector<1x128xi32>
    %31 = arith.cmpi sge, %29, %30 : vector<1x128xi32>
    %c-1_i32_9 = arith.constant -1 : i32
    %32 = vector.broadcast %c-1_i32_9 : i32 to vector<1x128xi32>
    %33 = arith.addi %4, %32 : vector<1x128xi32>
    %c16_i32_10 = arith.constant 16 : i32
    %34 = vector.broadcast %c16_i32_10 : i32 to vector<1x128xi32>
    %35 = arith.cmpi slt, %33, %34 : vector<1x128xi32>
    %36 = arith.andi %31, %35 : vector<1x128xi1>
    %cst_11 = arith.constant 0xFF800000 : f32
    %37 = vector.shape_cast %36 : vector<1x128xi1> to vector<1x128xi1>
    %38 = vector.broadcast %37 : vector<1x128xi1> to vector<128x128xi1>
    %39 = vector.broadcast %cst_11 : f32 to vector<128x128xf32>
    %40 = arith.select %38, %27, %39 : vector<128x128xi1>, vector<128x128xf32>
    %41 = arith.maximumf %26, %40 : vector<128x128xf32>
    %c127_i32_12 = arith.constant 127 : i32
    %42 = tpu.dynamic_rotate %41 by %c127_i32_12 dim 0 : vector<128x128xf32>, i32 -> vector<128x128xf32>
    %c1_i32_13 = arith.constant 1 : i32
    %43 = vector.broadcast %c1_i32_13 : i32 to vector<128x1xi32>
    %44 = arith.addi %7, %43 : vector<128x1xi32>
    %c0_i32_14 = arith.constant 0 : i32
    %45 = vector.broadcast %c0_i32_14 : i32 to vector<128x1xi32>
    %46 = arith.cmpi sge, %44, %45 : vector<128x1xi32>
    %c1_i32_15 = arith.constant 1 : i32
    %47 = vector.broadcast %c1_i32_15 : i32 to vector<128x1xi32>
    %48 = arith.addi %7, %47 : vector<128x1xi32>
    %c16_i32_16 = arith.constant 16 : i32
    %49 = vector.broadcast %c16_i32_16 : i32 to vector<128x1xi32>
    %50 = arith.cmpi slt, %48, %49 : vector<128x1xi32>
    %51 = arith.andi %46, %50 : vector<128x1xi1>
    %cst_17 = arith.constant 0xFF800000 : f32
    %52 = vector.shape_cast %51 : vector<128x1xi1> to vector<128x1xi1>
    %53 = vector.broadcast %52 : vector<128x1xi1> to vector<128x128xi1>
    %54 = vector.broadcast %cst_17 : f32 to vector<128x128xf32>
    %55 = arith.select %53, %42, %54 : vector<128x128xi1>, vector<128x128xf32>
    %56 = arith.maximumf %41, %55 : vector<128x128xf32>
    %c1_i32_18 = arith.constant 1 : i32
    %57 = tpu.dynamic_rotate %41 by %c1_i32_18 dim 0 : vector<128x128xf32>, i32 -> vector<128x128xf32>
    %c-1_i32_19 = arith.constant -1 : i32
    %58 = vector.broadcast %c-1_i32_19 : i32 to vector<128x1xi32>
    %59 = arith.addi %7, %58 : vector<128x1xi32>
    %c0_i32_20 = arith.constant 0 : i32
    %60 = vector.broadcast %c0_i32_20 : i32 to vector<128x1xi32>
    %61 = arith.cmpi sge, %59, %60 : vector<128x1xi32>
    %c-1_i32_21 = arith.constant -1 : i32
    %62 = vector.broadcast %c-1_i32_21 : i32 to vector<128x1xi32>
    %63 = arith.addi %7, %62 : vector<128x1xi32>
    %c16_i32_22 = arith.constant 16 : i32
    %64 = vector.broadcast %c16_i32_22 : i32 to vector<128x1xi32>
    %65 = arith.cmpi slt, %63, %64 : vector<128x1xi32>
    %66 = arith.andi %61, %65 : vector<128x1xi1>
    %cst_23 = arith.constant 0xFF800000 : f32
    %67 = vector.shape_cast %66 : vector<128x1xi1> to vector<128x1xi1>
    %68 = vector.broadcast %67 : vector<128x1xi1> to vector<128x128xi1>
    %69 = vector.broadcast %cst_23 : f32 to vector<128x128xf32>
    %70 = arith.select %68, %57, %69 : vector<128x128xi1>, vector<128x128xf32>
    %71 = arith.maximumf %56, %70 : vector<128x128xf32>
    %72 = arith.subf %71, %9 : vector<128x128xf32>
    %c127_i32_24 = arith.constant 127 : i32
    %73 = tpu.dynamic_rotate %11 by %c127_i32_24 dim 1 : vector<128x128xf32>, i32 -> vector<128x128xf32>
    %c1_i32_25 = arith.constant 1 : i32
    %74 = vector.broadcast %c1_i32_25 : i32 to vector<1x128xi32>
    %75 = arith.addi %4, %74 : vector<1x128xi32>
    %c0_i32_26 = arith.constant 0 : i32
    %76 = vector.broadcast %c0_i32_26 : i32 to vector<1x128xi32>
    %77 = arith.cmpi sge, %75, %76 : vector<1x128xi32>
    %c1_i32_27 = arith.constant 1 : i32
    %78 = vector.broadcast %c1_i32_27 : i32 to vector<1x128xi32>
    %79 = arith.addi %4, %78 : vector<1x128xi32>
    %c16_i32_28 = arith.constant 16 : i32
    %80 = vector.broadcast %c16_i32_28 : i32 to vector<1x128xi32>
    %81 = arith.cmpi slt, %79, %80 : vector<1x128xi32>
    %82 = arith.andi %77, %81 : vector<1x128xi1>
    %cst_29 = arith.constant 0xFF800000 : f32
    %83 = vector.shape_cast %82 : vector<1x128xi1> to vector<1x128xi1>
    %84 = vector.broadcast %83 : vector<1x128xi1> to vector<128x128xi1>
    %85 = vector.broadcast %cst_29 : f32 to vector<128x128xf32>
    %86 = arith.select %84, %73, %85 : vector<128x128xi1>, vector<128x128xf32>
    %87 = arith.maximumf %11, %86 : vector<128x128xf32>
    %c1_i32_30 = arith.constant 1 : i32
    %88 = tpu.dynamic_rotate %11 by %c1_i32_30 dim 1 : vector<128x128xf32>, i32 -> vector<128x128xf32>
    %c-1_i32_31 = arith.constant -1 : i32
    %89 = vector.broadcast %c-1_i32_31 : i32 to vector<1x128xi32>
    %90 = arith.addi %4, %89 : vector<1x128xi32>
    %c0_i32_32 = arith.constant 0 : i32
    %91 = vector.broadcast %c0_i32_32 : i32 to vector<1x128xi32>
    %92 = arith.cmpi sge, %90, %91 : vector<1x128xi32>
    %c-1_i32_33 = arith.constant -1 : i32
    %93 = vector.broadcast %c-1_i32_33 : i32 to vector<1x128xi32>
    %94 = arith.addi %4, %93 : vector<1x128xi32>
    %c16_i32_34 = arith.constant 16 : i32
    %95 = vector.broadcast %c16_i32_34 : i32 to vector<1x128xi32>
    %96 = arith.cmpi slt, %94, %95 : vector<1x128xi32>
    %97 = arith.andi %92, %96 : vector<1x128xi1>
    %cst_35 = arith.constant 0xFF800000 : f32
    %98 = vector.shape_cast %97 : vector<1x128xi1> to vector<1x128xi1>
    %99 = vector.broadcast %98 : vector<1x128xi1> to vector<128x128xi1>
    %100 = vector.broadcast %cst_35 : f32 to vector<128x128xf32>
    %101 = arith.select %99, %88, %100 : vector<128x128xi1>, vector<128x128xf32>
    %102 = arith.maximumf %87, %101 : vector<128x128xf32>
    %c127_i32_36 = arith.constant 127 : i32
    %103 = tpu.dynamic_rotate %102 by %c127_i32_36 dim 0 : vector<128x128xf32>, i32 -> vector<128x128xf32>
    %c1_i32_37 = arith.constant 1 : i32
    %104 = vector.broadcast %c1_i32_37 : i32 to vector<128x1xi32>
    %105 = arith.addi %7, %104 : vector<128x1xi32>
    %c0_i32_38 = arith.constant 0 : i32
    %106 = vector.broadcast %c0_i32_38 : i32 to vector<128x1xi32>
    %107 = arith.cmpi sge, %105, %106 : vector<128x1xi32>
    %c1_i32_39 = arith.constant 1 : i32
    %108 = vector.broadcast %c1_i32_39 : i32 to vector<128x1xi32>
    %109 = arith.addi %7, %108 : vector<128x1xi32>
    %c16_i32_40 = arith.constant 16 : i32
    %110 = vector.broadcast %c16_i32_40 : i32 to vector<128x1xi32>
    %111 = arith.cmpi slt, %109, %110 : vector<128x1xi32>
    %112 = arith.andi %107, %111 : vector<128x1xi1>
    %cst_41 = arith.constant 0xFF800000 : f32
    %113 = vector.shape_cast %112 : vector<128x1xi1> to vector<128x1xi1>
    %114 = vector.broadcast %113 : vector<128x1xi1> to vector<128x128xi1>
    %115 = vector.broadcast %cst_41 : f32 to vector<128x128xf32>
    %116 = arith.select %114, %103, %115 : vector<128x128xi1>, vector<128x128xf32>
    %117 = arith.maximumf %102, %116 : vector<128x128xf32>
    %c1_i32_42 = arith.constant 1 : i32
    %118 = tpu.dynamic_rotate %102 by %c1_i32_42 dim 0 : vector<128x128xf32>, i32 -> vector<128x128xf32>
    %c-1_i32_43 = arith.constant -1 : i32
    %119 = vector.broadcast %c-1_i32_43 : i32 to vector<128x1xi32>
    %120 = arith.addi %7, %119 : vector<128x1xi32>
    %c0_i32_44 = arith.constant 0 : i32
    %121 = vector.broadcast %c0_i32_44 : i32 to vector<128x1xi32>
    %122 = arith.cmpi sge, %120, %121 : vector<128x1xi32>
    %c-1_i32_45 = arith.constant -1 : i32
    %123 = vector.broadcast %c-1_i32_45 : i32 to vector<128x1xi32>
    %124 = arith.addi %7, %123 : vector<128x1xi32>
    %c16_i32_46 = arith.constant 16 : i32
    %125 = vector.broadcast %c16_i32_46 : i32 to vector<128x1xi32>
    %126 = arith.cmpi slt, %124, %125 : vector<128x1xi32>
    %127 = arith.andi %122, %126 : vector<128x1xi1>
    %cst_47 = arith.constant 0xFF800000 : f32
    %128 = vector.shape_cast %127 : vector<128x1xi1> to vector<128x1xi1>
    %129 = vector.broadcast %128 : vector<128x1xi1> to vector<128x128xi1>
    %130 = vector.broadcast %cst_47 : f32 to vector<128x128xf32>
    %131 = arith.select %129, %118, %130 : vector<128x128xi1>, vector<128x128xf32>
    %132 = arith.maximumf %117, %131 : vector<128x128xf32>
    %133 = arith.subf %132, %11 : vector<128x128xf32>
    %c127_i32_48 = arith.constant 127 : i32
    %134 = tpu.dynamic_rotate %72 by %c127_i32_48 dim 1 : vector<128x128xf32>, i32 -> vector<128x128xf32>
    %c1_i32_49 = arith.constant 1 : i32
    %135 = vector.broadcast %c1_i32_49 : i32 to vector<1x128xi32>
    %136 = arith.addi %4, %135 : vector<1x128xi32>
    %c0_i32_50 = arith.constant 0 : i32
    %137 = vector.broadcast %c0_i32_50 : i32 to vector<1x128xi32>
    %138 = arith.cmpi sge, %136, %137 : vector<1x128xi32>
    %c1_i32_51 = arith.constant 1 : i32
    %139 = vector.broadcast %c1_i32_51 : i32 to vector<1x128xi32>
    %140 = arith.addi %4, %139 : vector<1x128xi32>
    %c16_i32_52 = arith.constant 16 : i32
    %141 = vector.broadcast %c16_i32_52 : i32 to vector<1x128xi32>
    %142 = arith.cmpi slt, %140, %141 : vector<1x128xi32>
    %143 = arith.andi %138, %142 : vector<1x128xi1>
    %cst_53 = arith.constant 0xFF800000 : f32
    %144 = vector.shape_cast %143 : vector<1x128xi1> to vector<1x128xi1>
    %145 = vector.broadcast %144 : vector<1x128xi1> to vector<128x128xi1>
    %146 = vector.broadcast %cst_53 : f32 to vector<128x128xf32>
    %147 = arith.select %145, %134, %146 : vector<128x128xi1>, vector<128x128xf32>
    %148 = arith.maximumf %72, %147 : vector<128x128xf32>
    %c1_i32_54 = arith.constant 1 : i32
    %149 = tpu.dynamic_rotate %72 by %c1_i32_54 dim 1 : vector<128x128xf32>, i32 -> vector<128x128xf32>
    %c-1_i32_55 = arith.constant -1 : i32
    %150 = vector.broadcast %c-1_i32_55 : i32 to vector<1x128xi32>
    %151 = arith.addi %4, %150 : vector<1x128xi32>
    %c0_i32_56 = arith.constant 0 : i32
    %152 = vector.broadcast %c0_i32_56 : i32 to vector<1x128xi32>
    %153 = arith.cmpi sge, %151, %152 : vector<1x128xi32>
    %c-1_i32_57 = arith.constant -1 : i32
    %154 = vector.broadcast %c-1_i32_57 : i32 to vector<1x128xi32>
    %155 = arith.addi %4, %154 : vector<1x128xi32>
    %c16_i32_58 = arith.constant 16 : i32
    %156 = vector.broadcast %c16_i32_58 : i32 to vector<1x128xi32>
    %157 = arith.cmpi slt, %155, %156 : vector<1x128xi32>
    %158 = arith.andi %153, %157 : vector<1x128xi1>
    %cst_59 = arith.constant 0xFF800000 : f32
    %159 = vector.shape_cast %158 : vector<1x128xi1> to vector<1x128xi1>
    %160 = vector.broadcast %159 : vector<1x128xi1> to vector<128x128xi1>
    %161 = vector.broadcast %cst_59 : f32 to vector<128x128xf32>
    %162 = arith.select %160, %149, %161 : vector<128x128xi1>, vector<128x128xf32>
    %163 = arith.maximumf %148, %162 : vector<128x128xf32>
    %c126_i32 = arith.constant 126 : i32
    %164 = tpu.dynamic_rotate %72 by %c126_i32 dim 1 : vector<128x128xf32>, i32 -> vector<128x128xf32>
    %c2_i32 = arith.constant 2 : i32
    %165 = vector.broadcast %c2_i32 : i32 to vector<1x128xi32>
    %166 = arith.addi %4, %165 : vector<1x128xi32>
    %c0_i32_60 = arith.constant 0 : i32
    %167 = vector.broadcast %c0_i32_60 : i32 to vector<1x128xi32>
    %168 = arith.cmpi sge, %166, %167 : vector<1x128xi32>
    %c2_i32_61 = arith.constant 2 : i32
    %169 = vector.broadcast %c2_i32_61 : i32 to vector<1x128xi32>
    %170 = arith.addi %4, %169 : vector<1x128xi32>
    %c16_i32_62 = arith.constant 16 : i32
    %171 = vector.broadcast %c16_i32_62 : i32 to vector<1x128xi32>
    %172 = arith.cmpi slt, %170, %171 : vector<1x128xi32>
    %173 = arith.andi %168, %172 : vector<1x128xi1>
    %cst_63 = arith.constant 0xFF800000 : f32
    %174 = vector.shape_cast %173 : vector<1x128xi1> to vector<1x128xi1>
    %175 = vector.broadcast %174 : vector<1x128xi1> to vector<128x128xi1>
    %176 = vector.broadcast %cst_63 : f32 to vector<128x128xf32>
    %177 = arith.select %175, %164, %176 : vector<128x128xi1>, vector<128x128xf32>
    %178 = arith.maximumf %163, %177 : vector<128x128xf32>
    %c2_i32_64 = arith.constant 2 : i32
    %179 = tpu.dynamic_rotate %72 by %c2_i32_64 dim 1 : vector<128x128xf32>, i32 -> vector<128x128xf32>
    %c-2_i32 = arith.constant -2 : i32
    %180 = vector.broadcast %c-2_i32 : i32 to vector<1x128xi32>
    %181 = arith.addi %4, %180 : vector<1x128xi32>
    %c0_i32_65 = arith.constant 0 : i32
    %182 = vector.broadcast %c0_i32_65 : i32 to vector<1x128xi32>
    %183 = arith.cmpi sge, %181, %182 : vector<1x128xi32>
    %c-2_i32_66 = arith.constant -2 : i32
    %184 = vector.broadcast %c-2_i32_66 : i32 to vector<1x128xi32>
    %185 = arith.addi %4, %184 : vector<1x128xi32>
    %c16_i32_67 = arith.constant 16 : i32
    %186 = vector.broadcast %c16_i32_67 : i32 to vector<1x128xi32>
    %187 = arith.cmpi slt, %185, %186 : vector<1x128xi32>
    %188 = arith.andi %183, %187 : vector<1x128xi1>
    %cst_68 = arith.constant 0xFF800000 : f32
    %189 = vector.shape_cast %188 : vector<1x128xi1> to vector<1x128xi1>
    %190 = vector.broadcast %189 : vector<1x128xi1> to vector<128x128xi1>
    %191 = vector.broadcast %cst_68 : f32 to vector<128x128xf32>
    %192 = arith.select %190, %179, %191 : vector<128x128xi1>, vector<128x128xf32>
    %193 = arith.maximumf %178, %192 : vector<128x128xf32>
    %c127_i32_69 = arith.constant 127 : i32
    %194 = tpu.dynamic_rotate %193 by %c127_i32_69 dim 0 : vector<128x128xf32>, i32 -> vector<128x128xf32>
    %c1_i32_70 = arith.constant 1 : i32
    %195 = vector.broadcast %c1_i32_70 : i32 to vector<128x1xi32>
    %196 = arith.addi %7, %195 : vector<128x1xi32>
    %c0_i32_71 = arith.constant 0 : i32
    %197 = vector.broadcast %c0_i32_71 : i32 to vector<128x1xi32>
    %198 = arith.cmpi sge, %196, %197 : vector<128x1xi32>
    %c1_i32_72 = arith.constant 1 : i32
    %199 = vector.broadcast %c1_i32_72 : i32 to vector<128x1xi32>
    %200 = arith.addi %7, %199 : vector<128x1xi32>
    %c16_i32_73 = arith.constant 16 : i32
    %201 = vector.broadcast %c16_i32_73 : i32 to vector<128x1xi32>
    %202 = arith.cmpi slt, %200, %201 : vector<128x1xi32>
    %203 = arith.andi %198, %202 : vector<128x1xi1>
    %cst_74 = arith.constant 0xFF800000 : f32
    %204 = vector.shape_cast %203 : vector<128x1xi1> to vector<128x1xi1>
    %205 = vector.broadcast %204 : vector<128x1xi1> to vector<128x128xi1>
    %206 = vector.broadcast %cst_74 : f32 to vector<128x128xf32>
    %207 = arith.select %205, %194, %206 : vector<128x128xi1>, vector<128x128xf32>
    %208 = arith.maximumf %193, %207 : vector<128x128xf32>
    %c1_i32_75 = arith.constant 1 : i32
    %209 = tpu.dynamic_rotate %193 by %c1_i32_75 dim 0 : vector<128x128xf32>, i32 -> vector<128x128xf32>
    %c-1_i32_76 = arith.constant -1 : i32
    %210 = vector.broadcast %c-1_i32_76 : i32 to vector<128x1xi32>
    %211 = arith.addi %7, %210 : vector<128x1xi32>
    %c0_i32_77 = arith.constant 0 : i32
    %212 = vector.broadcast %c0_i32_77 : i32 to vector<128x1xi32>
    %213 = arith.cmpi sge, %211, %212 : vector<128x1xi32>
    %c-1_i32_78 = arith.constant -1 : i32
    %214 = vector.broadcast %c-1_i32_78 : i32 to vector<128x1xi32>
    %215 = arith.addi %7, %214 : vector<128x1xi32>
    %c16_i32_79 = arith.constant 16 : i32
    %216 = vector.broadcast %c16_i32_79 : i32 to vector<128x1xi32>
    %217 = arith.cmpi slt, %215, %216 : vector<128x1xi32>
    %218 = arith.andi %213, %217 : vector<128x1xi1>
    %cst_80 = arith.constant 0xFF800000 : f32
    %219 = vector.shape_cast %218 : vector<128x1xi1> to vector<128x1xi1>
    %220 = vector.broadcast %219 : vector<128x1xi1> to vector<128x128xi1>
    %221 = vector.broadcast %cst_80 : f32 to vector<128x128xf32>
    %222 = arith.select %220, %209, %221 : vector<128x128xi1>, vector<128x128xf32>
    %223 = arith.maximumf %208, %222 : vector<128x128xf32>
    %c126_i32_81 = arith.constant 126 : i32
    %224 = tpu.dynamic_rotate %193 by %c126_i32_81 dim 0 : vector<128x128xf32>, i32 -> vector<128x128xf32>
    %c2_i32_82 = arith.constant 2 : i32
    %225 = vector.broadcast %c2_i32_82 : i32 to vector<128x1xi32>
    %226 = arith.addi %7, %225 : vector<128x1xi32>
    %c0_i32_83 = arith.constant 0 : i32
    %227 = vector.broadcast %c0_i32_83 : i32 to vector<128x1xi32>
    %228 = arith.cmpi sge, %226, %227 : vector<128x1xi32>
    %c2_i32_84 = arith.constant 2 : i32
    %229 = vector.broadcast %c2_i32_84 : i32 to vector<128x1xi32>
    %230 = arith.addi %7, %229 : vector<128x1xi32>
    %c16_i32_85 = arith.constant 16 : i32
    %231 = vector.broadcast %c16_i32_85 : i32 to vector<128x1xi32>
    %232 = arith.cmpi slt, %230, %231 : vector<128x1xi32>
    %233 = arith.andi %228, %232 : vector<128x1xi1>
    %cst_86 = arith.constant 0xFF800000 : f32
    %234 = vector.shape_cast %233 : vector<128x1xi1> to vector<128x1xi1>
    %235 = vector.broadcast %234 : vector<128x1xi1> to vector<128x128xi1>
    %236 = vector.broadcast %cst_86 : f32 to vector<128x128xf32>
    %237 = arith.select %235, %224, %236 : vector<128x128xi1>, vector<128x128xf32>
    %238 = arith.maximumf %223, %237 : vector<128x128xf32>
    %c2_i32_87 = arith.constant 2 : i32
    %239 = tpu.dynamic_rotate %193 by %c2_i32_87 dim 0 : vector<128x128xf32>, i32 -> vector<128x128xf32>
    %c-2_i32_88 = arith.constant -2 : i32
    %240 = vector.broadcast %c-2_i32_88 : i32 to vector<128x1xi32>
    %241 = arith.addi %7, %240 : vector<128x1xi32>
    %c0_i32_89 = arith.constant 0 : i32
    %242 = vector.broadcast %c0_i32_89 : i32 to vector<128x1xi32>
    %243 = arith.cmpi sge, %241, %242 : vector<128x1xi32>
    %c-2_i32_90 = arith.constant -2 : i32
    %244 = vector.broadcast %c-2_i32_90 : i32 to vector<128x1xi32>
    %245 = arith.addi %7, %244 : vector<128x1xi32>
    %c16_i32_91 = arith.constant 16 : i32
    %246 = vector.broadcast %c16_i32_91 : i32 to vector<128x1xi32>
    %247 = arith.cmpi slt, %245, %246 : vector<128x1xi32>
    %248 = arith.andi %243, %247 : vector<128x1xi1>
    %cst_92 = arith.constant 0xFF800000 : f32
    %249 = vector.shape_cast %248 : vector<128x1xi1> to vector<128x1xi1>
    %250 = vector.broadcast %249 : vector<128x1xi1> to vector<128x128xi1>
    %251 = vector.broadcast %cst_92 : f32 to vector<128x128xf32>
    %252 = arith.select %250, %239, %251 : vector<128x128xi1>, vector<128x128xf32>
    %253 = arith.maximumf %238, %252 : vector<128x128xf32>
    %c127_i32_93 = arith.constant 127 : i32
    %254 = tpu.dynamic_rotate %133 by %c127_i32_93 dim 1 : vector<128x128xf32>, i32 -> vector<128x128xf32>
    %c1_i32_94 = arith.constant 1 : i32
    %255 = vector.broadcast %c1_i32_94 : i32 to vector<1x128xi32>
    %256 = arith.addi %4, %255 : vector<1x128xi32>
    %c0_i32_95 = arith.constant 0 : i32
    %257 = vector.broadcast %c0_i32_95 : i32 to vector<1x128xi32>
    %258 = arith.cmpi sge, %256, %257 : vector<1x128xi32>
    %c1_i32_96 = arith.constant 1 : i32
    %259 = vector.broadcast %c1_i32_96 : i32 to vector<1x128xi32>
    %260 = arith.addi %4, %259 : vector<1x128xi32>
    %c16_i32_97 = arith.constant 16 : i32
    %261 = vector.broadcast %c16_i32_97 : i32 to vector<1x128xi32>
    %262 = arith.cmpi slt, %260, %261 : vector<1x128xi32>
    %263 = arith.andi %258, %262 : vector<1x128xi1>
    %cst_98 = arith.constant 0xFF800000 : f32
    %264 = vector.shape_cast %263 : vector<1x128xi1> to vector<1x128xi1>
    %265 = vector.broadcast %264 : vector<1x128xi1> to vector<128x128xi1>
    %266 = vector.broadcast %cst_98 : f32 to vector<128x128xf32>
    %267 = arith.select %265, %254, %266 : vector<128x128xi1>, vector<128x128xf32>
    %268 = arith.maximumf %133, %267 : vector<128x128xf32>
    %c1_i32_99 = arith.constant 1 : i32
    %269 = tpu.dynamic_rotate %133 by %c1_i32_99 dim 1 : vector<128x128xf32>, i32 -> vector<128x128xf32>
    %c-1_i32_100 = arith.constant -1 : i32
    %270 = vector.broadcast %c-1_i32_100 : i32 to vector<1x128xi32>
    %271 = arith.addi %4, %270 : vector<1x128xi32>
    %c0_i32_101 = arith.constant 0 : i32
    %272 = vector.broadcast %c0_i32_101 : i32 to vector<1x128xi32>
    %273 = arith.cmpi sge, %271, %272 : vector<1x128xi32>
    %c-1_i32_102 = arith.constant -1 : i32
    %274 = vector.broadcast %c-1_i32_102 : i32 to vector<1x128xi32>
    %275 = arith.addi %4, %274 : vector<1x128xi32>
    %c16_i32_103 = arith.constant 16 : i32
    %276 = vector.broadcast %c16_i32_103 : i32 to vector<1x128xi32>
    %277 = arith.cmpi slt, %275, %276 : vector<1x128xi32>
    %278 = arith.andi %273, %277 : vector<1x128xi1>
    %cst_104 = arith.constant 0xFF800000 : f32
    %279 = vector.shape_cast %278 : vector<1x128xi1> to vector<1x128xi1>
    %280 = vector.broadcast %279 : vector<1x128xi1> to vector<128x128xi1>
    %281 = vector.broadcast %cst_104 : f32 to vector<128x128xf32>
    %282 = arith.select %280, %269, %281 : vector<128x128xi1>, vector<128x128xf32>
    %283 = arith.maximumf %268, %282 : vector<128x128xf32>
    %c126_i32_105 = arith.constant 126 : i32
    %284 = tpu.dynamic_rotate %133 by %c126_i32_105 dim 1 : vector<128x128xf32>, i32 -> vector<128x128xf32>
    %c2_i32_106 = arith.constant 2 : i32
    %285 = vector.broadcast %c2_i32_106 : i32 to vector<1x128xi32>
    %286 = arith.addi %4, %285 : vector<1x128xi32>
    %c0_i32_107 = arith.constant 0 : i32
    %287 = vector.broadcast %c0_i32_107 : i32 to vector<1x128xi32>
    %288 = arith.cmpi sge, %286, %287 : vector<1x128xi32>
    %c2_i32_108 = arith.constant 2 : i32
    %289 = vector.broadcast %c2_i32_108 : i32 to vector<1x128xi32>
    %290 = arith.addi %4, %289 : vector<1x128xi32>
    %c16_i32_109 = arith.constant 16 : i32
    %291 = vector.broadcast %c16_i32_109 : i32 to vector<1x128xi32>
    %292 = arith.cmpi slt, %290, %291 : vector<1x128xi32>
    %293 = arith.andi %288, %292 : vector<1x128xi1>
    %cst_110 = arith.constant 0xFF800000 : f32
    %294 = vector.shape_cast %293 : vector<1x128xi1> to vector<1x128xi1>
    %295 = vector.broadcast %294 : vector<1x128xi1> to vector<128x128xi1>
    %296 = vector.broadcast %cst_110 : f32 to vector<128x128xf32>
    %297 = arith.select %295, %284, %296 : vector<128x128xi1>, vector<128x128xf32>
    %298 = arith.maximumf %283, %297 : vector<128x128xf32>
    %c2_i32_111 = arith.constant 2 : i32
    %299 = tpu.dynamic_rotate %133 by %c2_i32_111 dim 1 : vector<128x128xf32>, i32 -> vector<128x128xf32>
    %c-2_i32_112 = arith.constant -2 : i32
    %300 = vector.broadcast %c-2_i32_112 : i32 to vector<1x128xi32>
    %301 = arith.addi %4, %300 : vector<1x128xi32>
    %c0_i32_113 = arith.constant 0 : i32
    %302 = vector.broadcast %c0_i32_113 : i32 to vector<1x128xi32>
    %303 = arith.cmpi sge, %301, %302 : vector<1x128xi32>
    %c-2_i32_114 = arith.constant -2 : i32
    %304 = vector.broadcast %c-2_i32_114 : i32 to vector<1x128xi32>
    %305 = arith.addi %4, %304 : vector<1x128xi32>
    %c16_i32_115 = arith.constant 16 : i32
    %306 = vector.broadcast %c16_i32_115 : i32 to vector<1x128xi32>
    %307 = arith.cmpi slt, %305, %306 : vector<1x128xi32>
    %308 = arith.andi %303, %307 : vector<1x128xi1>
    %cst_116 = arith.constant 0xFF800000 : f32
    %309 = vector.shape_cast %308 : vector<1x128xi1> to vector<1x128xi1>
    %310 = vector.broadcast %309 : vector<1x128xi1> to vector<128x128xi1>
    %311 = vector.broadcast %cst_116 : f32 to vector<128x128xf32>
    %312 = arith.select %310, %299, %311 : vector<128x128xi1>, vector<128x128xf32>
    %313 = arith.maximumf %298, %312 : vector<128x128xf32>
    %c127_i32_117 = arith.constant 127 : i32
    %314 = tpu.dynamic_rotate %313 by %c127_i32_117 dim 0 : vector<128x128xf32>, i32 -> vector<128x128xf32>
    %c1_i32_118 = arith.constant 1 : i32
    %315 = vector.broadcast %c1_i32_118 : i32 to vector<128x1xi32>
    %316 = arith.addi %7, %315 : vector<128x1xi32>
    %c0_i32_119 = arith.constant 0 : i32
    %317 = vector.broadcast %c0_i32_119 : i32 to vector<128x1xi32>
    %318 = arith.cmpi sge, %316, %317 : vector<128x1xi32>
    %c1_i32_120 = arith.constant 1 : i32
    %319 = vector.broadcast %c1_i32_120 : i32 to vector<128x1xi32>
    %320 = arith.addi %7, %319 : vector<128x1xi32>
    %c16_i32_121 = arith.constant 16 : i32
    %321 = vector.broadcast %c16_i32_121 : i32 to vector<128x1xi32>
    %322 = arith.cmpi slt, %320, %321 : vector<128x1xi32>
    %323 = arith.andi %318, %322 : vector<128x1xi1>
    %cst_122 = arith.constant 0xFF800000 : f32
    %324 = vector.shape_cast %323 : vector<128x1xi1> to vector<128x1xi1>
    %325 = vector.broadcast %324 : vector<128x1xi1> to vector<128x128xi1>
    %326 = vector.broadcast %cst_122 : f32 to vector<128x128xf32>
    %327 = arith.select %325, %314, %326 : vector<128x128xi1>, vector<128x128xf32>
    %328 = arith.maximumf %313, %327 : vector<128x128xf32>
    %c1_i32_123 = arith.constant 1 : i32
    %329 = tpu.dynamic_rotate %313 by %c1_i32_123 dim 0 : vector<128x128xf32>, i32 -> vector<128x128xf32>
    %c-1_i32_124 = arith.constant -1 : i32
    %330 = vector.broadcast %c-1_i32_124 : i32 to vector<128x1xi32>
    %331 = arith.addi %7, %330 : vector<128x1xi32>
    %c0_i32_125 = arith.constant 0 : i32
    %332 = vector.broadcast %c0_i32_125 : i32 to vector<128x1xi32>
    %333 = arith.cmpi sge, %331, %332 : vector<128x1xi32>
    %c-1_i32_126 = arith.constant -1 : i32
    %334 = vector.broadcast %c-1_i32_126 : i32 to vector<128x1xi32>
    %335 = arith.addi %7, %334 : vector<128x1xi32>
    %c16_i32_127 = arith.constant 16 : i32
    %336 = vector.broadcast %c16_i32_127 : i32 to vector<128x1xi32>
    %337 = arith.cmpi slt, %335, %336 : vector<128x1xi32>
    %338 = arith.andi %333, %337 : vector<128x1xi1>
    %cst_128 = arith.constant 0xFF800000 : f32
    %339 = vector.shape_cast %338 : vector<128x1xi1> to vector<128x1xi1>
    %340 = vector.broadcast %339 : vector<128x1xi1> to vector<128x128xi1>
    %341 = vector.broadcast %cst_128 : f32 to vector<128x128xf32>
    %342 = arith.select %340, %329, %341 : vector<128x128xi1>, vector<128x128xf32>
    %343 = arith.maximumf %328, %342 : vector<128x128xf32>
    %c126_i32_129 = arith.constant 126 : i32
    %344 = tpu.dynamic_rotate %313 by %c126_i32_129 dim 0 : vector<128x128xf32>, i32 -> vector<128x128xf32>
    %c2_i32_130 = arith.constant 2 : i32
    %345 = vector.broadcast %c2_i32_130 : i32 to vector<128x1xi32>
    %346 = arith.addi %7, %345 : vector<128x1xi32>
    %c0_i32_131 = arith.constant 0 : i32
    %347 = vector.broadcast %c0_i32_131 : i32 to vector<128x1xi32>
    %348 = arith.cmpi sge, %346, %347 : vector<128x1xi32>
    %c2_i32_132 = arith.constant 2 : i32
    %349 = vector.broadcast %c2_i32_132 : i32 to vector<128x1xi32>
    %350 = arith.addi %7, %349 : vector<128x1xi32>
    %c16_i32_133 = arith.constant 16 : i32
    %351 = vector.broadcast %c16_i32_133 : i32 to vector<128x1xi32>
    %352 = arith.cmpi slt, %350, %351 : vector<128x1xi32>
    %353 = arith.andi %348, %352 : vector<128x1xi1>
    %cst_134 = arith.constant 0xFF800000 : f32
    %354 = vector.shape_cast %353 : vector<128x1xi1> to vector<128x1xi1>
    %355 = vector.broadcast %354 : vector<128x1xi1> to vector<128x128xi1>
    %356 = vector.broadcast %cst_134 : f32 to vector<128x128xf32>
    %357 = arith.select %355, %344, %356 : vector<128x128xi1>, vector<128x128xf32>
    %358 = arith.maximumf %343, %357 : vector<128x128xf32>
    %c2_i32_135 = arith.constant 2 : i32
    %359 = tpu.dynamic_rotate %313 by %c2_i32_135 dim 0 : vector<128x128xf32>, i32 -> vector<128x128xf32>
    %c-2_i32_136 = arith.constant -2 : i32
    %360 = vector.broadcast %c-2_i32_136 : i32 to vector<128x1xi32>
    %361 = arith.addi %7, %360 : vector<128x1xi32>
    %c0_i32_137 = arith.constant 0 : i32
    %362 = vector.broadcast %c0_i32_137 : i32 to vector<128x1xi32>
    %363 = arith.cmpi sge, %361, %362 : vector<128x1xi32>
    %c-2_i32_138 = arith.constant -2 : i32
    %364 = vector.broadcast %c-2_i32_138 : i32 to vector<128x1xi32>
    %365 = arith.addi %7, %364 : vector<128x1xi32>
    %c16_i32_139 = arith.constant 16 : i32
    %366 = vector.broadcast %c16_i32_139 : i32 to vector<128x1xi32>
    %367 = arith.cmpi slt, %365, %366 : vector<128x1xi32>
    %368 = arith.andi %363, %367 : vector<128x1xi1>
    %cst_140 = arith.constant 0xFF800000 : f32
    %369 = vector.shape_cast %368 : vector<128x1xi1> to vector<128x1xi1>
    %370 = vector.broadcast %369 : vector<128x1xi1> to vector<128x128xi1>
    %371 = vector.broadcast %cst_140 : f32 to vector<128x128xf32>
    %372 = arith.select %370, %359, %371 : vector<128x128xi1>, vector<128x128xf32>
    %373 = arith.maximumf %358, %372 : vector<128x128xf32>
    %374 = arith.mulf %133, %253 : vector<128x128xf32>
    %375 = vector.shape_cast %374 : vector<128x128xf32> to vector<8x16x128xf32>
    %cst_141 = arith.constant dense<0.000000e+00> : vector<8x128xf32>
    %376 = vector.multi_reduction <add>, %375, %cst_141 [1] : vector<8x16x128xf32> to vector<8x128xf32>
    %377 = vector.extract_strided_slice %376 {offsets = [0, 0], sizes = [8, 16], strides = [1, 1]} : vector<8x128xf32> to vector<8x16xf32>
    %cst_142 = arith.constant dense<0.000000e+00> : vector<8xf32>
    %378 = vector.multi_reduction <add>, %377, %cst_142 [1] : vector<8x16xf32> to vector<8xf32>
    %379 = vector.shape_cast %378 : vector<8xf32> to vector<8x1xf32>
    %380 = vector.extract_strided_slice %376 {offsets = [0, 16], sizes = [8, 16], strides = [1, 1]} : vector<8x128xf32> to vector<8x16xf32>
    %cst_143 = arith.constant dense<0.000000e+00> : vector<8xf32>
    %381 = vector.multi_reduction <add>, %380, %cst_143 [1] : vector<8x16xf32> to vector<8xf32>
    %382 = vector.shape_cast %381 : vector<8xf32> to vector<8x1xf32>
    %383 = vector.extract_strided_slice %376 {offsets = [0, 32], sizes = [8, 16], strides = [1, 1]} : vector<8x128xf32> to vector<8x16xf32>
    %cst_144 = arith.constant dense<0.000000e+00> : vector<8xf32>
    %384 = vector.multi_reduction <add>, %383, %cst_144 [1] : vector<8x16xf32> to vector<8xf32>
    %385 = vector.shape_cast %384 : vector<8xf32> to vector<8x1xf32>
    %386 = vector.extract_strided_slice %376 {offsets = [0, 48], sizes = [8, 16], strides = [1, 1]} : vector<8x128xf32> to vector<8x16xf32>
    %cst_145 = arith.constant dense<0.000000e+00> : vector<8xf32>
    %387 = vector.multi_reduction <add>, %386, %cst_145 [1] : vector<8x16xf32> to vector<8xf32>
    %388 = vector.shape_cast %387 : vector<8xf32> to vector<8x1xf32>
    %389 = vector.extract_strided_slice %376 {offsets = [0, 64], sizes = [8, 16], strides = [1, 1]} : vector<8x128xf32> to vector<8x16xf32>
    %cst_146 = arith.constant dense<0.000000e+00> : vector<8xf32>
    %390 = vector.multi_reduction <add>, %389, %cst_146 [1] : vector<8x16xf32> to vector<8xf32>
    %391 = vector.shape_cast %390 : vector<8xf32> to vector<8x1xf32>
    %392 = vector.extract_strided_slice %376 {offsets = [0, 80], sizes = [8, 16], strides = [1, 1]} : vector<8x128xf32> to vector<8x16xf32>
    %cst_147 = arith.constant dense<0.000000e+00> : vector<8xf32>
    %393 = vector.multi_reduction <add>, %392, %cst_147 [1] : vector<8x16xf32> to vector<8xf32>
    %394 = vector.shape_cast %393 : vector<8xf32> to vector<8x1xf32>
    %395 = vector.extract_strided_slice %376 {offsets = [0, 96], sizes = [8, 16], strides = [1, 1]} : vector<8x128xf32> to vector<8x16xf32>
    %cst_148 = arith.constant dense<0.000000e+00> : vector<8xf32>
    %396 = vector.multi_reduction <add>, %395, %cst_148 [1] : vector<8x16xf32> to vector<8xf32>
    %397 = vector.shape_cast %396 : vector<8xf32> to vector<8x1xf32>
    %398 = vector.extract_strided_slice %376 {offsets = [0, 112], sizes = [8, 16], strides = [1, 1]} : vector<8x128xf32> to vector<8x16xf32>
    %cst_149 = arith.constant dense<0.000000e+00> : vector<8xf32>
    %399 = vector.multi_reduction <add>, %398, %cst_149 [1] : vector<8x16xf32> to vector<8xf32>
    %400 = vector.shape_cast %399 : vector<8xf32> to vector<8x1xf32>
    %401 = tpu.concatenate %379, %382, %385, %388, %391, %394, %397, %400 in 1 : vector<8x1xf32>, vector<8x1xf32>, vector<8x1xf32>, vector<8x1xf32>, vector<8x1xf32>, vector<8x1xf32>, vector<8x1xf32>, vector<8x1xf32> -> vector<8x8xf32>
    %402 = vector.shape_cast %133 : vector<128x128xf32> to vector<8x16x128xf32>
    %cst_150 = arith.constant dense<0.000000e+00> : vector<8x128xf32>
    %403 = vector.multi_reduction <add>, %402, %cst_150 [1] : vector<8x16x128xf32> to vector<8x128xf32>
    %404 = vector.extract_strided_slice %403 {offsets = [0, 0], sizes = [8, 16], strides = [1, 1]} : vector<8x128xf32> to vector<8x16xf32>
    %cst_151 = arith.constant dense<0.000000e+00> : vector<8xf32>
    %405 = vector.multi_reduction <add>, %404, %cst_151 [1] : vector<8x16xf32> to vector<8xf32>
    %406 = vector.shape_cast %405 : vector<8xf32> to vector<8x1xf32>
    %407 = vector.extract_strided_slice %403 {offsets = [0, 16], sizes = [8, 16], strides = [1, 1]} : vector<8x128xf32> to vector<8x16xf32>
    %cst_152 = arith.constant dense<0.000000e+00> : vector<8xf32>
    %408 = vector.multi_reduction <add>, %407, %cst_152 [1] : vector<8x16xf32> to vector<8xf32>
    %409 = vector.shape_cast %408 : vector<8xf32> to vector<8x1xf32>
    %410 = vector.extract_strided_slice %403 {offsets = [0, 32], sizes = [8, 16], strides = [1, 1]} : vector<8x128xf32> to vector<8x16xf32>
    %cst_153 = arith.constant dense<0.000000e+00> : vector<8xf32>
    %411 = vector.multi_reduction <add>, %410, %cst_153 [1] : vector<8x16xf32> to vector<8xf32>
    %412 = vector.shape_cast %411 : vector<8xf32> to vector<8x1xf32>
    %413 = vector.extract_strided_slice %403 {offsets = [0, 48], sizes = [8, 16], strides = [1, 1]} : vector<8x128xf32> to vector<8x16xf32>
    %cst_154 = arith.constant dense<0.000000e+00> : vector<8xf32>
    %414 = vector.multi_reduction <add>, %413, %cst_154 [1] : vector<8x16xf32> to vector<8xf32>
    %415 = vector.shape_cast %414 : vector<8xf32> to vector<8x1xf32>
    %416 = vector.extract_strided_slice %403 {offsets = [0, 64], sizes = [8, 16], strides = [1, 1]} : vector<8x128xf32> to vector<8x16xf32>
    %cst_155 = arith.constant dense<0.000000e+00> : vector<8xf32>
    %417 = vector.multi_reduction <add>, %416, %cst_155 [1] : vector<8x16xf32> to vector<8xf32>
    %418 = vector.shape_cast %417 : vector<8xf32> to vector<8x1xf32>
    %419 = vector.extract_strided_slice %403 {offsets = [0, 80], sizes = [8, 16], strides = [1, 1]} : vector<8x128xf32> to vector<8x16xf32>
    %cst_156 = arith.constant dense<0.000000e+00> : vector<8xf32>
    %420 = vector.multi_reduction <add>, %419, %cst_156 [1] : vector<8x16xf32> to vector<8xf32>
    %421 = vector.shape_cast %420 : vector<8xf32> to vector<8x1xf32>
    %422 = vector.extract_strided_slice %403 {offsets = [0, 96], sizes = [8, 16], strides = [1, 1]} : vector<8x128xf32> to vector<8x16xf32>
    %cst_157 = arith.constant dense<0.000000e+00> : vector<8xf32>
    %423 = vector.multi_reduction <add>, %422, %cst_157 [1] : vector<8x16xf32> to vector<8xf32>
    %424 = vector.shape_cast %423 : vector<8xf32> to vector<8x1xf32>
    %425 = vector.extract_strided_slice %403 {offsets = [0, 112], sizes = [8, 16], strides = [1, 1]} : vector<8x128xf32> to vector<8x16xf32>
    %cst_158 = arith.constant dense<0.000000e+00> : vector<8xf32>
    %426 = vector.multi_reduction <add>, %425, %cst_158 [1] : vector<8x16xf32> to vector<8xf32>
    %427 = vector.shape_cast %426 : vector<8xf32> to vector<8x1xf32>
    %428 = tpu.concatenate %406, %409, %412, %415, %418, %421, %424, %427 in 1 : vector<8x1xf32>, vector<8x1xf32>, vector<8x1xf32>, vector<8x1xf32>, vector<8x1xf32>, vector<8x1xf32>, vector<8x1xf32>, vector<8x1xf32> -> vector<8x8xf32>
    %429 = arith.mulf %373, %72 : vector<128x128xf32>
    %430 = vector.shape_cast %429 : vector<128x128xf32> to vector<8x16x128xf32>
    %cst_159 = arith.constant dense<0.000000e+00> : vector<8x128xf32>
    %431 = vector.multi_reduction <add>, %430, %cst_159 [1] : vector<8x16x128xf32> to vector<8x128xf32>
    %432 = vector.extract_strided_slice %431 {offsets = [0, 0], sizes = [8, 16], strides = [1, 1]} : vector<8x128xf32> to vector<8x16xf32>
    %cst_160 = arith.constant dense<0.000000e+00> : vector<8xf32>
    %433 = vector.multi_reduction <add>, %432, %cst_160 [1] : vector<8x16xf32> to vector<8xf32>
    %434 = vector.shape_cast %433 : vector<8xf32> to vector<8x1xf32>
    %435 = vector.extract_strided_slice %431 {offsets = [0, 16], sizes = [8, 16], strides = [1, 1]} : vector<8x128xf32> to vector<8x16xf32>
    %cst_161 = arith.constant dense<0.000000e+00> : vector<8xf32>
    %436 = vector.multi_reduction <add>, %435, %cst_161 [1] : vector<8x16xf32> to vector<8xf32>
    %437 = vector.shape_cast %436 : vector<8xf32> to vector<8x1xf32>
    %438 = vector.extract_strided_slice %431 {offsets = [0, 32], sizes = [8, 16], strides = [1, 1]} : vector<8x128xf32> to vector<8x16xf32>
    %cst_162 = arith.constant dense<0.000000e+00> : vector<8xf32>
    %439 = vector.multi_reduction <add>, %438, %cst_162 [1] : vector<8x16xf32> to vector<8xf32>
    %440 = vector.shape_cast %439 : vector<8xf32> to vector<8x1xf32>
    %441 = vector.extract_strided_slice %431 {offsets = [0, 48], sizes = [8, 16], strides = [1, 1]} : vector<8x128xf32> to vector<8x16xf32>
    %cst_163 = arith.constant dense<0.000000e+00> : vector<8xf32>
    %442 = vector.multi_reduction <add>, %441, %cst_163 [1] : vector<8x16xf32> to vector<8xf32>
    %443 = vector.shape_cast %442 : vector<8xf32> to vector<8x1xf32>
    %444 = vector.extract_strided_slice %431 {offsets = [0, 64], sizes = [8, 16], strides = [1, 1]} : vector<8x128xf32> to vector<8x16xf32>
    %cst_164 = arith.constant dense<0.000000e+00> : vector<8xf32>
    %445 = vector.multi_reduction <add>, %444, %cst_164 [1] : vector<8x16xf32> to vector<8xf32>
    %446 = vector.shape_cast %445 : vector<8xf32> to vector<8x1xf32>
    %447 = vector.extract_strided_slice %431 {offsets = [0, 80], sizes = [8, 16], strides = [1, 1]} : vector<8x128xf32> to vector<8x16xf32>
    %cst_165 = arith.constant dense<0.000000e+00> : vector<8xf32>
    %448 = vector.multi_reduction <add>, %447, %cst_165 [1] : vector<8x16xf32> to vector<8xf32>
    %449 = vector.shape_cast %448 : vector<8xf32> to vector<8x1xf32>
    %450 = vector.extract_strided_slice %431 {offsets = [0, 96], sizes = [8, 16], strides = [1, 1]} : vector<8x128xf32> to vector<8x16xf32>
    %cst_166 = arith.constant dense<0.000000e+00> : vector<8xf32>
    %451 = vector.multi_reduction <add>, %450, %cst_166 [1] : vector<8x16xf32> to vector<8xf32>
    %452 = vector.shape_cast %451 : vector<8xf32> to vector<8x1xf32>
    %453 = vector.extract_strided_slice %431 {offsets = [0, 112], sizes = [8, 16], strides = [1, 1]} : vector<8x128xf32> to vector<8x16xf32>
    %cst_167 = arith.constant dense<0.000000e+00> : vector<8xf32>
    %454 = vector.multi_reduction <add>, %453, %cst_167 [1] : vector<8x16xf32> to vector<8xf32>
    %455 = vector.shape_cast %454 : vector<8xf32> to vector<8x1xf32>
    %456 = tpu.concatenate %434, %437, %440, %443, %446, %449, %452, %455 in 1 : vector<8x1xf32>, vector<8x1xf32>, vector<8x1xf32>, vector<8x1xf32>, vector<8x1xf32>, vector<8x1xf32>, vector<8x1xf32>, vector<8x1xf32> -> vector<8x8xf32>
    %457 = vector.shape_cast %72 : vector<128x128xf32> to vector<8x16x128xf32>
    %cst_168 = arith.constant dense<0.000000e+00> : vector<8x128xf32>
    %458 = vector.multi_reduction <add>, %457, %cst_168 [1] : vector<8x16x128xf32> to vector<8x128xf32>
    %459 = vector.extract_strided_slice %458 {offsets = [0, 0], sizes = [8, 16], strides = [1, 1]} : vector<8x128xf32> to vector<8x16xf32>
    %cst_169 = arith.constant dense<0.000000e+00> : vector<8xf32>
    %460 = vector.multi_reduction <add>, %459, %cst_169 [1] : vector<8x16xf32> to vector<8xf32>
    %461 = vector.shape_cast %460 : vector<8xf32> to vector<8x1xf32>
    %462 = vector.extract_strided_slice %458 {offsets = [0, 16], sizes = [8, 16], strides = [1, 1]} : vector<8x128xf32> to vector<8x16xf32>
    %cst_170 = arith.constant dense<0.000000e+00> : vector<8xf32>
    %463 = vector.multi_reduction <add>, %462, %cst_170 [1] : vector<8x16xf32> to vector<8xf32>
    %464 = vector.shape_cast %463 : vector<8xf32> to vector<8x1xf32>
    %465 = vector.extract_strided_slice %458 {offsets = [0, 32], sizes = [8, 16], strides = [1, 1]} : vector<8x128xf32> to vector<8x16xf32>
    %cst_171 = arith.constant dense<0.000000e+00> : vector<8xf32>
    %466 = vector.multi_reduction <add>, %465, %cst_171 [1] : vector<8x16xf32> to vector<8xf32>
    %467 = vector.shape_cast %466 : vector<8xf32> to vector<8x1xf32>
    %468 = vector.extract_strided_slice %458 {offsets = [0, 48], sizes = [8, 16], strides = [1, 1]} : vector<8x128xf32> to vector<8x16xf32>
    %cst_172 = arith.constant dense<0.000000e+00> : vector<8xf32>
    %469 = vector.multi_reduction <add>, %468, %cst_172 [1] : vector<8x16xf32> to vector<8xf32>
    %470 = vector.shape_cast %469 : vector<8xf32> to vector<8x1xf32>
    %471 = vector.extract_strided_slice %458 {offsets = [0, 64], sizes = [8, 16], strides = [1, 1]} : vector<8x128xf32> to vector<8x16xf32>
    %cst_173 = arith.constant dense<0.000000e+00> : vector<8xf32>
    %472 = vector.multi_reduction <add>, %471, %cst_173 [1] : vector<8x16xf32> to vector<8xf32>
    %473 = vector.shape_cast %472 : vector<8xf32> to vector<8x1xf32>
    %474 = vector.extract_strided_slice %458 {offsets = [0, 80], sizes = [8, 16], strides = [1, 1]} : vector<8x128xf32> to vector<8x16xf32>
    %cst_174 = arith.constant dense<0.000000e+00> : vector<8xf32>
    %475 = vector.multi_reduction <add>, %474, %cst_174 [1] : vector<8x16xf32> to vector<8xf32>
    %476 = vector.shape_cast %475 : vector<8xf32> to vector<8x1xf32>
    %477 = vector.extract_strided_slice %458 {offsets = [0, 96], sizes = [8, 16], strides = [1, 1]} : vector<8x128xf32> to vector<8x16xf32>
    %cst_175 = arith.constant dense<0.000000e+00> : vector<8xf32>
    %478 = vector.multi_reduction <add>, %477, %cst_175 [1] : vector<8x16xf32> to vector<8xf32>
    %479 = vector.shape_cast %478 : vector<8xf32> to vector<8x1xf32>
    %480 = vector.extract_strided_slice %458 {offsets = [0, 112], sizes = [8, 16], strides = [1, 1]} : vector<8x128xf32> to vector<8x16xf32>
    %cst_176 = arith.constant dense<0.000000e+00> : vector<8xf32>
    %481 = vector.multi_reduction <add>, %480, %cst_176 [1] : vector<8x16xf32> to vector<8xf32>
    %482 = vector.shape_cast %481 : vector<8xf32> to vector<8x1xf32>
    %483 = tpu.concatenate %461, %464, %467, %470, %473, %476, %479, %482 in 1 : vector<8x1xf32>, vector<8x1xf32>, vector<8x1xf32>, vector<8x1xf32>, vector<8x1xf32>, vector<8x1xf32>, vector<8x1xf32>, vector<8x1xf32> -> vector<8x8xf32>
    %484 = tpu.concatenate %401, %428, %456, %483 in 1 : vector<8x8xf32>, vector<8x8xf32>, vector<8x8xf32>, vector<8x8xf32> -> vector<8x32xf32>
    %cst_177 = arith.constant 0.000000e+00 : f32
    %485 = vector.broadcast %cst_177 : f32 to vector<8x96xf32>
    %486 = tpu.concatenate %484, %485 in 1 : vector<8x32xf32>, vector<8x96xf32> -> vector<8x128xf32>
    %c0_178 = arith.constant 0 : index
    %c0_179 = arith.constant 0 : index
    %487 = vector.load %arg3[%c0_178, %c0_179] : memref<8x128xf32, #tpu.memory_space<vmem>>, vector<8x128xf32>
    tpu.vector_store %arg3[%c0_178, %c0_179], %486 {strides = array<i32>} : memref<8x128xf32, #tpu.memory_space<vmem>>, vector<8x128xf32>,
    return
  }
  func.func @transform_0(%arg0: i32) -> (i32, i32) {
    %c0_i32 = arith.constant 0 : i32
    %c0_i32_0 = arith.constant 0 : i32
    return %arg0, %c0_i32 : i32, i32
  }
  func.func @transform_1(%arg0: i32) -> (i32, i32) {
    %c0_i32 = arith.constant 0 : i32
    %c0_i32_0 = arith.constant 0 : i32
    return %arg0, %c0_i32 : i32, i32
  }
  func.func @transform_2(%arg0: i32) -> (i32, i32) {
    %c0_i32 = arith.constant 0 : i32
    %c0_i32_0 = arith.constant 0 : i32
    return %arg0, %c0_i32 : i32, i32
  }
}

</mosaic_0001>

<llo_original>
// kernel: boundary_loss.1
$region0: #{boundary_loss.1}
  #allocation0 [shape = 'u32[]', space=smem, size = 0x4, offset = 0x4, fixed_abs, tag = 'smem constant byte address 0x4 - core index']
  #allocation1 [shape = 'u32[144,128]{1,0:T(1,128)}', space=vmem, size = 0x12000, scoped, tag = 'internal scratch']
  %s0 = inlined_call_operand.vmem [shape: f32[128,128], index: 0, kind: input, shape index: {}]
  %s1 = inlined_call_operand.vmem [shape: f32[128,128], index: 1, kind: input, shape index: {}]
  %s2 = inlined_call_operand.vmem [shape: f32[8,128], index: 2, kind: output, shape index: {}]
  %s3 = sld [smem:[#allocation0]]
  $region18: #{boundary_loss.1} parent=0
    _
  %s5 = ssub.s32 1, %s3
  %s6 = scalar_select 0, %s5, %s3
  // Predicated region
  $region2: #{boundary_loss.1} parent=0 // pred_check
    _
  $region3: #{boundary_loss.1} parent=0 // pred_check_branch
    %8 = sbr.rel (0) target = $region5
  $region4: #{boundary_loss.1} parent=0 // pred_region
    _
  $region5: #{boundary_loss.1} parent=0 // pred_fallthru
    _
  // Predicated region
  $region6: #{boundary_loss.1} parent=0 // pred_check
    _
  $region7: #{boundary_loss.1} parent=0 // pred_check_branch
    %10 = sbr.rel (0) target = $region9
  $region8: #{boundary_loss.1} parent=0 // pred_region
    _
  $region9: #{boundary_loss.1} parent=0 // pred_fallthru
    _
  %v11 = vld [vmem:[%s0] sm:$0xff]
  %v12 = vld [vmem:[%s0 + $0x8] sm:$0xff]
  %v13 = vld [vmem:[%s0 + $0x10] sm:$0xff]
  %v14 = vld [vmem:[%s0 + $0x18] sm:$0xff]
  %v15 = vld [vmem:[%s0 + $0x20] sm:$0xff]
  %v16 = vld [vmem:[%s0 + $0x28] sm:$0xff]
  %v17 = vld [vmem:[%s0 + $0x30] sm:$0xff]
  %v18 = vld [vmem:[%s0 + $0x38] sm:$0xff]
  %v19 = vld [vmem:[%s0 + $0x40] sm:$0xff]
  %v20 = vld [vmem:[%s0 + $0x48] sm:$0xff]
  %v21 = vld [vmem:[%s0 + $0x50] sm:$0xff]
  %v22 = vld [vmem:[%s0 + $0x58] sm:$0xff]
  %v23 = vld [vmem:[%s0 + $0x60] sm:$0xff]
  %v24 = vld [vmem:[%s0 + $0x68] sm:$0xff]
  %v25 = vld [vmem:[%s0 + $0x70] sm:$0xff]
  %v26 = vld [vmem:[%s0 + $0x78] sm:$0xff]
  %v27 = vld [vmem:[%s1] sm:$0xff]
  %v28 = vld [vmem:[%s1 + $0x8] sm:$0xff]
  %v29 = vld [vmem:[%s1 + $0x10] sm:$0xff]
  %v30 = vld [vmem:[%s1 + $0x18] sm:$0xff]
  %v31 = vld [vmem:[%s1 + $0x20] sm:$0xff]
  %v32 = vld [vmem:[%s1 + $0x28] sm:$0xff]
  %v33 = vld [vmem:[%s1 + $0x30] sm:$0xff]
  %v34 = vld [vmem:[%s1 + $0x38] sm:$0xff]
  %v35 = vld [vmem:[%s1 + $0x40] sm:$0xff]
  %v36 = vld [vmem:[%s1 + $0x48] sm:$0xff]
  %v37 = vld [vmem:[%s1 + $0x50] sm:$0xff]
  %v38 = vld [vmem:[%s1 + $0x58] sm:$0xff]
  %v39 = vld [vmem:[%s1 + $0x60] sm:$0xff]
  %v40 = vld [vmem:[%s1 + $0x68] sm:$0xff]
  %v41 = vld [vmem:[%s1 + $0x70] sm:$0xff]
  %v42 = vld [vmem:[%s1 + $0x78] sm:$0xff]
  %v43 = vlaneseq
  %v44 = vand.u32 %v43, 127
  %v45 = vand.u32 %v44, 15
  %v46 = vlaneseq
  %v47 = vshrl.u32 %v46, 7
  %v48 = vadd.s32 %v47, 8
  %v49 = vadd.s32 %v47, 16
  %v50 = vadd.s32 %v47, 24
  %v51 = vadd.s32 %v47, 32
  %v52 = vadd.s32 %v47, 40
  %v53 = vadd.s32 %v47, 48
  %v54 = vadd.s32 %v47, 56
  %v55 = vadd.s32 %v47, 64
  %v56 = vadd.s32 %v47, 72
  %v57 = vadd.s32 %v47, 80
  %v58 = vadd.s32 %v47, 88
  %v59 = vadd.s32 %v47, 96
  %v60 = vadd.s32 %v47, 104
  %v61 = vadd.s32 %v47, 112
  %v62 = vadd.s32 %v47, 120
  %v63 = vand.u32 %v47, 15
  %v64 = vand.u32 %v48, 15
  %v65 = vand.u32 %v49, 15
  %v66 = vand.u32 %v50, 15
  %v67 = vand.u32 %v51, 15
  %v68 = vand.u32 %v52, 15
  %v69 = vand.u32 %v53, 15
  %v70 = vand.u32 %v54, 15
  %v71 = vand.u32 %v55, 15
  %v72 = vand.u32 %v56, 15
  %v73 = vand.u32 %v57, 15
  %v74 = vand.u32 %v58, 15
  %v75 = vand.u32 %v59, 15
  %v76 = vand.u32 %v60, 15
  %v77 = vand.u32 %v61, 15
  %v78 = vand.u32 %v62, 15
  %v79 = vsub.f32 1.0, %v27
  %v80 = vsub.f32 1.0, %v28
  %v81 = vsub.f32 1.0, %v29
  %v82 = vsub.f32 1.0, %v30
  %v83 = vsub.f32 1.0, %v31
  %v84 = vsub.f32 1.0, %v32
  %v85 = vsub.f32 1.0, %v33
  %v86 = vsub.f32 1.0, %v34
  %v87 = vsub.f32 1.0, %v35
  %v88 = vsub.f32 1.0, %v36
  %v89 = vsub.f32 1.0, %v37
  %v90 = vsub.f32 1.0, %v38
  %v91 = vsub.f32 1.0, %v39
  %v92 = vsub.f32 1.0, %v40
  %v93 = vsub.f32 1.0, %v41
  %v94 = vsub.f32 1.0, %v42
  %v95 = vsub.f32 1.0, %v11
  %v96 = vsub.f32 1.0, %v12
  %v97 = vsub.f32 1.0, %v13
  %v98 = vsub.f32 1.0, %v14
  %v99 = vsub.f32 1.0, %v15
  %v100 = vsub.f32 1.0, %v16
  %v101 = vsub.f32 1.0, %v17
  %v102 = vsub.f32 1.0, %v18
  %v103 = vsub.f32 1.0, %v19
  %v104 = vsub.f32 1.0, %v20
  %v105 = vsub.f32 1.0, %v21
  %v106 = vsub.f32 1.0, %v22
  %v107 = vsub.f32 1.0, %v23
  %v108 = vsub.f32 1.0, %v24
  %v109 = vsub.f32 1.0, %v25
  %v110 = vsub.f32 1.0, %v26
  %111 = vrot.lane.b32.xlu0 %v79, 127
  %v112 = vpop.permute.xlu0 %111
  %113 = vrot.lane.b32.xlu0 %v80, 127
  %v114 = vpop.permute.xlu0 %113
  %115 = vrot.lane.b32.xlu0 %v81, 127
  %v116 = vpop.permute.xlu0 %115
  %117 = vrot.lane.b32.xlu0 %v82, 127
  %v118 = vpop.permute.xlu0 %117
  %119 = vrot.lane.b32.xlu0 %v83, 127
  %v120 = vpop.permute.xlu0 %119
  %121 = vrot.lane.b32.xlu0 %v84, 127
  %v122 = vpop.permute.xlu0 %121
  %123 = vrot.lane.b32.xlu0 %v85, 127
  %v124 = vpop.permute.xlu0 %123
  %125 = vrot.lane.b32.xlu0 %v86, 127
  %v126 = vpop.permute.xlu0 %125
  %127 = vrot.lane.b32.xlu0 %v87, 127
  %v128 = vpop.permute.xlu0 %127
  %129 = vrot.lane.b32.xlu0 %v88, 127
  %v130 = vpop.permute.xlu0 %129
  %131 = vrot.lane.b32.xlu0 %v89, 127
  %v132 = vpop.permute.xlu0 %131
  %133 = vrot.lane.b32.xlu0 %v90, 127
  %v134 = vpop.permute.xlu0 %133
  %135 = vrot.lane.b32.xlu0 %v91, 127
  %v136 = vpop.permute.xlu0 %135
  %137 = vrot.lane.b32.xlu0 %v92, 127
  %v138 = vpop.permute.xlu0 %137
  %139 = vrot.lane.b32.xlu0 %v93, 127
  %v140 = vpop.permute.xlu0 %139
  %141 = vrot.lane.b32.xlu0 %v94, 127
  %v142 = vpop.permute.xlu0 %141
  %v143 = vadd.s32 %v45, 1
  %vm144 = vcmp.ge.s32.totalorder %v143, 0
  %vm145 = vcmp.lt.s32.totalorder %v143, 16
  %vm146 = vmand %vm144, %vm145
  %v147 = vsel %vm146, 1, 0
  %vm148 = vcmp.eq.s32.totalorder %v147, 1
  %v149 = vsel %vm148, %v112, -inf
  %v150 = vsel %vm148, %v114, -inf
  %v151 = vsel %vm148, %v116, -inf
  %v152 = vsel %vm148, %v118, -inf
  %v153 = vsel %vm148, %v120, -inf
  %v154 = vsel %vm148, %v122, -inf
  %v155 = vsel %vm148, %v124, -inf
  %v156 = vsel %vm148, %v126, -inf
  %v157 = vsel %vm148, %v128, -inf
  %v158 = vsel %vm148, %v130, -inf
  %v159 = vsel %vm148, %v132, -inf
  %v160 = vsel %vm148, %v134, -inf
  %v161 = vsel %vm148, %v136, -inf
  %v162 = vsel %vm148, %v138, -inf
  %v163 = vsel %vm148, %v140, -inf
  %v164 = vsel %vm148, %v142, -inf
  %v165 = vmax.f32 %v79, %v149
  %v166 = vmax.f32 %v80, %v150
  %v167 = vmax.f32 %v81, %v151
  %v168 = vmax.f32 %v82, %v152
  %v169 = vmax.f32 %v83, %v153
  %v170 = vmax.f32 %v84, %v154
  %v171 = vmax.f32 %v85, %v155
  %v172 = vmax.f32 %v86, %v156
  %v173 = vmax.f32 %v87, %v157
  %v174 = vmax.f32 %v88, %v158
  %v175 = vmax.f32 %v89, %v159
  %v176 = vmax.f32 %v90, %v160
  %v177 = vmax.f32 %v91, %v161
  %v178 = vmax.f32 %v92, %v162
  %v179 = vmax.f32 %v93, %v163
  %v180 = vmax.f32 %v94, %v164
  %181 = vrot.lane.b32.xlu0 %v79, 1
  %v182 = vpop.permute.xlu0 %181
  %183 = vrot.lane.b32.xlu0 %v80, 1
  %v184 = vpop.permute.xlu0 %183
  %185 = vrot.lane.b32.xlu0 %v81, 1
  %v186 = vpop.permute.xlu0 %185
  %187 = vrot.lane.b32.xlu0 %v82, 1
  %v188 = vpop.permute.xlu0 %187
  %189 = vrot.lane.b32.xlu0 %v83, 1
  %v190 = vpop.permute.xlu0 %189
  %191 = vrot.lane.b32.xlu0 %v84, 1
  %v192 = vpop.permute.xlu0 %191
  %193 = vrot.lane.b32.xlu0 %v85, 1
  %v194 = vpop.permute.xlu0 %193
  %195 = vrot.lane.b32.xlu0 %v86, 1
  %v196 = vpop.permute.xlu0 %195
  %197 = vrot.lane.b32.xlu0 %v87, 1
  %v198 = vpop.permute.xlu0 %197
  %199 = vrot.lane.b32.xlu0 %v88, 1
  %v200 = vpop.permute.xlu0 %199
  %201 = vrot.lane.b32.xlu0 %v89, 1
  %v202 = vpop.permute.xlu0 %201
  %203 = vrot.lane.b32.xlu0 %v90, 1
  %v204 = vpop.permute.xlu0 %203
  %205 = vrot.lane.b32.xlu0 %v91, 1
  %v206 = vpop.permute.xlu0 %205
  %207 = vrot.lane.b32.xlu0 %v92, 1
  %v208 = vpop.permute.xlu0 %207
  %209 = vrot.lane.b32.xlu0 %v93, 1
  %v210 = vpop.permute.xlu0 %209
  %211 = vrot.lane.b32.xlu0 %v94, 1
  %v212 = vpop.permute.xlu0 %211
  %v213 = vadd.s32 %v45, 4294967295
  %vm214 = vcmp.ge.s32.totalorder %v213, 0
  %vm215 = vcmp.lt.s32.totalorder %v213, 16
  %vm216 = vmand %vm214, %vm215
  %v217 = vsel %vm216, 1, 0
  %vm218 = vcmp.eq.s32.totalorder %v217, 1
  %v219 = vsel %vm218, %v182, -inf
  %v220 = vsel %vm218, %v184, -inf
  %v221 = vsel %vm218, %v186, -inf
  %v222 = vsel %vm218, %v188, -inf
  %v223 = vsel %vm218, %v190, -inf
  %v224 = vsel %vm218, %v192, -inf
  %v225 = vsel %vm218, %v194, -inf
  %v226 = vsel %vm218, %v196, -inf
  %v227 = vsel %vm218, %v198, -inf
  %v228 = vsel %vm218, %v200, -inf
  %v229 = vsel %vm218, %v202, -inf
  %v230 = vsel %vm218, %v204, -inf
  %v231 = vsel %vm218, %v206, -inf
  %v232 = vsel %vm218, %v208, -inf
  %v233 = vsel %vm218, %v210, -inf
  %v234 = vsel %vm218, %v212, -inf
  %v235 = vmax.f32 %v165, %v219
  %v236 = vmax.f32 %v166, %v220
  %v237 = vmax.f32 %v167, %v221
  %v238 = vmax.f32 %v168, %v222
  %v239 = vmax.f32 %v169, %v223
  %v240 = vmax.f32 %v170, %v224
  %v241 = vmax.f32 %v171, %v225
  %v242 = vmax.f32 %v172, %v226
  %v243 = vmax.f32 %v173, %v227
  %v244 = vmax.f32 %v174, %v228
  %v245 = vmax.f32 %v175, %v229
  %v246 = vmax.f32 %v176, %v230
  %v247 = vmax.f32 %v177, %v231
  %v248 = vmax.f32 %v178, %v232
  %v249 = vmax.f32 %v179, %v233
  %v250 = vmax.f32 %v180, %v234
  %v251 = vrot.slane %v235, 1
  %v252 = vrot.slane %v236, 1
  %v253 = vrot.slane %v237, 1
  %v254 = vrot.slane %v238, 1
  %v255 = vrot.slane %v239, 1
  %v256 = vrot.slane %v240, 1
  %v257 = vrot.slane %v241, 1
  %v258 = vrot.slane %v242, 1
  %v259 = vrot.slane %v243, 1
  %v260 = vrot.slane %v244, 1
  %v261 = vrot.slane %v245, 1
  %v262 = vrot.slane %v246, 1
  %v263 = vrot.slane %v247, 1
  %v264 = vrot.slane %v248, 1
  %v265 = vrot.slane %v249, 1
  %v266 = vrot.slane %v250, 1
  %vm267 = vcmp.lt.s32.totalorder %v47, 7
  %v268 = vsel %vm267, %v265, %v266
  %v269 = vsel %vm267, %v264, %v265
  %v270 = vsel %vm267, %v263, %v264
  %v271 = vsel %vm267, %v262, %v263
  %v272 = vsel %vm267, %v261, %v262
  %v273 = vsel %vm267, %v260, %v261
  %v274 = vsel %vm267, %v259, %v260
  %v275 = vsel %vm267, %v258, %v259
  %v276 = vsel %vm267, %v257, %v258
  %v277 = vsel %vm267, %v256, %v257
  %v278 = vsel %vm267, %v255, %v256
  %v279 = vsel %vm267, %v254, %v255
  %v280 = vsel %vm267, %v253, %v254
  %v281 = vsel %vm267, %v252, %v253
  %v282 = vsel %vm267, %v251, %v252
  %v283 = vsel %vm267, %v266, %v251
  %v284 = vadd.s32 %v63, 1
  %v285 = vadd.s32 %v64, 1
  %v286 = vadd.s32 %v65, 1
  %v287 = vadd.s32 %v66, 1
  %v288 = vadd.s32 %v67, 1
  %v289 = vadd.s32 %v68, 1
  %v290 = vadd.s32 %v69, 1
  %v291 = vadd.s32 %v70, 1
  %v292 = vadd.s32 %v71, 1
  %v293 = vadd.s32 %v72, 1
  %v294 = vadd.s32 %v73, 1
  %v295 = vadd.s32 %v74, 1
  %v296 = vadd.s32 %v75, 1
  %v297 = vadd.s32 %v76, 1
  %v298 = vadd.s32 %v77, 1
  %v299 = vadd.s32 %v78, 1
  %vm300 = vcmp.ge.s32.totalorder %v284, 0
  %vm301 = vcmp.ge.s32.totalorder %v285, 0
  %vm302 = vcmp.ge.s32.totalorder %v286, 0
  %vm303 = vcmp.ge.s32.totalorder %v287, 0
  %vm304 = vcmp.ge.s32.totalorder %v288, 0
  %vm305 = vcmp.ge.s32.totalorder %v289, 0
  %vm306 = vcmp.ge.s32.totalorder %v290, 0
  %vm307 = vcmp.ge.s32.totalorder %v291, 0
  %vm308 = vcmp.ge.s32.totalorder %v292, 0
  %vm309 = vcmp.ge.s32.totalorder %v293, 0
  %vm310 = vcmp.ge.s32.totalorder %v294, 0
  %vm311 = vcmp.ge.s32.totalorder %v295, 0
  %vm312 = vcmp.ge.s32.totalorder %v296, 0
  %vm313 = vcmp.ge.s32.totalorder %v297, 0
  %vm314 = vcmp.ge.s32.totalorder %v298, 0
  %vm315 = vcmp.ge.s32.totalorder %v299, 0
  %vm316 = vcmp.lt.s32.totalorder %v284, 16
  %vm317 = vcmp.lt.s32.totalorder %v285, 16
  %vm318 = vcmp.lt.s32.totalorder %v286, 16
  %vm319 = vcmp.lt.s32.totalorder %v287, 16
  %vm320 = vcmp.lt.s32.totalorder %v288, 16
  %vm321 = vcmp.lt.s32.totalorder %v289, 16
  %vm322 = vcmp.lt.s32.totalorder %v290, 16
  %vm323 = vcmp.lt.s32.totalorder %v291, 16
  %vm324 = vcmp.lt.s32.totalorder %v292, 16
  %vm325 = vcmp.lt.s32.totalorder %v293, 16
  %vm326 = vcmp.lt.s32.totalorder %v294, 16
  %vm327 = vcmp.lt.s32.totalorder %v295, 16
  %vm328 = vcmp.lt.s32.totalorder %v296, 16
  %vm329 = vcmp.lt.s32.totalorder %v297, 16
  %vm330 = vcmp.lt.s32.totalorder %v298, 16
  %vm331 = vcmp.lt.s32.totalorder %v299, 16
  %vm332 = vmand %vm300, %vm316
  %vm333 = vmand %vm301, %vm317
  %vm334 = vmand %vm302, %vm318
  %vm335 = vmand %vm303, %vm319
  %vm336 = vmand %vm304, %vm320
  %vm337 = vmand %vm305, %vm321
  %vm338 = vmand %vm306, %vm322
  %vm339 = vmand %vm307, %vm323
  %vm340 = vmand %vm308, %vm324
  %vm341 = vmand %vm309, %vm325
  %vm342 = vmand %vm310, %vm326
  %vm343 = vmand %vm311, %vm327
  %vm344 = vmand %vm312, %vm328
  %vm345 = vmand %vm313, %vm329
  %vm346 = vmand %vm314, %vm330
  %vm347 = vmand %vm315, %vm331
  %v348 = vsel %vm332, 1, 0
  %v349 = vsel %vm333, 1, 0
  %v350 = vsel %vm334, 1, 0
  %v351 = vsel %vm335, 1, 0
  %v352 = vsel %vm336, 1, 0
  %v353 = vsel %vm337, 1, 0
  %v354 = vsel %vm338, 1, 0
  %v355 = vsel %vm339, 1, 0
  %v356 = vsel %vm340, 1, 0
  %v357 = vsel %vm341, 1, 0
  %v358 = vsel %vm342, 1, 0
  %v359 = vsel %vm343, 1, 0
  %v360 = vsel %vm344, 1, 0
  %v361 = vsel %vm345, 1, 0
  %v362 = vsel %vm346, 1, 0
  %v363 = vsel %vm347, 1, 0
  %vm364 = vcmp.eq.s32.totalorder %v348, 1
  %vm365 = vcmp.eq.s32.totalorder %v349, 1
  %vm366 = vcmp.eq.s32.totalorder %v350, 1
  %vm367 = vcmp.eq.s32.totalorder %v351, 1
  %vm368 = vcmp.eq.s32.totalorder %v352, 1
  %vm369 = vcmp.eq.s32.totalorder %v353, 1
  %vm370 = vcmp.eq.s32.totalorder %v354, 1
  %vm371 = vcmp.eq.s32.totalorder %v355, 1
  %vm372 = vcmp.eq.s32.totalorder %v356, 1
  %vm373 = vcmp.eq.s32.totalorder %v357, 1
  %vm374 = vcmp.eq.s32.totalorder %v358, 1
  %vm375 = vcmp.eq.s32.totalorder %v359, 1
  %vm376 = vcmp.eq.s32.totalorder %v360, 1
  %vm377 = vcmp.eq.s32.totalorder %v361, 1
  %vm378 = vcmp.eq.s32.totalorder %v362, 1
  %vm379 = vcmp.eq.s32.totalorder %v363, 1
  %v380 = vsel %vm364, %v282, -inf
  %v381 = vsel %vm365, %v281, -inf
  %v382 = vsel %vm366, %v280, -inf
  %v383 = vsel %vm367, %v279, -inf
  %v384 = vsel %vm368, %v278, -inf
  %v385 = vsel %vm369, %v277, -inf
  %v386 = vsel %vm370, %v276, -inf
  %v387 = vsel %vm371, %v275, -inf
  %v388 = vsel %vm372, %v274, -inf
  %v389 = vsel %vm373, %v273, -inf
  %v390 = vsel %vm374, %v272, -inf
  %v391 = vsel %vm375, %v271, -inf
  %v392 = vsel %vm376, %v270, -inf
  %v393 = vsel %vm377, %v269, -inf
  %v394 = vsel %vm378, %v268, -inf
  %v395 = vsel %vm379, %v283, -inf
  %v396 = vmax.f32 %v235, %v380
  %v397 = vmax.f32 %v236, %v381
  %v398 = vmax.f32 %v237, %v382
  %v399 = vmax.f32 %v238, %v383
  %v400 = vmax.f32 %v239, %v384
  %v401 = vmax.f32 %v240, %v385
  %v402 = vmax.f32 %v241, %v386
  %v403 = vmax.f32 %v242, %v387
  %v404 = vmax.f32 %v243, %v388
  %v405 = vmax.f32 %v244, %v389
  %v406 = vmax.f32 %v245, %v390
  %v407 = vmax.f32 %v246, %v391
  %v408 = vmax.f32 %v247, %v392
  %v409 = vmax.f32 %v248, %v393
  %v410 = vmax.f32 %v249, %v394
  %v411 = vmax.f32 %v250, %v395
  %v412 = vrot.slane %v235, 7
  %v413 = vrot.slane %v236, 7
  %v414 = vrot.slane %v237, 7
  %v415 = vrot.slane %v238, 7
  %v416 = vrot.slane %v239, 7
  %v417 = vrot.slane %v240, 7
  %v418 = vrot.slane %v241, 7
  %v419 = vrot.slane %v242, 7
  %v420 = vrot.slane %v243, 7
  %v421 = vrot.slane %v244, 7
  %v422 = vrot.slane %v245, 7
  %v423 = vrot.slane %v246, 7
  %v424 = vrot.slane %v247, 7
  %v425 = vrot.slane %v248, 7
  %v426 = vrot.slane %v249, 7
  %v427 = vrot.slane %v250, 7
  %vm428 = vcmp.lt.s32.totalorder %v47, 1
  %v429 = vsel %vm428, %v426, %v427
  %v430 = vsel %vm428, %v425, %v426
  %v431 = vsel %vm428, %v424, %v425
  %v432 = vsel %vm428, %v423, %v424
  %v433 = vsel %vm428, %v422, %v423
  %v434 = vsel %vm428, %v421, %v422
  %v435 = vsel %vm428, %v420, %v421
  %v436 = vsel %vm428, %v419, %v420
  %v437 = vsel %vm428, %v418, %v419
  %v438 = vsel %vm428, %v417, %v418
  %v439 = vsel %vm428, %v416, %v417
  %v440 = vsel %vm428, %v415, %v416
  %v441 = vsel %vm428, %v414, %v415
  %v442 = vsel %vm428, %v413, %v414
  %v443 = vsel %vm428, %v412, %v413
  %v444 = vsel %vm428, %v427, %v412
  %v445 = vadd.s32 %v63, 4294967295
  %v446 = vadd.s32 %v64, 4294967295
  %v447 = vadd.s32 %v65, 4294967295
  %v448 = vadd.s32 %v66, 4294967295
  %v449 = vadd.s32 %v67, 4294967295
  %v450 = vadd.s32 %v68, 4294967295
  %v451 = vadd.s32 %v69, 4294967295
  %v452 = vadd.s32 %v70, 4294967295
  %v453 = vadd.s32 %v71, 4294967295
  %v454 = vadd.s32 %v72, 4294967295
  %v455 = vadd.s32 %v73, 4294967295
  %v456 = vadd.s32 %v74, 4294967295
  %v457 = vadd.s32 %v75, 4294967295
  %v458 = vadd.s32 %v76, 4294967295
  %v459 = vadd.s32 %v77, 4294967295
  %v460 = vadd.s32 %v78, 4294967295
  %vm461 = vcmp.ge.s32.totalorder %v445, 0
  %vm462 = vcmp.ge.s32.totalorder %v446, 0
  %vm463 = vcmp.ge.s32.totalorder %v447, 0
  %vm464 = vcmp.ge.s32.totalorder %v448, 0
  %vm465 = vcmp.ge.s32.totalorder %v449, 0
  %vm466 = vcmp.ge.s32.totalorder %v450, 0
  %vm467 = vcmp.ge.s32.totalorder %v451, 0
  %vm468 = vcmp.ge.s32.totalorder %v452, 0
  %vm469 = vcmp.ge.s32.totalorder %v453, 0
  %vm470 = vcmp.ge.s32.totalorder %v454, 0
  %vm471 = vcmp.ge.s32.totalorder %v455, 0
  %vm472 = vcmp.ge.s32.totalorder %v456, 0
  %vm473 = vcmp.ge.s32.totalorder %v457, 0
  %vm474 = vcmp.ge.s32.totalorder %v458, 0
  %vm475 = vcmp.ge.s32.totalorder %v459, 0
  %vm476 = vcmp.ge.s32.totalorder %v460, 0
  %vm477 = vcmp.lt.s32.totalorder %v445, 16
  %vm478 = vcmp.lt.s32.totalorder %v446, 16
  %vm479 = vcmp.lt.s32.totalorder %v447, 16
  %vm480 = vcmp.lt.s32.totalorder %v448, 16
  %vm481 = vcmp.lt.s32.totalorder %v449, 16
  %vm482 = vcmp.lt.s32.totalorder %v450, 16
  %vm483 = vcmp.lt.s32.totalorder %v451, 16
  %vm484 = vcmp.lt.s32.totalorder %v452, 16
  %vm485 = vcmp.lt.s32.totalorder %v453, 16
  %vm486 = vcmp.lt.s32.totalorder %v454, 16
  %vm487 = vcmp.lt.s32.totalorder %v455, 16
  %vm488 = vcmp.lt.s32.totalorder %v456, 16
  %vm489 = vcmp.lt.s32.totalorder %v457, 16
  %vm490 = vcmp.lt.s32.totalorder %v458, 16
  %vm491 = vcmp.lt.s32.totalorder %v459, 16
  %vm492 = vcmp.lt.s32.totalorder %v460, 16
  %vm493 = vmand %vm461, %vm477
  %vm494 = vmand %vm462, %vm478
  %vm495 = vmand %vm463, %vm479
  %vm496 = vmand %vm464, %vm480
  %vm497 = vmand %vm465, %vm481
  %vm498 = vmand %vm466, %vm482
  %vm499 = vmand %vm467, %vm483
  %vm500 = vmand %vm468, %vm484
  %vm501 = vmand %vm469, %vm485
  %vm502 = vmand %vm470, %vm486
  %vm503 = vmand %vm471, %vm487
  %vm504 = vmand %vm472, %vm488
  %vm505 = vmand %vm473, %vm489
  %vm506 = vmand %vm474, %vm490
  %vm507 = vmand %vm475, %vm491
  %vm508 = vmand %vm476, %vm492
  %v509 = vsel %vm493, 1, 0
  %v510 = vsel %vm494, 1, 0
  %v511 = vsel %vm495, 1, 0
  %v512 = vsel %vm496, 1, 0
  %v513 = vsel %vm497, 1, 0
  %v514 = vsel %vm498, 1, 0
  %v515 = vsel %vm499, 1, 0
  %v516 = vsel %vm500, 1, 0
  %v517 = vsel %vm501, 1, 0
  %v518 = vsel %vm502, 1, 0
  %v519 = vsel %vm503, 1, 0
  %v520 = vsel %vm504, 1, 0
  %v521 = vsel %vm505, 1, 0
  %v522 = vsel %vm506, 1, 0
  %v523 = vsel %vm507, 1, 0
  %v524 = vsel %vm508, 1, 0
  %vm525 = vcmp.eq.s32.totalorder %v509, 1
  %vm526 = vcmp.eq.s32.totalorder %v510, 1
  %vm527 = vcmp.eq.s32.totalorder %v511, 1
  %vm528 = vcmp.eq.s32.totalorder %v512, 1
  %vm529 = vcmp.eq.s32.totalorder %v513, 1
  %vm530 = vcmp.eq.s32.totalorder %v514, 1
  %vm531 = vcmp.eq.s32.totalorder %v515, 1
  %vm532 = vcmp.eq.s32.totalorder %v516, 1
  %vm533 = vcmp.eq.s32.totalorder %v517, 1
  %vm534 = vcmp.eq.s32.totalorder %v518, 1
  %vm535 = vcmp.eq.s32.totalorder %v519, 1
  %vm536 = vcmp.eq.s32.totalorder %v520, 1
  %vm537 = vcmp.eq.s32.totalorder %v521, 1
  %vm538 = vcmp.eq.s32.totalorder %v522, 1
  %vm539 = vcmp.eq.s32.totalorder %v523, 1
  %vm540 = vcmp.eq.s32.totalorder %v524, 1
  %v541 = vsel %vm525, %v444, -inf
  %v542 = vsel %vm526, %v443, -inf
  %v543 = vsel %vm527, %v442, -inf
  %v544 = vsel %vm528, %v441, -inf
  %v545 = vsel %vm529, %v440, -inf
  %v546 = vsel %vm530, %v439, -inf
  %v547 = vsel %vm531, %v438, -inf
  %v548 = vsel %vm532, %v437, -inf
  %v549 = vsel %vm533, %v436, -inf
  %v550 = vsel %vm534, %v435, -inf
  %v551 = vsel %vm535, %v434, -inf
  %v552 = vsel %vm536, %v433, -inf
  %v553 = vsel %vm537, %v432, -inf
  %v554 = vsel %vm538, %v431, -inf
  %v555 = vsel %vm539, %v430, -inf
  %v556 = vsel %vm540, %v429, -inf
  %v557 = vmax.f32 %v396, %v541
  %v558 = vmax.f32 %v397, %v542
  %v559 = vmax.f32 %v398, %v543
  %v560 = vmax.f32 %v399, %v544
  %v561 = vmax.f32 %v400, %v545
  %v562 = vmax.f32 %v401, %v546
  %v563 = vmax.f32 %v402, %v547
  %v564 = vmax.f32 %v403, %v548
  %v565 = vmax.f32 %v404, %v549
  %v566 = vmax.f32 %v405, %v550
  %v567 = vmax.f32 %v406, %v551
  %v568 = vmax.f32 %v407, %v552
  %v569 = vmax.f32 %v408, %v553
  %v570 = vmax.f32 %v409, %v554
  %v571 = vmax.f32 %v410, %v555
  %v572 = vmax.f32 %v411, %v556
  %v573 = vsub.f32 %v557, %v79
  %v574 = vsub.f32 %v558, %v80
  %v575 = vsub.f32 %v559, %v81
  %v576 = vsub.f32 %v560, %v82
  %v577 = vsub.f32 %v561, %v83
  %v578 = vsub.f32 %v562, %v84
  %v579 = vsub.f32 %v563, %v85
  %v580 = vsub.f32 %v564, %v86
  %v581 = vsub.f32 %v565, %v87
  %v582 = vsub.f32 %v566, %v88
  %v583 = vsub.f32 %v567, %v89
  %v584 = vsub.f32 %v568, %v90
  %v585 = vsub.f32 %v569, %v91
  %v586 = vsub.f32 %v570, %v92
  %v587 = vsub.f32 %v571, %v93
  %v588 = vsub.f32 %v572, %v94
  %589 = vrot.lane.b32.xlu0 %v95, 127
  %v590 = vpop.permute.xlu0 %589
  %591 = vrot.lane.b32.xlu0 %v96, 127
  %v592 = vpop.permute.xlu0 %591
  %593 = vrot.lane.b32.xlu0 %v97, 127
  %v594 = vpop.permute.xlu0 %593
  %595 = vrot.lane.b32.xlu0 %v98, 127
  %v596 = vpop.permute.xlu0 %595
  %597 = vrot.lane.b32.xlu0 %v99, 127
  %v598 = vpop.permute.xlu0 %597
  %599 = vrot.lane.b32.xlu0 %v100, 127
  %v600 = vpop.permute.xlu0 %599
  %601 = vrot.lane.b32.xlu0 %v101, 127
  %v602 = vpop.permute.xlu0 %601
  %603 = vrot.lane.b32.xlu0 %v102, 127
  %v604 = vpop.permute.xlu0 %603
  %605 = vrot.lane.b32.xlu0 %v103, 127
  %v606 = vpop.permute.xlu0 %605
  %607 = vrot.lane.b32.xlu0 %v104, 127
  %v608 = vpop.permute.xlu0 %607
  %609 = vrot.lane.b32.xlu0 %v105, 127
  %v610 = vpop.permute.xlu0 %609
  %611 = vrot.lane.b32.xlu0 %v106, 127
  %v612 = vpop.permute.xlu0 %611
  %613 = vrot.lane.b32.xlu0 %v107, 127
  %v614 = vpop.permute.xlu0 %613
  %615 = vrot.lane.b32.xlu0 %v108, 127
  %v616 = vpop.permute.xlu0 %615
  %617 = vrot.lane.b32.xlu0 %v109, 127
  %v618 = vpop.permute.xlu0 %617
  %619 = vrot.lane.b32.xlu0 %v110, 127
  %v620 = vpop.permute.xlu0 %619
  %v621 = vsel %vm148, %v590, -inf
  %v622 = vsel %vm148, %v592, -inf
  %v623 = vsel %vm148, %v594, -inf
  %v624 = vsel %vm148, %v596, -inf
  %v625 = vsel %vm148, %v598, -inf
  %v626 = vsel %vm148, %v600, -inf
  %v627 = vsel %vm148, %v602, -inf
  %v628 = vsel %vm148, %v604, -inf
  %v629 = vsel %vm148, %v606, -inf
  %v630 = vsel %vm148, %v608, -inf
  %v631 = vsel %vm148, %v610, -inf
  %v632 = vsel %vm148, %v612, -inf
  %v633 = vsel %vm148, %v614, -inf
  %v634 = vsel %vm148, %v616, -inf
  %v635 = vsel %vm148, %v618, -inf
  %v636 = vsel %vm148, %v620, -inf
  %v637 = vmax.f32 %v95, %v621
  %v638 = vmax.f32 %v96, %v622
  %v639 = vmax.f32 %v97, %v623
  %v640 = vmax.f32 %v98, %v624
  %v641 = vmax.f32 %v99, %v625
  %v642 = vmax.f32 %v100, %v626
  %v643 = vmax.f32 %v101, %v627
  %v644 = vmax.f32 %v102, %v628
  %v645 = vmax.f32 %v103, %v629
  %v646 = vmax.f32 %v104, %v630
  %v647 = vmax.f32 %v105, %v631
  %v648 = vmax.f32 %v106, %v632
  %v649 = vmax.f32 %v107, %v633
  %v650 = vmax.f32 %v108, %v634
  %v651 = vmax.f32 %v109, %v635
  %v652 = vmax.f32 %v110, %v636
  %653 = vrot.lane.b32.xlu0 %v95, 1
  %v654 = vpop.permute.xlu0 %653
  %655 = vrot.lane.b32.xlu0 %v96, 1
  %v656 = vpop.permute.xlu0 %655
  %657 = vrot.lane.b32.xlu0 %v97, 1
  %v658 = vpop.permute.xlu0 %657
  %659 = vrot.lane.b32.xlu0 %v98, 1
  %v660 = vpop.permute.xlu0 %659
  %661 = vrot.lane.b32.xlu0 %v99, 1
  %v662 = vpop.permute.xlu0 %661
  %663 = vrot.lane.b32.xlu0 %v100, 1
  %v664 = vpop.permute.xlu0 %663
  %665 = vrot.lane.b32.xlu0 %v101, 1
  %v666 = vpop.permute.xlu0 %665
  %667 = vrot.lane.b32.xlu0 %v102, 1
  %v668 = vpop.permute.xlu0 %667
  %669 = vrot.lane.b32.xlu0 %v103, 1
  %v670 = vpop.permute.xlu0 %669
  %671 = vrot.lane.b32.xlu0 %v104, 1
  %v672 = vpop.permute.xlu0 %671
  %673 = vrot.lane.b32.xlu0 %v105, 1
  %v674 = vpop.permute.xlu0 %673
  %675 = vrot.lane.b32.xlu0 %v106, 1
  %v676 = vpop.permute.xlu0 %675
  %677 = vrot.lane.b32.xlu0 %v107, 1
  %v678 = vpop.permute.xlu0 %677
  %679 = vrot.lane.b32.xlu0 %v108, 1
  %v680 = vpop.permute.xlu0 %679
  %681 = vrot.lane.b32.xlu0 %v109, 1
  %v682 = vpop.permute.xlu0 %681
  %683 = vrot.lane.b32.xlu0 %v110, 1
  %v684 = vpop.permute.xlu0 %683
  %v685 = vsel %vm218, %v654, -inf
  %v686 = vsel %vm218, %v656, -inf
  %v687 = vsel %vm218, %v658, -inf
  %v688 = vsel %vm218, %v660, -inf
  %v689 = vsel %vm218, %v662, -inf
  %v690 = vsel %vm218, %v664, -inf
  %v691 = vsel %vm218, %v666, -inf
  %v692 = vsel %vm218, %v668, -inf
  %v693 = vsel %vm218, %v670, -inf
  %v694 = vsel %vm218, %v672, -inf
  %v695 = vsel %vm218, %v674, -inf
  %v696 = vsel %vm218, %v676, -inf
  %v697 = vsel %vm218, %v678, -inf
  %v698 = vsel %vm218, %v680, -inf
  %v699 = vsel %vm218, %v682, -inf
  %v700 = vsel %vm218, %v684, -inf
  %v701 = vmax.f32 %v637, %v685
  %v702 = vmax.f32 %v638, %v686
  %v703 = vmax.f32 %v639, %v687
  %v704 = vmax.f32 %v640, %v688
  %v705 = vmax.f32 %v641, %v689
  %v706 = vmax.f32 %v642, %v690
  %v707 = vmax.f32 %v643, %v691
  %v708 = vmax.f32 %v644, %v692
  %v709 = vmax.f32 %v645, %v693
  %v710 = vmax.f32 %v646, %v694
  %v711 = vmax.f32 %v647, %v695
  %v712 = vmax.f32 %v648, %v696
  %v713 = vmax.f32 %v649, %v697
  %v714 = vmax.f32 %v650, %v698
  %v715 = vmax.f32 %v651, %v699
  %v716 = vmax.f32 %v652, %v700
  %v717 = vrot.slane %v701, 1
  %v718 = vrot.slane %v702, 1
  %v719 = vrot.slane %v703, 1
  %v720 = vrot.slane %v704, 1
  %v721 = vrot.slane %v705, 1
  %v722 = vrot.slane %v706, 1
  %v723 = vrot.slane %v707, 1
  %v724 = vrot.slane %v708, 1
  %v725 = vrot.slane %v709, 1
  %v726 = vrot.slane %v710, 1
  %v727 = vrot.slane %v711, 1
  %v728 = vrot.slane %v712, 1
  %v729 = vrot.slane %v713, 1
  %v730 = vrot.slane %v714, 1
  %v731 = vrot.slane %v715, 1
  %v732 = vrot.slane %v716, 1
  %v733 = vsel %vm267, %v731, %v732
  %v734 = vsel %vm267, %v730, %v731
  %v735 = vsel %vm267, %v729, %v730
  %v736 = vsel %vm267, %v728, %v729
  %v737 = vsel %vm267, %v727, %v728
  %v738 = vsel %vm267, %v726, %v727
  %v739 = vsel %vm267, %v725, %v726
  %v740 = vsel %vm267, %v724, %v725
  %v741 = vsel %vm267, %v723, %v724
  %v742 = vsel %vm267, %v722, %v723
  %v743 = vsel %vm267, %v721, %v722
  %v744 = vsel %vm267, %v720, %v721
  %v745 = vsel %vm267, %v719, %v720
  %v746 = vsel %vm267, %v718, %v719
  %v747 = vsel %vm267, %v717, %v718
  %v748 = vsel %vm267, %v732, %v717
  %v749 = vsel %vm364, %v747, -inf
  %v750 = vsel %vm365, %v746, -inf
  %v751 = vsel %vm366, %v745, -inf
  %v752 = vsel %vm367, %v744, -inf
  %v753 = vsel %vm368, %v743, -inf
  %v754 = vsel %vm369, %v742, -inf
  %v755 = vsel %vm370, %v741, -inf
  %v756 = vsel %vm371, %v740, -inf
  %v757 = vsel %vm372, %v739, -inf
  %v758 = vsel %vm373, %v738, -inf
  %v759 = vsel %vm374, %v737, -inf
  %v760 = vsel %vm375, %v736, -inf
  %v761 = vsel %vm376, %v735, -inf
  %v762 = vsel %vm377, %v734, -inf
  %v763 = vsel %vm378, %v733, -inf
  %v764 = vsel %vm379, %v748, -inf
  %v765 = vmax.f32 %v701, %v749
  %v766 = vmax.f32 %v702, %v750
  %v767 = vmax.f32 %v703, %v751
  %v768 = vmax.f32 %v704, %v752
  %v769 = vmax.f32 %v705, %v753
  %v770 = vmax.f32 %v706, %v754
  %v771 = vmax.f32 %v707, %v755
  %v772 = vmax.f32 %v708, %v756
  %v773 = vmax.f32 %v709, %v757
  %v774 = vmax.f32 %v710, %v758
  %v775 = vmax.f32 %v711, %v759
  %v776 = vmax.f32 %v712, %v760
  %v777 = vmax.f32 %v713, %v761
  %v778 = vmax.f32 %v714, %v762
  %v779 = vmax.f32 %v715, %v763
  %v780 = vmax.f32 %v716, %v764
  %v781 = vrot.slane %v701, 7
  %v782 = vrot.slane %v702, 7
  %v783 = vrot.slane %v703, 7
  %v784 = vrot.slane %v704, 7
  %v785 = vrot.slane %v705, 7
  %v786 = vrot.slane %v706, 7
  %v787 = vrot.slane %v707, 7
  %v788 = vrot.slane %v708, 7
  %v789 = vrot.slane %v709, 7
  %v790 = vrot.slane %v710, 7
  %v791 = vrot.slane %v711, 7
  %v792 = vrot.slane %v712, 7
  %v793 = vrot.slane %v713, 7
  %v794 = vrot.slane %v714, 7
  %v795 = vrot.slane %v715, 7
  %v796 = vrot.slane %v716, 7
  %v797 = vsel %vm428, %v795, %v796
  %v798 = vsel %vm428, %v794, %v795
  %v799 = vsel %vm428, %v793, %v794
  %v800 = vsel %vm428, %v792, %v793
  %v801 = vsel %vm428, %v791, %v792
  %v802 = vsel %vm428, %v790, %v791
  %v803 = vsel %vm428, %v789, %v790
  %v804 = vsel %vm428, %v788, %v789
  %v805 = vsel %vm428, %v787, %v788
  %v806 = vsel %vm428, %v786, %v787
  %v807 = vsel %vm428, %v785, %v786
  %v808 = vsel %vm428, %v784, %v785
  %v809 = vsel %vm428, %v783, %v784
  %v810 = vsel %vm428, %v782, %v783
  %v811 = vsel %vm428, %v781, %v782
  %v812 = vsel %vm428, %v796, %v781
  %v813 = vsel %vm525, %v812, -inf
  %v814 = vsel %vm526, %v811, -inf
  %v815 = vsel %vm527, %v810, -inf
  %v816 = vsel %vm528, %v809, -inf
  %v817 = vsel %vm529, %v808, -inf
  %v818 = vsel %vm530, %v807, -inf
  %v819 = vsel %vm531, %v806, -inf
  %v820 = vsel %vm532, %v805, -inf
  %v821 = vsel %vm533, %v804, -inf
  %v822 = vsel %vm534, %v803, -inf
  %v823 = vsel %vm535, %v802, -inf
  %v824 = vsel %vm536, %v801, -inf
  %v825 = vsel %vm537, %v800, -inf
  %v826 = vsel %vm538, %v799, -inf
  %v827 = vsel %vm539, %v798, -inf
  %v828 = vsel %vm540, %v797, -inf
  %v829 = vmax.f32 %v765, %v813
  %v830 = vmax.f32 %v766, %v814
  %v831 = vmax.f32 %v767, %v815
  %v832 = vmax.f32 %v768, %v816
  %v833 = vmax.f32 %v769, %v817
  %v834 = vmax.f32 %v770, %v818
  %v835 = vmax.f32 %v771, %v819
  %v836 = vmax.f32 %v772, %v820
  %v837 = vmax.f32 %v773, %v821
  %v838 = vmax.f32 %v774, %v822
  %v839 = vmax.f32 %v775, %v823
  %v840 = vmax.f32 %v776, %v824
  %v841 = vmax.f32 %v777, %v825
  %v842 = vmax.f32 %v778, %v826
  %v843 = vmax.f32 %v779, %v827
  %v844 = vmax.f32 %v780, %v828
  %v845 = vsub.f32 %v829, %v95
  %v846 = vsub.f32 %v830, %v96
  %v847 = vsub.f32 %v831, %v97
  %v848 = vsub.f32 %v832, %v98
  %v849 = vsub.f32 %v833, %v99
  %v850 = vsub.f32 %v834, %v100
  %v851 = vsub.f32 %v835, %v101
  %v852 = vsub.f32 %v836, %v102
  %v853 = vsub.f32 %v837, %v103
  %v854 = vsub.f32 %v838, %v104
  %v855 = vsub.f32 %v839, %v105
  %v856 = vsub.f32 %v840, %v106
  %v857 = vsub.f32 %v841, %v107
  %v858 = vsub.f32 %v842, %v108
  %v859 = vsub.f32 %v843, %v109
  %v860 = vsub.f32 %v844, %v110
  %861 = vrot.lane.b32.xlu0 %v573, 127
  %v862 = vpop.permute.xlu0 %861
  %863 = vrot.lane.b32.xlu0 %v574, 127
  %v864 = vpop.permute.xlu0 %863
  %865 = vrot.lane.b32.xlu0 %v575, 127
  %v866 = vpop.permute.xlu0 %865
  %867 = vrot.lane.b32.xlu0 %v576, 127
  %v868 = vpop.permute.xlu0 %867
  %869 = vrot.lane.b32.xlu0 %v577, 127
  %v870 = vpop.permute.xlu0 %869
  %871 = vrot.lane.b32.xlu0 %v578, 127
  %v872 = vpop.permute.xlu0 %871
  %873 = vrot.lane.b32.xlu0 %v579, 127
  %v874 = vpop.permute.xlu0 %873
  %875 = vrot.lane.b32.xlu0 %v580, 127
  %v876 = vpop.permute.xlu0 %875
  %877 = vrot.lane.b32.xlu0 %v581, 127
  %v878 = vpop.permute.xlu0 %877
  %879 = vrot.lane.b32.xlu0 %v582, 127
  %v880 = vpop.permute.xlu0 %879
  %881 = vrot.lane.b32.xlu0 %v583, 127
  %v882 = vpop.permute.xlu0 %881
  %883 = vrot.lane.b32.xlu0 %v584, 127
  %v884 = vpop.permute.xlu0 %883
  %885 = vrot.lane.b32.xlu0 %v585, 127
  %v886 = vpop.permute.xlu0 %885
  %887 = vrot.lane.b32.xlu0 %v586, 127
  %v888 = vpop.permute.xlu0 %887
  %889 = vrot.lane.b32.xlu0 %v587, 127
  %v890 = vpop.permute.xlu0 %889
  %891 = vrot.lane.b32.xlu0 %v588, 127
  %v892 = vpop.permute.xlu0 %891
  %v893 = vsel %vm148, %v862, -inf
  %v894 = vsel %vm148, %v864, -inf
  %v895 = vsel %vm148, %v866, -inf
  %v896 = vsel %vm148, %v868, -inf
  %v897 = vsel %vm148, %v870, -inf
  %v898 = vsel %vm148, %v872, -inf
  %v899 = vsel %vm148, %v874, -inf
  %v900 = vsel %vm148, %v876, -inf
  %v901 = vsel %vm148, %v878, -inf
  %v902 = vsel %vm148, %v880, -inf
  %v903 = vsel %vm148, %v882, -inf
  %v904 = vsel %vm148, %v884, -inf
  %v905 = vsel %vm148, %v886, -inf
  %v906 = vsel %vm148, %v888, -inf
  %v907 = vsel %vm148, %v890, -inf
  %v908 = vsel %vm148, %v892, -inf
  %v909 = vmax.f32 %v573, %v893
  %v910 = vmax.f32 %v574, %v894
  %v911 = vmax.f32 %v575, %v895
  %v912 = vmax.f32 %v576, %v896
  %v913 = vmax.f32 %v577, %v897
  %v914 = vmax.f32 %v578, %v898
  %v915 = vmax.f32 %v579, %v899
  %v916 = vmax.f32 %v580, %v900
  %v917 = vmax.f32 %v581, %v901
  %v918 = vmax.f32 %v582, %v902
  %v919 = vmax.f32 %v583, %v903
  %v920 = vmax.f32 %v584, %v904
  %v921 = vmax.f32 %v585, %v905
  %v922 = vmax.f32 %v586, %v906
  %v923 = vmax.f32 %v587, %v907
  %v924 = vmax.f32 %v588, %v908
  %925 = vrot.lane.b32.xlu0 %v573, 1
  %v926 = vpop.permute.xlu0 %925
  %927 = vrot.lane.b32.xlu0 %v574, 1
  %v928 = vpop.permute.xlu0 %927
  %929 = vrot.lane.b32.xlu0 %v575, 1
  %v930 = vpop.permute.xlu0 %929
  %931 = vrot.lane.b32.xlu0 %v576, 1
  %v932 = vpop.permute.xlu0 %931
  %933 = vrot.lane.b32.xlu0 %v577, 1
  %v934 = vpop.permute.xlu0 %933
  %935 = vrot.lane.b32.xlu0 %v578, 1
  %v936 = vpop.permute.xlu0 %935
  %937 = vrot.lane.b32.xlu0 %v579, 1
  %v938 = vpop.permute.xlu0 %937
  %939 = vrot.lane.b32.xlu0 %v580, 1
  %v940 = vpop.permute.xlu0 %939
  %941 = vrot.lane.b32.xlu0 %v581, 1
  %v942 = vpop.permute.xlu0 %941
  %943 = vrot.lane.b32.xlu0 %v582, 1
  %v944 = vpop.permute.xlu0 %943
  %945 = vrot.lane.b32.xlu0 %v583, 1
  %v946 = vpop.permute.xlu0 %945
  %947 = vrot.lane.b32.xlu0 %v584, 1
  %v948 = vpop.permute.xlu0 %947
  %949 = vrot.lane.b32.xlu0 %v585, 1
  %v950 = vpop.permute.xlu0 %949
  %951 = vrot.lane.b32.xlu0 %v586, 1
  %v952 = vpop.permute.xlu0 %951
  %953 = vrot.lane.b32.xlu0 %v587, 1
  %v954 = vpop.permute.xlu0 %953
  %955 = vrot.lane.b32.xlu0 %v588, 1
  %v956 = vpop.permute.xlu0 %955
  %v957 = vsel %vm218, %v926, -inf
  %v958 = vsel %vm218, %v928, -inf
  %v959 = vsel %vm218, %v930, -inf
  %v960 = vsel %vm218, %v932, -inf
  %v961 = vsel %vm218, %v934, -inf
  %v962 = vsel %vm218, %v936, -inf
  %v963 = vsel %vm218, %v938, -inf
  %v964 = vsel %vm218, %v940, -inf
  %v965 = vsel %vm218, %v942, -inf
  %v966 = vsel %vm218, %v944, -inf
  %v967 = vsel %vm218, %v946, -inf
  %v968 = vsel %vm218, %v948, -inf
  %v969 = vsel %vm218, %v950, -inf
  %v970 = vsel %vm218, %v952, -inf
  %v971 = vsel %vm218, %v954, -inf
  %v972 = vsel %vm218, %v956, -inf
  %v973 = vmax.f32 %v909, %v957
  %v974 = vmax.f32 %v910, %v958
  %v975 = vmax.f32 %v911, %v959
  %v976 = vmax.f32 %v912, %v960
  %v977 = vmax.f32 %v913, %v961
  %v978 = vmax.f32 %v914, %v962
  %v979 = vmax.f32 %v915, %v963
  %v980 = vmax.f32 %v916, %v964
  %v981 = vmax.f32 %v917, %v965
  %v982 = vmax.f32 %v918, %v966
  %v983 = vmax.f32 %v919, %v967
  %v984 = vmax.f32 %v920, %v968
  %v985 = vmax.f32 %v921, %v969
  %v986 = vmax.f32 %v922, %v970
  %v987 = vmax.f32 %v923, %v971
  %v988 = vmax.f32 %v924, %v972
  %989 = vrot.lane.b32.xlu0 %v573, 126
  %v990 = vpop.permute.xlu0 %989
  %991 = vrot.lane.b32.xlu0 %v574, 126
  %v992 = vpop.permute.xlu0 %991
  %993 = vrot.lane.b32.xlu0 %v575, 126
  %v994 = vpop.permute.xlu0 %993
  %995 = vrot.lane.b32.xlu0 %v576, 126
  %v996 = vpop.permute.xlu0 %995
  %997 = vrot.lane.b32.xlu0 %v577, 126
  %v998 = vpop.permute.xlu0 %997
  %999 = vrot.lane.b32.xlu0 %v578, 126
  %v1000 = vpop.permute.xlu0 %999
  %1001 = vrot.lane.b32.xlu0 %v579, 126
  %v1002 = vpop.permute.xlu0 %1001
  %1003 = vrot.lane.b32.xlu0 %v580, 126
  %v1004 = vpop.permute.xlu0 %1003
  %1005 = vrot.lane.b32.xlu0 %v581, 126
  %v1006 = vpop.permute.xlu0 %1005
  %1007 = vrot.lane.b32.xlu0 %v582, 126
  %v1008 = vpop.permute.xlu0 %1007
  %1009 = vrot.lane.b32.xlu0 %v583, 126
  %v1010 = vpop.permute.xlu0 %1009
  %1011 = vrot.lane.b32.xlu0 %v584, 126
  %v1012 = vpop.permute.xlu0 %1011
  %1013 = vrot.lane.b32.xlu0 %v585, 126
  %v1014 = vpop.permute.xlu0 %1013
  %1015 = vrot.lane.b32.xlu0 %v586, 126
  %v1016 = vpop.permute.xlu0 %1015
  %1017 = vrot.lane.b32.xlu0 %v587, 126
  %v1018 = vpop.permute.xlu0 %1017
  %1019 = vrot.lane.b32.xlu0 %v588, 126
  %v1020 = vpop.permute.xlu0 %1019
  %v1021 = vadd.s32 %v45, 2
  %vm1022 = vcmp.ge.s32.totalorder %v1021, 0
  %vm1023 = vcmp.lt.s32.totalorder %v1021, 16
  %vm1024 = vmand %vm1022, %vm1023
  %v1025 = vsel %vm1024, 1, 0
  %vm1026 = vcmp.eq.s32.totalorder %v1025, 1
  %v1027 = vsel %vm1026, %v990, -inf
  %v1028 = vsel %vm1026, %v992, -inf
  %v1029 = vsel %vm1026, %v994, -inf
  %v1030 = vsel %vm1026, %v996, -inf
  %v1031 = vsel %vm1026, %v998, -inf
  %v1032 = vsel %vm1026, %v1000, -inf
  %v1033 = vsel %vm1026, %v1002, -inf
  %v1034 = vsel %vm1026, %v1004, -inf
  %v1035 = vsel %vm1026, %v1006, -inf
  %v1036 = vsel %vm1026, %v1008, -inf
  %v1037 = vsel %vm1026, %v1010, -inf
  %v1038 = vsel %vm1026, %v1012, -inf
  %v1039 = vsel %vm1026, %v1014, -inf
  %v1040 = vsel %vm1026, %v1016, -inf
  %v1041 = vsel %vm1026, %v1018, -inf
  %v1042 = vsel %vm1026, %v1020, -inf
  %v1043 = vmax.f32 %v973, %v1027
  %v1044 = vmax.f32 %v974, %v1028
  %v1045 = vmax.f32 %v975, %v1029
  %v1046 = vmax.f32 %v976, %v1030
  %v1047 = vmax.f32 %v977, %v1031
  %v1048 = vmax.f32 %v978, %v1032
  %v1049 = vmax.f32 %v979, %v1033
  %v1050 = vmax.f32 %v980, %v1034
  %v1051 = vmax.f32 %v981, %v1035
  %v1052 = vmax.f32 %v982, %v1036
  %v1053 = vmax.f32 %v983, %v1037
  %v1054 = vmax.f32 %v984, %v1038
  %v1055 = vmax.f32 %v985, %v1039
  %v1056 = vmax.f32 %v986, %v1040
  %v1057 = vmax.f32 %v987, %v1041
  %v1058 = vmax.f32 %v988, %v1042
  %1059 = vrot.lane.b32.xlu0 %v573, 2
  %v1060 = vpop.permute.xlu0 %1059
  %1061 = vrot.lane.b32.xlu0 %v574, 2
  %v1062 = vpop.permute.xlu0 %1061
  %1063 = vrot.lane.b32.xlu0 %v575, 2
  %v1064 = vpop.permute.xlu0 %1063
  %1065 = vrot.lane.b32.xlu0 %v576, 2
  %v1066 = vpop.permute.xlu0 %1065
  %1067 = vrot.lane.b32.xlu0 %v577, 2
  %v1068 = vpop.permute.xlu0 %1067
  %1069 = vrot.lane.b32.xlu0 %v578, 2
  %v1070 = vpop.permute.xlu0 %1069
  %1071 = vrot.lane.b32.xlu0 %v579, 2
  %v1072 = vpop.permute.xlu0 %1071
  %1073 = vrot.lane.b32.xlu0 %v580, 2
  %v1074 = vpop.permute.xlu0 %1073
  %1075 = vrot.lane.b32.xlu0 %v581, 2
  %v1076 = vpop.permute.xlu0 %1075
  %1077 = vrot.lane.b32.xlu0 %v582, 2
  %v1078 = vpop.permute.xlu0 %1077
  %1079 = vrot.lane.b32.xlu0 %v583, 2
  %v1080 = vpop.permute.xlu0 %1079
  %1081 = vrot.lane.b32.xlu0 %v584, 2
  %v1082 = vpop.permute.xlu0 %1081
  %1083 = vrot.lane.b32.xlu0 %v585, 2
  %v1084 = vpop.permute.xlu0 %1083
  %1085 = vrot.lane.b32.xlu0 %v586, 2
  %v1086 = vpop.permute.xlu0 %1085
  %1087 = vrot.lane.b32.xlu0 %v587, 2
  %v1088 = vpop.permute.xlu0 %1087
  %1089 = vrot.lane.b32.xlu0 %v588, 2
  %v1090 = vpop.permute.xlu0 %1089
  %v1091 = vadd.s32 %v45, 4294967294
  %vm1092 = vcmp.ge.s32.totalorder %v1091, 0
  %vm1093 = vcmp.lt.s32.totalorder %v1091, 16
  %vm1094 = vmand %vm1092, %vm1093
  %v1095 = vsel %vm1094, 1, 0
  %vm1096 = vcmp.eq.s32.totalorder %v1095, 1
  %v1097 = vsel %vm1096, %v1060, -inf
  %v1098 = vsel %vm1096, %v1062, -inf
  %v1099 = vsel %vm1096, %v1064, -inf
  %v1100 = vsel %vm1096, %v1066, -inf
  %v1101 = vsel %vm1096, %v1068, -inf
  %v1102 = vsel %vm1096, %v1070, -inf
  %v1103 = vsel %vm1096, %v1072, -inf
  %v1104 = vsel %vm1096, %v1074, -inf
  %v1105 = vsel %vm1096, %v1076, -inf
  %v1106 = vsel %vm1096, %v1078, -inf
  %v1107 = vsel %vm1096, %v1080, -inf
  %v1108 = vsel %vm1096, %v1082, -inf
  %v1109 = vsel %vm1096, %v1084, -inf
  %v1110 = vsel %vm1096, %v1086, -inf
  %v1111 = vsel %vm1096, %v1088, -inf
  %v1112 = vsel %vm1096, %v1090, -inf
  %v1113 = vmax.f32 %v1043, %v1097
  %v1114 = vmax.f32 %v1044, %v1098
  %v1115 = vmax.f32 %v1045, %v1099
  %v1116 = vmax.f32 %v1046, %v1100
  %v1117 = vmax.f32 %v1047, %v1101
  %v1118 = vmax.f32 %v1048, %v1102
  %v1119 = vmax.f32 %v1049, %v1103
  %v1120 = vmax.f32 %v1050, %v1104
  %v1121 = vmax.f32 %v1051, %v1105
  %v1122 = vmax.f32 %v1052, %v1106
  %v1123 = vmax.f32 %v1053, %v1107
  %v1124 = vmax.f32 %v1054, %v1108
  %v1125 = vmax.f32 %v1055, %v1109
  %v1126 = vmax.f32 %v1056, %v1110
  %v1127 = vmax.f32 %v1057, %v1111
  %v1128 = vmax.f32 %v1058, %v1112
  %v1129 = vrot.slane %v1113, 1
  %v1130 = vrot.slane %v1114, 1
  %v1131 = vrot.slane %v1115, 1
  %v1132 = vrot.slane %v1116, 1
  %v1133 = vrot.slane %v1117, 1
  %v1134 = vrot.slane %v1118, 1
  %v1135 = vrot.slane %v1119, 1
  %v1136 = vrot.slane %v1120, 1
  %v1137 = vrot.slane %v1121, 1
  %v1138 = vrot.slane %v1122, 1
  %v1139 = vrot.slane %v1123, 1
  %v1140 = vrot.slane %v1124, 1
  %v1141 = vrot.slane %v1125, 1
  %v1142 = vrot.slane %v1126, 1
  %v1143 = vrot.slane %v1127, 1
  %v1144 = vrot.slane %v1128, 1
  %v1145 = vsel %vm267, %v1143, %v1144
  %v1146 = vsel %vm267, %v1142, %v1143
  %v1147 = vsel %vm267, %v1141, %v1142
  %v1148 = vsel %vm267, %v1140, %v1141
  %v1149 = vsel %vm267, %v1139, %v1140
  %v1150 = vsel %vm267, %v1138, %v1139
  %v1151 = vsel %vm267, %v1137, %v1138
  %v1152 = vsel %vm267, %v1136, %v1137
  %v1153 = vsel %vm267, %v1135, %v1136
  %v1154 = vsel %vm267, %v1134, %v1135
  %v1155 = vsel %vm267, %v1133, %v1134
  %v1156 = vsel %vm267, %v1132, %v1133
  %v1157 = vsel %vm267, %v1131, %v1132
  %v1158 = vsel %vm267, %v1130, %v1131
  %v1159 = vsel %vm267, %v1129, %v1130
  %v1160 = vsel %vm267, %v1144, %v1129
  %v1161 = vsel %vm364, %v1159, -inf
  %v1162 = vsel %vm365, %v1158, -inf
  %v1163 = vsel %vm366, %v1157, -inf
  %v1164 = vsel %vm367, %v1156, -inf
  %v1165 = vsel %vm368, %v1155, -inf
  %v1166 = vsel %vm369, %v1154, -inf
  %v1167 = vsel %vm370, %v1153, -inf
  %v1168 = vsel %vm371, %v1152, -inf
  %v1169 = vsel %vm372, %v1151, -inf
  %v1170 = vsel %vm373, %v1150, -inf
  %v1171 = vsel %vm374, %v1149, -inf
  %v1172 = vsel %vm375, %v1148, -inf
  %v1173 = vsel %vm376, %v1147, -inf
  %v1174 = vsel %vm377, %v1146, -inf
  %v1175 = vsel %vm378, %v1145, -inf
  %v1176 = vsel %vm379, %v1160, -inf
  %v1177 = vmax.f32 %v1113, %v1161
  %v1178 = vmax.f32 %v1114, %v1162
  %v1179 = vmax.f32 %v1115, %v1163
  %v1180 = vmax.f32 %v1116, %v1164
  %v1181 = vmax.f32 %v1117, %v1165
  %v1182 = vmax.f32 %v1118, %v1166
  %v1183 = vmax.f32 %v1119, %v1167
  %v1184 = vmax.f32 %v1120, %v1168
  %v1185 = vmax.f32 %v1121, %v1169
  %v1186 = vmax.f32 %v1122, %v1170
  %v1187 = vmax.f32 %v1123, %v1171
  %v1188 = vmax.f32 %v1124, %v1172
  %v1189 = vmax.f32 %v1125, %v1173
  %v1190 = vmax.f32 %v1126, %v1174
  %v1191 = vmax.f32 %v1127, %v1175
  %v1192 = vmax.f32 %v1128, %v1176
  %v1193 = vrot.slane %v1113, 7
  %v1194 = vrot.slane %v1114, 7
  %v1195 = vrot.slane %v1115, 7
  %v1196 = vrot.slane %v1116, 7
  %v1197 = vrot.slane %v1117, 7
  %v1198 = vrot.slane %v1118, 7
  %v1199 = vrot.slane %v1119, 7
  %v1200 = vrot.slane %v1120, 7
  %v1201 = vrot.slane %v1121, 7
  %v1202 = vrot.slane %v1122, 7
  %v1203 = vrot.slane %v1123, 7
  %v1204 = vrot.slane %v1124, 7
  %v1205 = vrot.slane %v1125, 7
  %v1206 = vrot.slane %v1126, 7
  %v1207 = vrot.slane %v1127, 7
  %v1208 = vrot.slane %v1128, 7
  %v1209 = vsel %vm428, %v1207, %v1208
  %v1210 = vsel %vm428, %v1206, %v1207
  %v1211 = vsel %vm428, %v1205, %v1206
  %v1212 = vsel %vm428, %v1204, %v1205
  %v1213 = vsel %vm428, %v1203, %v1204
  %v1214 = vsel %vm428, %v1202, %v1203
  %v1215 = vsel %vm428, %v1201, %v1202
  %v1216 = vsel %vm428, %v1200, %v1201
  %v1217 = vsel %vm428, %v1199, %v1200
  %v1218 = vsel %vm428, %v1198, %v1199
  %v1219 = vsel %vm428, %v1197, %v1198
  %v1220 = vsel %vm428, %v1196, %v1197
  %v1221 = vsel %vm428, %v1195, %v1196
  %v1222 = vsel %vm428, %v1194, %v1195
  %v1223 = vsel %vm428, %v1193, %v1194
  %v1224 = vsel %vm428, %v1208, %v1193
  %v1225 = vsel %vm525, %v1224, -inf
  %v1226 = vsel %vm526, %v1223, -inf
  %v1227 = vsel %vm527, %v1222, -inf
  %v1228 = vsel %vm528, %v1221, -inf
  %v1229 = vsel %vm529, %v1220, -inf
  %v1230 = vsel %vm530, %v1219, -inf
  %v1231 = vsel %vm531, %v1218, -inf
  %v1232 = vsel %vm532, %v1217, -inf
  %v1233 = vsel %vm533, %v1216, -inf
  %v1234 = vsel %vm534, %v1215, -inf
  %v1235 = vsel %vm535, %v1214, -inf
  %v1236 = vsel %vm536, %v1213, -inf
  %v1237 = vsel %vm537, %v1212, -inf
  %v1238 = vsel %vm538, %v1211, -inf
  %v1239 = vsel %vm539, %v1210, -inf
  %v1240 = vsel %vm540, %v1209, -inf
  %v1241 = vmax.f32 %v1177, %v1225
  %v1242 = vmax.f32 %v1178, %v1226
  %v1243 = vmax.f32 %v1179, %v1227
  %v1244 = vmax.f32 %v1180, %v1228
  %v1245 = vmax.f32 %v1181, %v1229
  %v1246 = vmax.f32 %v1182, %v1230
  %v1247 = vmax.f32 %v1183, %v1231
  %v1248 = vmax.f32 %v1184, %v1232
  %v1249 = vmax.f32 %v1185, %v1233
  %v1250 = vmax.f32 %v1186, %v1234
  %v1251 = vmax.f32 %v1187, %v1235
  %v1252 = vmax.f32 %v1188, %v1236
  %v1253 = vmax.f32 %v1189, %v1237
  %v1254 = vmax.f32 %v1190, %v1238
  %v1255 = vmax.f32 %v1191, %v1239
  %v1256 = vmax.f32 %v1192, %v1240
  %v1257 = vrot.slane %v1113, 2
  %v1258 = vrot.slane %v1114, 2
  %v1259 = vrot.slane %v1115, 2
  %v1260 = vrot.slane %v1116, 2
  %v1261 = vrot.slane %v1117, 2
  %v1262 = vrot.slane %v1118, 2
  %v1263 = vrot.slane %v1119, 2
  %v1264 = vrot.slane %v1120, 2
  %v1265 = vrot.slane %v1121, 2
  %v1266 = vrot.slane %v1122, 2
  %v1267 = vrot.slane %v1123, 2
  %v1268 = vrot.slane %v1124, 2
  %v1269 = vrot.slane %v1125, 2
  %v1270 = vrot.slane %v1126, 2
  %v1271 = vrot.slane %v1127, 2
  %v1272 = vrot.slane %v1128, 2
  %vm1273 = vcmp.lt.s32.totalorder %v47, 6
  %v1274 = vsel %vm1273, %v1271, %v1272
  %v1275 = vsel %vm1273, %v1270, %v1271
  %v1276 = vsel %vm1273, %v1269, %v1270
  %v1277 = vsel %vm1273, %v1268, %v1269
  %v1278 = vsel %vm1273, %v1267, %v1268
  %v1279 = vsel %vm1273, %v1266, %v1267
  %v1280 = vsel %vm1273, %v1265, %v1266
  %v1281 = vsel %vm1273, %v1264, %v1265
  %v1282 = vsel %vm1273, %v1263, %v1264
  %v1283 = vsel %vm1273, %v1262, %v1263
  %v1284 = vsel %vm1273, %v1261, %v1262
  %v1285 = vsel %vm1273, %v1260, %v1261
  %v1286 = vsel %vm1273, %v1259, %v1260
  %v1287 = vsel %vm1273, %v1258, %v1259
  %v1288 = vsel %vm1273, %v1257, %v1258
  %v1289 = vsel %vm1273, %v1272, %v1257
  %v1290 = vadd.s32 %v63, 2
  %v1291 = vadd.s32 %v64, 2
  %v1292 = vadd.s32 %v65, 2
  %v1293 = vadd.s32 %v66, 2
  %v1294 = vadd.s32 %v67, 2
  %v1295 = vadd.s32 %v68, 2
  %v1296 = vadd.s32 %v69, 2
  %v1297 = vadd.s32 %v70, 2
  %v1298 = vadd.s32 %v71, 2
  %v1299 = vadd.s32 %v72, 2
  %v1300 = vadd.s32 %v73, 2
  %v1301 = vadd.s32 %v74, 2
  %v1302 = vadd.s32 %v75, 2
  %v1303 = vadd.s32 %v76, 2
  %v1304 = vadd.s32 %v77, 2
  %v1305 = vadd.s32 %v78, 2
  %vm1306 = vcmp.ge.s32.totalorder %v1290, 0
  %vm1307 = vcmp.ge.s32.totalorder %v1291, 0
  %vm1308 = vcmp.ge.s32.totalorder %v1292, 0
  %vm1309 = vcmp.ge.s32.totalorder %v1293, 0
  %vm1310 = vcmp.ge.s32.totalorder %v1294, 0
  %vm1311 = vcmp.ge.s32.totalorder %v1295, 0
  %vm1312 = vcmp.ge.s32.totalorder %v1296, 0
  %vm1313 = vcmp.ge.s32.totalorder %v1297, 0
  %vm1314 = vcmp.ge.s32.totalorder %v1298, 0
  %vm1315 = vcmp.ge.s32.totalorder %v1299, 0
  %vm1316 = vcmp.ge.s32.totalorder %v1300, 0
  %vm1317 = vcmp.ge.s32.totalorder %v1301, 0
  %vm1318 = vcmp.ge.s32.totalorder %v1302, 0
  %vm1319 = vcmp.ge.s32.totalorder %v1303, 0
  %vm1320 = vcmp.ge.s32.totalorder %v1304, 0
  %vm1321 = vcmp.ge.s32.totalorder %v1305, 0
  %vm1322 = vcmp.lt.s32.totalorder %v1290, 16
  %vm1323 = vcmp.lt.s32.totalorder %v1291, 16
  %vm1324 = vcmp.lt.s32.totalorder %v1292, 16
  %vm1325 = vcmp.lt.s32.totalorder %v1293, 16
  %vm1326 = vcmp.lt.s32.totalorder %v1294, 16
  %vm1327 = vcmp.lt.s32.totalorder %v1295, 16
  %vm1328 = vcmp.lt.s32.totalorder %v1296, 16
  %vm1329 = vcmp.lt.s32.totalorder %v1297, 16
  %vm1330 = vcmp.lt.s32.totalorder %v1298, 16
  %vm1331 = vcmp.lt.s32.totalorder %v1299, 16
  %vm1332 = vcmp.lt.s32.totalorder %v1300, 16
  %vm1333 = vcmp.lt.s32.totalorder %v1301, 16
  %vm1334 = vcmp.lt.s32.totalorder %v1302, 16
  %vm1335 = vcmp.lt.s32.totalorder %v1303, 16
  %vm1336 = vcmp.lt.s32.totalorder %v1304, 16
  %vm1337 = vcmp.lt.s32.totalorder %v1305, 16
  %vm1338 = vmand %vm1306, %vm1322
  %vm1339 = vmand %vm1307, %vm1323
  %vm1340 = vmand %vm1308, %vm1324
  %vm1341 = vmand %vm1309, %vm1325
  %vm1342 = vmand %vm1310, %vm1326
  %vm1343 = vmand %vm1311, %vm1327
  %vm1344 = vmand %vm1312, %vm1328
  %vm1345 = vmand %vm1313, %vm1329
  %vm1346 = vmand %vm1314, %vm1330
  %vm1347 = vmand %vm1315, %vm1331
  %vm1348 = vmand %vm1316, %vm1332
  %vm1349 = vmand %vm1317, %vm1333
  %vm1350 = vmand %vm1318, %vm1334
  %vm1351 = vmand %vm1319, %vm1335
  %vm1352 = vmand %vm1320, %vm1336
  %vm1353 = vmand %vm1321, %vm1337
  %v1354 = vsel %vm1338, 1, 0
  %v1355 = vsel %vm1339, 1, 0
  %v1356 = vsel %vm1340, 1, 0
  %v1357 = vsel %vm1341, 1, 0
  %v1358 = vsel %vm1342, 1, 0
  %v1359 = vsel %vm1343, 1, 0
  %v1360 = vsel %vm1344, 1, 0
  %v1361 = vsel %vm1345, 1, 0
  %v1362 = vsel %vm1346, 1, 0
  %v1363 = vsel %vm1347, 1, 0
  %v1364 = vsel %vm1348, 1, 0
  %v1365 = vsel %vm1349, 1, 0
  %v1366 = vsel %vm1350, 1, 0
  %v1367 = vsel %vm1351, 1, 0
  %v1368 = vsel %vm1352, 1, 0
  %v1369 = vsel %vm1353, 1, 0
  %vm1370 = vcmp.eq.s32.totalorder %v1354, 1
  %vm1371 = vcmp.eq.s32.totalorder %v1355, 1
  %vm1372 = vcmp.eq.s32.totalorder %v1356, 1
  %vm1373 = vcmp.eq.s32.totalorder %v1357, 1
  %vm1374 = vcmp.eq.s32.totalorder %v1358, 1
  %vm1375 = vcmp.eq.s32.totalorder %v1359, 1
  %vm1376 = vcmp.eq.s32.totalorder %v1360, 1
  %vm1377 = vcmp.eq.s32.totalorder %v1361, 1
  %vm1378 = vcmp.eq.s32.totalorder %v1362, 1
  %vm1379 = vcmp.eq.s32.totalorder %v1363, 1
  %vm1380 = vcmp.eq.s32.totalorder %v1364, 1
  %vm1381 = vcmp.eq.s32.totalorder %v1365, 1
  %vm1382 = vcmp.eq.s32.totalorder %v1366, 1
  %vm1383 = vcmp.eq.s32.totalorder %v1367, 1
  %vm1384 = vcmp.eq.s32.totalorder %v1368, 1
  %vm1385 = vcmp.eq.s32.totalorder %v1369, 1
  %v1386 = vsel %vm1370, %v1288, -inf
  %v1387 = vsel %vm1371, %v1287, -inf
  %v1388 = vsel %vm1372, %v1286, -inf
  %v1389 = vsel %vm1373, %v1285, -inf
  %v1390 = vsel %vm1374, %v1284, -inf
  %v1391 = vsel %vm1375, %v1283, -inf
  %v1392 = vsel %vm1376, %v1282, -inf
  %v1393 = vsel %vm1377, %v1281, -inf
  %v1394 = vsel %vm1378, %v1280, -inf
  %v1395 = vsel %vm1379, %v1279, -inf
  %v1396 = vsel %vm1380, %v1278, -inf
  %v1397 = vsel %vm1381, %v1277, -inf
  %v1398 = vsel %vm1382, %v1276, -inf
  %v1399 = vsel %vm1383, %v1275, -inf
  %v1400 = vsel %vm1384, %v1274, -inf
  %v1401 = vsel %vm1385, %v1289, -inf
  %v1402 = vmax.f32 %v1241, %v1386
  %v1403 = vmax.f32 %v1242, %v1387
  %v1404 = vmax.f32 %v1243, %v1388
  %v1405 = vmax.f32 %v1244, %v1389
  %v1406 = vmax.f32 %v1245, %v1390
  %v1407 = vmax.f32 %v1246, %v1391
  %v1408 = vmax.f32 %v1247, %v1392
  %v1409 = vmax.f32 %v1248, %v1393
  %v1410 = vmax.f32 %v1249, %v1394
  %v1411 = vmax.f32 %v1250, %v1395
  %v1412 = vmax.f32 %v1251, %v1396
  %v1413 = vmax.f32 %v1252, %v1397
  %v1414 = vmax.f32 %v1253, %v1398
  %v1415 = vmax.f32 %v1254, %v1399
  %v1416 = vmax.f32 %v1255, %v1400
  %v1417 = vmax.f32 %v1256, %v1401
  %v1418 = vrot.slane %v1113, 6
  %v1419 = vrot.slane %v1114, 6
  %v1420 = vrot.slane %v1115, 6
  %v1421 = vrot.slane %v1116, 6
  %v1422 = vrot.slane %v1117, 6
  %v1423 = vrot.slane %v1118, 6
  %v1424 = vrot.slane %v1119, 6
  %v1425 = vrot.slane %v1120, 6
  %v1426 = vrot.slane %v1121, 6
  %v1427 = vrot.slane %v1122, 6
  %v1428 = vrot.slane %v1123, 6
  %v1429 = vrot.slane %v1124, 6
  %v1430 = vrot.slane %v1125, 6
  %v1431 = vrot.slane %v1126, 6
  %v1432 = vrot.slane %v1127, 6
  %v1433 = vrot.slane %v1128, 6
  %vm1434 = vcmp.lt.s32.totalorder %v47, 2
  %v1435 = vsel %vm1434, %v1432, %v1433
  %v1436 = vsel %vm1434, %v1431, %v1432
  %v1437 = vsel %vm1434, %v1430, %v1431
  %v1438 = vsel %vm1434, %v1429, %v1430
  %v1439 = vsel %vm1434, %v1428, %v1429
  %v1440 = vsel %vm1434, %v1427, %v1428
  %v1441 = vsel %vm1434, %v1426, %v1427
  %v1442 = vsel %vm1434, %v1425, %v1426
  %v1443 = vsel %vm1434, %v1424, %v1425
  %v1444 = vsel %vm1434, %v1423, %v1424
  %v1445 = vsel %vm1434, %v1422, %v1423
  %v1446 = vsel %vm1434, %v1421, %v1422
  %v1447 = vsel %vm1434, %v1420, %v1421
  %v1448 = vsel %vm1434, %v1419, %v1420
  %v1449 = vsel %vm1434, %v1418, %v1419
  %v1450 = vsel %vm1434, %v1433, %v1418
  %v1451 = vadd.s32 %v63, 4294967294
  %v1452 = vadd.s32 %v64, 4294967294
  %v1453 = vadd.s32 %v65, 4294967294
  %v1454 = vadd.s32 %v66, 4294967294
  %v1455 = vadd.s32 %v67, 4294967294
  %v1456 = vadd.s32 %v68, 4294967294
  %v1457 = vadd.s32 %v69, 4294967294
  %v1458 = vadd.s32 %v70, 4294967294
  %v1459 = vadd.s32 %v71, 4294967294
  %v1460 = vadd.s32 %v72, 4294967294
  %v1461 = vadd.s32 %v73, 4294967294
  %v1462 = vadd.s32 %v74, 4294967294
  %v1463 = vadd.s32 %v75, 4294967294
  %v1464 = vadd.s32 %v76, 4294967294
  %v1465 = vadd.s32 %v77, 4294967294
  %v1466 = vadd.s32 %v78, 4294967294
  %vm1467 = vcmp.ge.s32.totalorder %v1451, 0
  %vm1468 = vcmp.ge.s32.totalorder %v1452, 0
  %vm1469 = vcmp.ge.s32.totalorder %v1453, 0
  %vm1470 = vcmp.ge.s32.totalorder %v1454, 0
  %vm1471 = vcmp.ge.s32.totalorder %v1455, 0
  %vm1472 = vcmp.ge.s32.totalorder %v1456, 0
  %vm1473 = vcmp.ge.s32.totalorder %v1457, 0
  %vm1474 = vcmp.ge.s32.totalorder %v1458, 0
  %vm1475 = vcmp.ge.s32.totalorder %v1459, 0
  %vm1476 = vcmp.ge.s32.totalorder %v1460, 0
  %vm1477 = vcmp.ge.s32.totalorder %v1461, 0
  %vm1478 = vcmp.ge.s32.totalorder %v1462, 0
  %vm1479 = vcmp.ge.s32.totalorder %v1463, 0
  %vm1480 = vcmp.ge.s32.totalorder %v1464, 0
  %vm1481 = vcmp.ge.s32.totalorder %v1465, 0
  %vm1482 = vcmp.ge.s32.totalorder %v1466, 0
  %vm1483 = vcmp.lt.s32.totalorder %v1451, 16
  %vm1484 = vcmp.lt.s32.totalorder %v1452, 16
  %vm1485 = vcmp.lt.s32.totalorder %v1453, 16
  %vm1486 = vcmp.lt.s32.totalorder %v1454, 16
  %vm1487 = vcmp.lt.s32.totalorder %v1455, 16
  %vm1488 = vcmp.lt.s32.totalorder %v1456, 16
  %vm1489 = vcmp.lt.s32.totalorder %v1457, 16
  %vm1490 = vcmp.lt.s32.totalorder %v1458, 16
  %vm1491 = vcmp.lt.s32.totalorder %v1459, 16
  %vm1492 = vcmp.lt.s32.totalorder %v1460, 16
  %vm1493 = vcmp.lt.s32.totalorder %v1461, 16
  %vm1494 = vcmp.lt.s32.totalorder %v1462, 16
  %vm1495 = vcmp.lt.s32.totalorder %v1463, 16
  %vm1496 = vcmp.lt.s32.totalorder %v1464, 16
  %vm1497 = vcmp.lt.s32.totalorder %v1465, 16
  %vm1498 = vcmp.lt.s32.totalorder %v1466, 16
  %vm1499 = vmand %vm1467, %vm1483
  %vm1500 = vmand %vm1468, %vm1484
  %vm1501 = vmand %vm1469, %vm1485
  %vm1502 = vmand %vm1470, %vm1486
  %vm1503 = vmand %vm1471, %vm1487
  %vm1504 = vmand %vm1472, %vm1488
  %vm1505 = vmand %vm1473, %vm1489
  %vm1506 = vmand %vm1474, %vm1490
  %vm1507 = vmand %vm1475, %vm1491
  %vm1508 = vmand %vm1476, %vm1492
  %vm1509 = vmand %vm1477, %vm1493
  %vm1510 = vmand %vm1478, %vm1494
  %vm1511 = vmand %vm1479, %vm1495
  %vm1512 = vmand %vm1480, %vm1496
  %vm1513 = vmand %vm1481, %vm1497
  %vm1514 = vmand %vm1482, %vm1498
  %v1515 = vsel %vm1499, 1, 0
  %v1516 = vsel %vm1500, 1, 0
  %v1517 = vsel %vm1501, 1, 0
  %v1518 = vsel %vm1502, 1, 0
  %v1519 = vsel %vm1503, 1, 0
  %v1520 = vsel %vm1504, 1, 0
  %v1521 = vsel %vm1505, 1, 0
  %v1522 = vsel %vm1506, 1, 0
  %v1523 = vsel %vm1507, 1, 0
  %v1524 = vsel %vm1508, 1, 0
  %v1525 = vsel %vm1509, 1, 0
  %v1526 = vsel %vm1510, 1, 0
  %v1527 = vsel %vm1511, 1, 0
  %v1528 = vsel %vm1512, 1, 0
  %v1529 = vsel %vm1513, 1, 0
  %v1530 = vsel %vm1514, 1, 0
  %vm1531 = vcmp.eq.s32.totalorder %v1515, 1
  %vm1532 = vcmp.eq.s32.totalorder %v1516, 1
  %vm1533 = vcmp.eq.s32.totalorder %v1517, 1
  %vm1534 = vcmp.eq.s32.totalorder %v1518, 1
  %vm1535 = vcmp.eq.s32.totalorder %v1519, 1
  %vm1536 = vcmp.eq.s32.totalorder %v1520, 1
  %vm1537 = vcmp.eq.s32.totalorder %v1521, 1
  %vm1538 = vcmp.eq.s32.totalorder %v1522, 1
  %vm1539 = vcmp.eq.s32.totalorder %v1523, 1
  %vm1540 = vcmp.eq.s32.totalorder %v1524, 1
  %vm1541 = vcmp.eq.s32.totalorder %v1525, 1
  %vm1542 = vcmp.eq.s32.totalorder %v1526, 1
  %vm1543 = vcmp.eq.s32.totalorder %v1527, 1
  %vm1544 = vcmp.eq.s32.totalorder %v1528, 1
  %vm1545 = vcmp.eq.s32.totalorder %v1529, 1
  %vm1546 = vcmp.eq.s32.totalorder %v1530, 1
  %v1547 = vsel %vm1531, %v1450, -inf
  %v1548 = vsel %vm1532, %v1449, -inf
  %v1549 = vsel %vm1533, %v1448, -inf
  %v1550 = vsel %vm1534, %v1447, -inf
  %v1551 = vsel %vm1535, %v1446, -inf
  %v1552 = vsel %vm1536, %v1445, -inf
  %v1553 = vsel %vm1537, %v1444, -inf
  %v1554 = vsel %vm1538, %v1443, -inf
  %v1555 = vsel %vm1539, %v1442, -inf
  %v1556 = vsel %vm1540, %v1441, -inf
  %v1557 = vsel %vm1541, %v1440, -inf
  %v1558 = vsel %vm1542, %v1439, -inf
  %v1559 = vsel %vm1543, %v1438, -inf
  %v1560 = vsel %vm1544, %v1437, -inf
  %v1561 = vsel %vm1545, %v1436, -inf
  %v1562 = vsel %vm1546, %v1435, -inf
  %v1563 = vmax.f32 %v1402, %v1547
  %v1564 = vmax.f32 %v1403, %v1548
  %v1565 = vmax.f32 %v1404, %v1549
  %v1566 = vmax.f32 %v1405, %v1550
  %v1567 = vmax.f32 %v1406, %v1551
  %v1568 = vmax.f32 %v1407, %v1552
  %v1569 = vmax.f32 %v1408, %v1553
  %v1570 = vmax.f32 %v1409, %v1554
  %v1571 = vmax.f32 %v1410, %v1555
  %v1572 = vmax.f32 %v1411, %v1556
  %v1573 = vmax.f32 %v1412, %v1557
  %v1574 = vmax.f32 %v1413, %v1558
  %v1575 = vmax.f32 %v1414, %v1559
  %v1576 = vmax.f32 %v1415, %v1560
  %v1577 = vmax.f32 %v1416, %v1561
  %v1578 = vmax.f32 %v1417, %v1562
  %1579 = vrot.lane.b32.xlu0 %v845, 127
  %v1580 = vpop.permute.xlu0 %1579
  %1581 = vrot.lane.b32.xlu0 %v846, 127
  %v1582 = vpop.permute.xlu0 %1581
  %1583 = vrot.lane.b32.xlu0 %v847, 127
  %v1584 = vpop.permute.xlu0 %1583
  %1585 = vrot.lane.b32.xlu0 %v848, 127
  %v1586 = vpop.permute.xlu0 %1585
  %1587 = vrot.lane.b32.xlu0 %v849, 127
  %v1588 = vpop.permute.xlu0 %1587
  %1589 = vrot.lane.b32.xlu0 %v850, 127
  %v1590 = vpop.permute.xlu0 %1589
  %1591 = vrot.lane.b32.xlu0 %v851, 127
  %v1592 = vpop.permute.xlu0 %1591
  %1593 = vrot.lane.b32.xlu0 %v852, 127
  %v1594 = vpop.permute.xlu0 %1593
  %1595 = vrot.lane.b32.xlu0 %v853, 127
  %v1596 = vpop.permute.xlu0 %1595
  %1597 = vrot.lane.b32.xlu0 %v854, 127
  %v1598 = vpop.permute.xlu0 %1597
  %1599 = vrot.lane.b32.xlu0 %v855, 127
  %v1600 = vpop.permute.xlu0 %1599
  %1601 = vrot.lane.b32.xlu0 %v856, 127
  %v1602 = vpop.permute.xlu0 %1601
  %1603 = vrot.lane.b32.xlu0 %v857, 127
  %v1604 = vpop.permute.xlu0 %1603
  %1605 = vrot.lane.b32.xlu0 %v858, 127
  %v1606 = vpop.permute.xlu0 %1605
  %1607 = vrot.lane.b32.xlu0 %v859, 127
  %v1608 = vpop.permute.xlu0 %1607
  %1609 = vrot.lane.b32.xlu0 %v860, 127
  %v1610 = vpop.permute.xlu0 %1609
  %v1611 = vsel %vm148, %v1580, -inf
  %v1612 = vsel %vm148, %v1582, -inf
  %v1613 = vsel %vm148, %v1584, -inf
  %v1614 = vsel %vm148, %v1586, -inf
  %v1615 = vsel %vm148, %v1588, -inf
  %v1616 = vsel %vm148, %v1590, -inf
  %v1617 = vsel %vm148, %v1592, -inf
  %v1618 = vsel %vm148, %v1594, -inf
  %v1619 = vsel %vm148, %v1596, -inf
  %v1620 = vsel %vm148, %v1598, -inf
  %v1621 = vsel %vm148, %v1600, -inf
  %v1622 = vsel %vm148, %v1602, -inf
  %v1623 = vsel %vm148, %v1604, -inf
  %v1624 = vsel %vm148, %v1606, -inf
  %v1625 = vsel %vm148, %v1608, -inf
  %v1626 = vsel %vm148, %v1610, -inf
  %v1627 = vmax.f32 %v845, %v1611
  %v1628 = vmax.f32 %v846, %v1612
  %v1629 = vmax.f32 %v847, %v1613
  %v1630 = vmax.f32 %v848, %v1614
  %v1631 = vmax.f32 %v849, %v1615
  %v1632 = vmax.f32 %v850, %v1616
  %v1633 = vmax.f32 %v851, %v1617
  %v1634 = vmax.f32 %v852, %v1618
  %v1635 = vmax.f32 %v853, %v1619
  %v1636 = vmax.f32 %v854, %v1620
  %v1637 = vmax.f32 %v855, %v1621
  %v1638 = vmax.f32 %v856, %v1622
  %v1639 = vmax.f32 %v857, %v1623
  %v1640 = vmax.f32 %v858, %v1624
  %v1641 = vmax.f32 %v859, %v1625
  %v1642 = vmax.f32 %v860, %v1626
  %1643 = vrot.lane.b32.xlu0 %v845, 1
  %v1644 = vpop.permute.xlu0 %1643
  %1645 = vrot.lane.b32.xlu0 %v846, 1
  %v1646 = vpop.permute.xlu0 %1645
  %1647 = vrot.lane.b32.xlu0 %v847, 1
  %v1648 = vpop.permute.xlu0 %1647
  %1649 = vrot.lane.b32.xlu0 %v848, 1
  %v1650 = vpop.permute.xlu0 %1649
  %1651 = vrot.lane.b32.xlu0 %v849, 1
  %v1652 = vpop.permute.xlu0 %1651
  %1653 = vrot.lane.b32.xlu0 %v850, 1
  %v1654 = vpop.permute.xlu0 %1653
  %1655 = vrot.lane.b32.xlu0 %v851, 1
  %v1656 = vpop.permute.xlu0 %1655
  %1657 = vrot.lane.b32.xlu0 %v852, 1
  %v1658 = vpop.permute.xlu0 %1657
  %1659 = vrot.lane.b32.xlu0 %v853, 1
  %v1660 = vpop.permute.xlu0 %1659
  %1661 = vrot.lane.b32.xlu0 %v854, 1
  %v1662 = vpop.permute.xlu0 %1661
  %1663 = vrot.lane.b32.xlu0 %v855, 1
  %v1664 = vpop.permute.xlu0 %1663
  %1665 = vrot.lane.b32.xlu0 %v856, 1
  %v1666 = vpop.permute.xlu0 %1665
  %1667 = vrot.lane.b32.xlu0 %v857, 1
  %v1668 = vpop.permute.xlu0 %1667
  %1669 = vrot.lane.b32.xlu0 %v858, 1
  %v1670 = vpop.permute.xlu0 %1669
  %1671 = vrot.lane.b32.xlu0 %v859, 1
  %v1672 = vpop.permute.xlu0 %1671
  %1673 = vrot.lane.b32.xlu0 %v860, 1
  %v1674 = vpop.permute.xlu0 %1673
  %v1675 = vsel %vm218, %v1644, -inf
  %v1676 = vsel %vm218, %v1646, -inf
  %v1677 = vsel %vm218, %v1648, -inf
  %v1678 = vsel %vm218, %v1650, -inf
  %v1679 = vsel %vm218, %v1652, -inf
  %v1680 = vsel %vm218, %v1654, -inf
  %v1681 = vsel %vm218, %v1656, -inf
  %v1682 = vsel %vm218, %v1658, -inf
  %v1683 = vsel %vm218, %v1660, -inf
  %v1684 = vsel %vm218, %v1662, -inf
  %v1685 = vsel %vm218, %v1664, -inf
  %v1686 = vsel %vm218, %v1666, -inf
  %v1687 = vsel %vm218, %v1668, -inf
  %v1688 = vsel %vm218, %v1670, -inf
  %v1689 = vsel %vm218, %v1672, -inf
  %v1690 = vsel %vm218, %v1674, -inf
  %v1691 = vmax.f32 %v1627, %v1675
  %v1692 = vmax.f32 %v1628, %v1676
  %v1693 = vmax.f32 %v1629, %v1677
  %v1694 = vmax.f32 %v1630, %v1678
  %v1695 = vmax.f32 %v1631, %v1679
  %v1696 = vmax.f32 %v1632, %v1680
  %v1697 = vmax.f32 %v1633, %v1681
  %v1698 = vmax.f32 %v1634, %v1682
  %v1699 = vmax.f32 %v1635, %v1683
  %v1700 = vmax.f32 %v1636, %v1684
  %v1701 = vmax.f32 %v1637, %v1685
  %v1702 = vmax.f32 %v1638, %v1686
  %v1703 = vmax.f32 %v1639, %v1687
  %v1704 = vmax.f32 %v1640, %v1688
  %v1705 = vmax.f32 %v1641, %v1689
  %v1706 = vmax.f32 %v1642, %v1690
  %1707 = vrot.lane.b32.xlu0 %v845, 126
  %v1708 = vpop.permute.xlu0 %1707
  %1709 = vrot.lane.b32.xlu0 %v846, 126
  %v1710 = vpop.permute.xlu0 %1709
  %1711 = vrot.lane.b32.xlu0 %v847, 126
  %v1712 = vpop.permute.xlu0 %1711
  %1713 = vrot.lane.b32.xlu0 %v848, 126
  %v1714 = vpop.permute.xlu0 %1713
  %1715 = vrot.lane.b32.xlu0 %v849, 126
  %v1716 = vpop.permute.xlu0 %1715
  %1717 = vrot.lane.b32.xlu0 %v850, 126
  %v1718 = vpop.permute.xlu0 %1717
  %1719 = vrot.lane.b32.xlu0 %v851, 126
  %v1720 = vpop.permute.xlu0 %1719
  %1721 = vrot.lane.b32.xlu0 %v852, 126
  %v1722 = vpop.permute.xlu0 %1721
  %1723 = vrot.lane.b32.xlu0 %v853, 126
  %v1724 = vpop.permute.xlu0 %1723
  %1725 = vrot.lane.b32.xlu0 %v854, 126
  %v1726 = vpop.permute.xlu0 %1725
  %1727 = vrot.lane.b32.xlu0 %v855, 126
  %v1728 = vpop.permute.xlu0 %1727
  %1729 = vrot.lane.b32.xlu0 %v856, 126
  %v1730 = vpop.permute.xlu0 %1729
  %1731 = vrot.lane.b32.xlu0 %v857, 126
  %v1732 = vpop.permute.xlu0 %1731
  %1733 = vrot.lane.b32.xlu0 %v858, 126
  %v1734 = vpop.permute.xlu0 %1733
  %1735 = vrot.lane.b32.xlu0 %v859, 126
  %v1736 = vpop.permute.xlu0 %1735
  %1737 = vrot.lane.b32.xlu0 %v860, 126
  %v1738 = vpop.permute.xlu0 %1737
  %v1739 = vsel %vm1026, %v1708, -inf
  %v1740 = vsel %vm1026, %v1710, -inf
  %v1741 = vsel %vm1026, %v1712, -inf
  %v1742 = vsel %vm1026, %v1714, -inf
  %v1743 = vsel %vm1026, %v1716, -inf
  %v1744 = vsel %vm1026, %v1718, -inf
  %v1745 = vsel %vm1026, %v1720, -inf
  %v1746 = vsel %vm1026, %v1722, -inf
  %v1747 = vsel %vm1026, %v1724, -inf
  %v1748 = vsel %vm1026, %v1726, -inf
  %v1749 = vsel %vm1026, %v1728, -inf
  %v1750 = vsel %vm1026, %v1730, -inf
  %v1751 = vsel %vm1026, %v1732, -inf
  %v1752 = vsel %vm1026, %v1734, -inf
  %v1753 = vsel %vm1026, %v1736, -inf
  %v1754 = vsel %vm1026, %v1738, -inf
  %v1755 = vmax.f32 %v1691, %v1739
  %v1756 = vmax.f32 %v1692, %v1740
  %v1757 = vmax.f32 %v1693, %v1741
  %v1758 = vmax.f32 %v1694, %v1742
  %v1759 = vmax.f32 %v1695, %v1743
  %v1760 = vmax.f32 %v1696, %v1744
  %v1761 = vmax.f32 %v1697, %v1745
  %v1762 = vmax.f32 %v1698, %v1746
  %v1763 = vmax.f32 %v1699, %v1747
  %v1764 = vmax.f32 %v1700, %v1748
  %v1765 = vmax.f32 %v1701, %v1749
  %v1766 = vmax.f32 %v1702, %v1750
  %v1767 = vmax.f32 %v1703, %v1751
  %v1768 = vmax.f32 %v1704, %v1752
  %v1769 = vmax.f32 %v1705, %v1753
  %v1770 = vmax.f32 %v1706, %v1754
  %1771 = vrot.lane.b32.xlu0 %v845, 2
  %v1772 = vpop.permute.xlu0 %1771
  %1773 = vrot.lane.b32.xlu0 %v846, 2
  %v1774 = vpop.permute.xlu0 %1773
  %1775 = vrot.lane.b32.xlu0 %v847, 2
  %v1776 = vpop.permute.xlu0 %1775
  %1777 = vrot.lane.b32.xlu0 %v848, 2
  %v1778 = vpop.permute.xlu0 %1777
  %1779 = vrot.lane.b32.xlu0 %v849, 2
  %v1780 = vpop.permute.xlu0 %1779
  %1781 = vrot.lane.b32.xlu0 %v850, 2
  %v1782 = vpop.permute.xlu0 %1781
  %1783 = vrot.lane.b32.xlu0 %v851, 2
  %v1784 = vpop.permute.xlu0 %1783
  %1785 = vrot.lane.b32.xlu0 %v852, 2
  %v1786 = vpop.permute.xlu0 %1785
  %1787 = vrot.lane.b32.xlu0 %v853, 2
  %v1788 = vpop.permute.xlu0 %1787
  %1789 = vrot.lane.b32.xlu0 %v854, 2
  %v1790 = vpop.permute.xlu0 %1789
  %1791 = vrot.lane.b32.xlu0 %v855, 2
  %v1792 = vpop.permute.xlu0 %1791
  %1793 = vrot.lane.b32.xlu0 %v856, 2
  %v1794 = vpop.permute.xlu0 %1793
  %1795 = vrot.lane.b32.xlu0 %v857, 2
  %v1796 = vpop.permute.xlu0 %1795
  %1797 = vrot.lane.b32.xlu0 %v858, 2
  %v1798 = vpop.permute.xlu0 %1797
  %1799 = vrot.lane.b32.xlu0 %v859, 2
  %v1800 = vpop.permute.xlu0 %1799
  %1801 = vrot.lane.b32.xlu0 %v860, 2
  %v1802 = vpop.permute.xlu0 %1801
  %v1803 = vsel %vm1096, %v1772, -inf
  %v1804 = vsel %vm1096, %v1774, -inf
  %v1805 = vsel %vm1096, %v1776, -inf
  %v1806 = vsel %vm1096, %v1778, -inf
  %v1807 = vsel %vm1096, %v1780, -inf
  %v1808 = vsel %vm1096, %v1782, -inf
  %v1809 = vsel %vm1096, %v1784, -inf
  %v1810 = vsel %vm1096, %v1786, -inf
  %v1811 = vsel %vm1096, %v1788, -inf
  %v1812 = vsel %vm1096, %v1790, -inf
  %v1813 = vsel %vm1096, %v1792, -inf
  %v1814 = vsel %vm1096, %v1794, -inf
  %v1815 = vsel %vm1096, %v1796, -inf
  %v1816 = vsel %vm1096, %v1798, -inf
  %v1817 = vsel %vm1096, %v1800, -inf
  %v1818 = vsel %vm1096, %v1802, -inf
  %v1819 = vmax.f32 %v1755, %v1803
  %v1820 = vmax.f32 %v1756, %v1804
  %v1821 = vmax.f32 %v1757, %v1805
  %v1822 = vmax.f32 %v1758, %v1806
  %v1823 = vmax.f32 %v1759, %v1807
  %v1824 = vmax.f32 %v1760, %v1808
  %v1825 = vmax.f32 %v1761, %v1809
  %v1826 = vmax.f32 %v1762, %v1810
  %v1827 = vmax.f32 %v1763, %v1811
  %v1828 = vmax.f32 %v1764, %v1812
  %v1829 = vmax.f32 %v1765, %v1813
  %v1830 = vmax.f32 %v1766, %v1814
  %v1831 = vmax.f32 %v1767, %v1815
  %v1832 = vmax.f32 %v1768, %v1816
  %v1833 = vmax.f32 %v1769, %v1817
  %v1834 = vmax.f32 %v1770, %v1818
  %v1835 = vrot.slane %v1819, 1
  %v1836 = vrot.slane %v1820, 1
  %v1837 = vrot.slane %v1821, 1
  %v1838 = vrot.slane %v1822, 1
  %v1839 = vrot.slane %v1823, 1
  %v1840 = vrot.slane %v1824, 1
  %v1841 = vrot.slane %v1825, 1
  %v1842 = vrot.slane %v1826, 1
  %v1843 = vrot.slane %v1827, 1
  %v1844 = vrot.slane %v1828, 1
  %v1845 = vrot.slane %v1829, 1
  %v1846 = vrot.slane %v1830, 1
  %v1847 = vrot.slane %v1831, 1
  %v1848 = vrot.slane %v1832, 1
  %v1849 = vrot.slane %v1833, 1
  %v1850 = vrot.slane %v1834, 1
  %v1851 = vsel %vm267, %v1849, %v1850
  %v1852 = vsel %vm267, %v1848, %v1849
  %v1853 = vsel %vm267, %v1847, %v1848
  %v1854 = vsel %vm267, %v1846, %v1847
  %v1855 = vsel %vm267, %v1845, %v1846
  %v1856 = vsel %vm267, %v1844, %v1845
  %v1857 = vsel %vm267, %v1843, %v1844
  %v1858 = vsel %vm267, %v1842, %v1843
  %v1859 = vsel %vm267, %v1841, %v1842
  %v1860 = vsel %vm267, %v1840, %v1841
  %v1861 = vsel %vm267, %v1839, %v1840
  %v1862 = vsel %vm267, %v1838, %v1839
  %v1863 = vsel %vm267, %v1837, %v1838
  %v1864 = vsel %vm267, %v1836, %v1837
  %v1865 = vsel %vm267, %v1835, %v1836
  %v1866 = vsel %vm267, %v1850, %v1835
  %v1867 = vsel %vm364, %v1865, -inf
  %v1868 = vsel %vm365, %v1864, -inf
  %v1869 = vsel %vm366, %v1863, -inf
  %v1870 = vsel %vm367, %v1862, -inf
  %v1871 = vsel %vm368, %v1861, -inf
  %v1872 = vsel %vm369, %v1860, -inf
  %v1873 = vsel %vm370, %v1859, -inf
  %v1874 = vsel %vm371, %v1858, -inf
  %v1875 = vsel %vm372, %v1857, -inf
  %v1876 = vsel %vm373, %v1856, -inf
  %v1877 = vsel %vm374, %v1855, -inf
  %v1878 = vsel %vm375, %v1854, -inf
  %v1879 = vsel %vm376, %v1853, -inf
  %v1880 = vsel %vm377, %v1852, -inf
  %v1881 = vsel %vm378, %v1851, -inf
  %v1882 = vsel %vm379, %v1866, -inf
  %v1883 = vmax.f32 %v1819, %v1867
  %v1884 = vmax.f32 %v1820, %v1868
  %v1885 = vmax.f32 %v1821, %v1869
  %v1886 = vmax.f32 %v1822, %v1870
  %v1887 = vmax.f32 %v1823, %v1871
  %v1888 = vmax.f32 %v1824, %v1872
  %v1889 = vmax.f32 %v1825, %v1873
  %v1890 = vmax.f32 %v1826, %v1874
  %v1891 = vmax.f32 %v1827, %v1875
  %v1892 = vmax.f32 %v1828, %v1876
  %v1893 = vmax.f32 %v1829, %v1877
  %v1894 = vmax.f32 %v1830, %v1878
  %v1895 = vmax.f32 %v1831, %v1879
  %v1896 = vmax.f32 %v1832, %v1880
  %v1897 = vmax.f32 %v1833, %v1881
  %v1898 = vmax.f32 %v1834, %v1882
  %v1899 = vrot.slane %v1819, 7
  %v1900 = vrot.slane %v1820, 7
  %v1901 = vrot.slane %v1821, 7
  %v1902 = vrot.slane %v1822, 7
  %v1903 = vrot.slane %v1823, 7
  %v1904 = vrot.slane %v1824, 7
  %v1905 = vrot.slane %v1825, 7
  %v1906 = vrot.slane %v1826, 7
  %v1907 = vrot.slane %v1827, 7
  %v1908 = vrot.slane %v1828, 7
  %v1909 = vrot.slane %v1829, 7
  %v1910 = vrot.slane %v1830, 7
  %v1911 = vrot.slane %v1831, 7
  %v1912 = vrot.slane %v1832, 7
  %v1913 = vrot.slane %v1833, 7
  %v1914 = vrot.slane %v1834, 7
  %v1915 = vsel %vm428, %v1913, %v1914
  %v1916 = vsel %vm428, %v1912, %v1913
  %v1917 = vsel %vm428, %v1911, %v1912
  %v1918 = vsel %vm428, %v1910, %v1911
  %v1919 = vsel %vm428, %v1909, %v1910
  %v1920 = vsel %vm428, %v1908, %v1909
  %v1921 = vsel %vm428, %v1907, %v1908
  %v1922 = vsel %vm428, %v1906, %v1907
  %v1923 = vsel %vm428, %v1905, %v1906
  %v1924 = vsel %vm428, %v1904, %v1905
  %v1925 = vsel %vm428, %v1903, %v1904
  %v1926 = vsel %vm428, %v1902, %v1903
  %v1927 = vsel %vm428, %v1901, %v1902
  %v1928 = vsel %vm428, %v1900, %v1901
  %v1929 = vsel %vm428, %v1899, %v1900
  %v1930 = vsel %vm428, %v1914, %v1899
  %v1931 = vsel %vm525, %v1930, -inf
  %v1932 = vsel %vm526, %v1929, -inf
  %v1933 = vsel %vm527, %v1928, -inf
  %v1934 = vsel %vm528, %v1927, -inf
  %v1935 = vsel %vm529, %v1926, -inf
  %v1936 = vsel %vm530, %v1925, -inf
  %v1937 = vsel %vm531, %v1924, -inf
  %v1938 = vsel %vm532, %v1923, -inf
  %v1939 = vsel %vm533, %v1922, -inf
  %v1940 = vsel %vm534, %v1921, -inf
  %v1941 = vsel %vm535, %v1920, -inf
  %v1942 = vsel %vm536, %v1919, -inf
  %v1943 = vsel %vm537, %v1918, -inf
  %v1944 = vsel %vm538, %v1917, -inf
  %v1945 = vsel %vm539, %v1916, -inf
  %v1946 = vsel %vm540, %v1915, -inf
  %v1947 = vmax.f32 %v1883, %v1931
  %v1948 = vmax.f32 %v1884, %v1932
  %v1949 = vmax.f32 %v1885, %v1933
  %v1950 = vmax.f32 %v1886, %v1934
  %v1951 = vmax.f32 %v1887, %v1935
  %v1952 = vmax.f32 %v1888, %v1936
  %v1953 = vmax.f32 %v1889, %v1937
  %v1954 = vmax.f32 %v1890, %v1938
  %v1955 = vmax.f32 %v1891, %v1939
  %v1956 = vmax.f32 %v1892, %v1940
  %v1957 = vmax.f32 %v1893, %v1941
  %v1958 = vmax.f32 %v1894, %v1942
  %v1959 = vmax.f32 %v1895, %v1943
  %v1960 = vmax.f32 %v1896, %v1944
  %v1961 = vmax.f32 %v1897, %v1945
  %v1962 = vmax.f32 %v1898, %v1946
  %v1963 = vrot.slane %v1819, 2
  %v1964 = vrot.slane %v1820, 2
  %v1965 = vrot.slane %v1821, 2
  %v1966 = vrot.slane %v1822, 2
  %v1967 = vrot.slane %v1823, 2
  %v1968 = vrot.slane %v1824, 2
  %v1969 = vrot.slane %v1825, 2
  %v1970 = vrot.slane %v1826, 2
  %v1971 = vrot.slane %v1827, 2
  %v1972 = vrot.slane %v1828, 2
  %v1973 = vrot.slane %v1829, 2
  %v1974 = vrot.slane %v1830, 2
  %v1975 = vrot.slane %v1831, 2
  %v1976 = vrot.slane %v1832, 2
  %v1977 = vrot.slane %v1833, 2
  %v1978 = vrot.slane %v1834, 2
  %v1979 = vsel %vm1273, %v1977, %v1978
  %v1980 = vsel %vm1273, %v1976, %v1977
  %v1981 = vsel %vm1273, %v1975, %v1976
  %v1982 = vsel %vm1273, %v1974, %v1975
  %v1983 = vsel %vm1273, %v1973, %v1974
  %v1984 = vsel %vm1273, %v1972, %v1973
  %v1985 = vsel %vm1273, %v1971, %v1972
  %v1986 = vsel %vm1273, %v1970, %v1971
  %v1987 = vsel %vm1273, %v1969, %v1970
  %v1988 = vsel %vm1273, %v1968, %v1969
  %v1989 = vsel %vm1273, %v1967, %v1968
  %v1990 = vsel %vm1273, %v1966, %v1967
  %v1991 = vsel %vm1273, %v1965, %v1966
  %v1992 = vsel %vm1273, %v1964, %v1965
  %v1993 = vsel %vm1273, %v1963, %v1964
  %v1994 = vsel %vm1273, %v1978, %v1963
  %v1995 = vsel %vm1370, %v1993, -inf
  %v1996 = vsel %vm1371, %v1992, -inf
  %v1997 = vsel %vm1372, %v1991, -inf
  %v1998 = vsel %vm1373, %v1990, -inf
  %v1999 = vsel %vm1374, %v1989, -inf
  %v2000 = vsel %vm1375, %v1988, -inf
  %v2001 = vsel %vm1376, %v1987, -inf
  %v2002 = vsel %vm1377, %v1986, -inf
  %v2003 = vsel %vm1378, %v1985, -inf
  %v2004 = vsel %vm1379, %v1984, -inf
  %v2005 = vsel %vm1380, %v1983, -inf
  %v2006 = vsel %vm1381, %v1982, -inf
  %v2007 = vsel %vm1382, %v1981, -inf
  %v2008 = vsel %vm1383, %v1980, -inf
  %v2009 = vsel %vm1384, %v1979, -inf
  %v2010 = vsel %vm1385, %v1994, -inf
  %v2011 = vmax.f32 %v1947, %v1995
  %v2012 = vmax.f32 %v1948, %v1996
  %v2013 = vmax.f32 %v1949, %v1997
  %v2014 = vmax.f32 %v1950, %v1998
  %v2015 = vmax.f32 %v1951, %v1999
  %v2016 = vmax.f32 %v1952, %v2000
  %v2017 = vmax.f32 %v1953, %v2001
  %v2018 = vmax.f32 %v1954, %v2002
  %v2019 = vmax.f32 %v1955, %v2003
  %v2020 = vmax.f32 %v1956, %v2004
  %v2021 = vmax.f32 %v1957, %v2005
  %v2022 = vmax.f32 %v1958, %v2006
  %v2023 = vmax.f32 %v1959, %v2007
  %v2024 = vmax.f32 %v1960, %v2008
  %v2025 = vmax.f32 %v1961, %v2009
  %v2026 = vmax.f32 %v1962, %v2010
  %v2027 = vrot.slane %v1819, 6
  %v2028 = vrot.slane %v1820, 6
  %v2029 = vrot.slane %v1821, 6
  %v2030 = vrot.slane %v1822, 6
  %v2031 = vrot.slane %v1823, 6
  %v2032 = vrot.slane %v1824, 6
  %v2033 = vrot.slane %v1825, 6
  %v2034 = vrot.slane %v1826, 6
  %v2035 = vrot.slane %v1827, 6
  %v2036 = vrot.slane %v1828, 6
  %v2037 = vrot.slane %v1829, 6
  %v2038 = vrot.slane %v1830, 6
  %v2039 = vrot.slane %v1831, 6
  %v2040 = vrot.slane %v1832, 6
  %v2041 = vrot.slane %v1833, 6
  %v2042 = vrot.slane %v1834, 6
  %v2043 = vsel %vm1434, %v2041, %v2042
  %v2044 = vsel %vm1434, %v2040, %v2041
  %v2045 = vsel %vm1434, %v2039, %v2040
  %v2046 = vsel %vm1434, %v2038, %v2039
  %v2047 = vsel %vm1434, %v2037, %v2038
  %v2048 = vsel %vm1434, %v2036, %v2037
  %v2049 = vsel %vm1434, %v2035, %v2036
  %v2050 = vsel %vm1434, %v2034, %v2035
  %v2051 = vsel %vm1434, %v2033, %v2034
  %v2052 = vsel %vm1434, %v2032, %v2033
  %v2053 = vsel %vm1434, %v2031, %v2032
  %v2054 = vsel %vm1434, %v2030, %v2031
  %v2055 = vsel %vm1434, %v2029, %v2030
  %v2056 = vsel %vm1434, %v2028, %v2029
  %v2057 = vsel %vm1434, %v2027, %v2028
  %v2058 = vsel %vm1434, %v2042, %v2027
  %v2059 = vsel %vm1531, %v2058, -inf
  %v2060 = vsel %vm1532, %v2057, -inf
  %v2061 = vsel %vm1533, %v2056, -inf
  %v2062 = vsel %vm1534, %v2055, -inf
  %v2063 = vsel %vm1535, %v2054, -inf
  %v2064 = vsel %vm1536, %v2053, -inf
  %v2065 = vsel %vm1537, %v2052, -inf
  %v2066 = vsel %vm1538, %v2051, -inf
  %v2067 = vsel %vm1539, %v2050, -inf
  %v2068 = vsel %vm1540, %v2049, -inf
  %v2069 = vsel %vm1541, %v2048, -inf
  %v2070 = vsel %vm1542, %v2047, -inf
  %v2071 = vsel %vm1543, %v2046, -inf
  %v2072 = vsel %vm1544, %v2045, -inf
  %v2073 = vsel %vm1545, %v2044, -inf
  %v2074 = vsel %vm1546, %v2043, -inf
  %v2075 = vmax.f32 %v2011, %v2059
  %v2076 = vmax.f32 %v2012, %v2060
  %v2077 = vmax.f32 %v2013, %v2061
  %v2078 = vmax.f32 %v2014, %v2062
  %v2079 = vmax.f32 %v2015, %v2063
  %v2080 = vmax.f32 %v2016, %v2064
  %v2081 = vmax.f32 %v2017, %v2065
  %v2082 = vmax.f32 %v2018, %v2066
  %v2083 = vmax.f32 %v2019, %v2067
  %v2084 = vmax.f32 %v2020, %v2068
  %v2085 = vmax.f32 %v2021, %v2069
  %v2086 = vmax.f32 %v2022, %v2070
  %v2087 = vmax.f32 %v2023, %v2071
  %v2088 = vmax.f32 %v2024, %v2072
  %v2089 = vmax.f32 %v2025, %v2073
  %v2090 = vmax.f32 %v2026, %v2074
  %v2091 = vmul.f32 %v845, %v1563
  %v2092 = vmul.f32 %v846, %v1564
  %v2093 = vmul.f32 %v847, %v1565
  %v2094 = vmul.f32 %v848, %v1566
  %v2095 = vmul.f32 %v849, %v1567
  %v2096 = vmul.f32 %v850, %v1568
  %v2097 = vmul.f32 %v851, %v1569
  %v2098 = vmul.f32 %v852, %v1570
  %v2099 = vmul.f32 %v853, %v1571
  %v2100 = vmul.f32 %v854, %v1572
  %v2101 = vmul.f32 %v855, %v1573
  %v2102 = vmul.f32 %v856, %v1574
  %v2103 = vmul.f32 %v857, %v1575
  %v2104 = vmul.f32 %v858, %v1576
  %v2105 = vmul.f32 %v859, %v1577
  %v2106 = vmul.f32 %v860, %v1578
  %v2107 = vadd.f32 %v2091, %v2092
  %v2108 = vrot.slane %v2107, 4
  %v2109 = vadd.f32 %v2107, %v2108
  %v2110 = vrot.slane %v2109, 2
  %v2111 = vadd.f32 %v2109, %v2110
  %v2112 = vrot.slane %v2111, 1
  %v2113 = vadd.f32 %v2111, %v2112
  %v2114 = vadd.f32 %v2093, %v2094
  %v2115 = vrot.slane %v2114, 4
  %v2116 = vadd.f32 %v2114, %v2115
  %v2117 = vrot.slane %v2116, 2
  %v2118 = vadd.f32 %v2116, %v2117
  %v2119 = vrot.slane %v2118, 1
  %v2120 = vadd.f32 %v2118, %v2119
  %v2121 = vadd.f32 %v2095, %v2096
  %v2122 = vrot.slane %v2121, 4
  %v2123 = vadd.f32 %v2121, %v2122
  %v2124 = vrot.slane %v2123, 2
  %v2125 = vadd.f32 %v2123, %v2124
  %v2126 = vrot.slane %v2125, 1
  %v2127 = vadd.f32 %v2125, %v2126
  %v2128 = vadd.f32 %v2097, %v2098
  %v2129 = vrot.slane %v2128, 4
  %v2130 = vadd.f32 %v2128, %v2129
  %v2131 = vrot.slane %v2130, 2
  %v2132 = vadd.f32 %v2130, %v2131
  %v2133 = vrot.slane %v2132, 1
  %v2134 = vadd.f32 %v2132, %v2133
  %v2135 = vadd.f32 %v2099, %v2100
  %v2136 = vrot.slane %v2135, 4
  %v2137 = vadd.f32 %v2135, %v2136
  %v2138 = vrot.slane %v2137, 2
  %v2139 = vadd.f32 %v2137, %v2138
  %v2140 = vrot.slane %v2139, 1
  %v2141 = vadd.f32 %v2139, %v2140
  %v2142 = vadd.f32 %v2101, %v2102
  %v2143 = vrot.slane %v2142, 4
  %v2144 = vadd.f32 %v2142, %v2143
  %v2145 = vrot.slane %v2144, 2
  %v2146 = vadd.f32 %v2144, %v2145
  %v2147 = vrot.slane %v2146, 1
  %v2148 = vadd.f32 %v2146, %v2147
  %v2149 = vadd.f32 %v2103, %v2104
  %v2150 = vrot.slane %v2149, 4
  %v2151 = vadd.f32 %v2149, %v2150
  %v2152 = vrot.slane %v2151, 2
  %v2153 = vadd.f32 %v2151, %v2152
  %v2154 = vrot.slane %v2153, 1
  %v2155 = vadd.f32 %v2153, %v2154
  %v2156 = vadd.f32 %v2105, %v2106
  %v2157 = vrot.slane %v2156, 4
  %v2158 = vadd.f32 %v2156, %v2157
  %v2159 = vrot.slane %v2158, 2
  %v2160 = vadd.f32 %v2158, %v2159
  %v2161 = vrot.slane %v2160, 1
  %v2162 = vadd.f32 %v2160, %v2161
  %vm2171 = vcmask 1041409
  %v2172 = vsel %vm2171, %v2120, %v2113
  %vm2173 = vcmask 1042434
  %v2174 = vsel %vm2173, %v2127, %v2172
  %vm2175 = vcmask 1043459
  %v2176 = vsel %vm2175, %v2134, %v2174
  %vm2177 = vcmask 1044484
  %v2178 = vsel %vm2177, %v2141, %v2176
  %vm2179 = vcmask 1045509
  %v2180 = vsel %vm2179, %v2148, %v2178
  %vm2181 = vcmask 1046534
  %v2182 = vsel %vm2181, %v2155, %v2180
  %vm2183 = vcmask 1047559
  %v2184 = vsel %vm2183, %v2162, %v2182
  %vm2186 = vcmask 130048
  %v2187 = vsel %vm2186, %v2184, 0.0
  %2188 = vadd.xlane.f32.xlu0 %v2187
  %v2189 = vpop.xlane.xlu0 %2188
  %2190 = vrot.lane.b32.xlu0 %v2184, 112
  %v2191 = vpop.permute.xlu0 %2190
  %v2193 = vsel %vm2186, %v2191, 0.0
  %2194 = vadd.xlane.f32.xlu0 %v2193
  %v2195 = vpop.xlane.xlu0 %2194
  %2196 = vrot.lane.b32.xlu0 %v2184, 96
  %v2197 = vpop.permute.xlu0 %2196
  %v2199 = vsel %vm2186, %v2197, 0.0
  %2200 = vadd.xlane.f32.xlu0 %v2199
  %v2201 = vpop.xlane.xlu0 %2200
  %2202 = vrot.lane.b32.xlu0 %v2184, 80
  %v2203 = vpop.permute.xlu0 %2202
  %v2205 = vsel %vm2186, %v2203, 0.0
  %2206 = vadd.xlane.f32.xlu0 %v2205
  %v2207 = vpop.xlane.xlu0 %2206
  %2208 = vrot.lane.b32.xlu0 %v2184, 64
  %v2209 = vpop.permute.xlu0 %2208
  %v2211 = vsel %vm2186, %v2209, 0.0
  %2212 = vadd.xlane.f32.xlu0 %v2211
  %v2213 = vpop.xlane.xlu0 %2212
  %2214 = vrot.lane.b32.xlu0 %v2184, 48
  %v2215 = vpop.permute.xlu0 %2214
  %v2217 = vsel %vm2186, %v2215, 0.0
  %2218 = vadd.xlane.f32.xlu0 %v2217
  %v2219 = vpop.xlane.xlu0 %2218
  %2220 = vrot.lane.b32.xlu0 %v2184, 32
  %v2221 = vpop.permute.xlu0 %2220
  %v2223 = vsel %vm2186, %v2221, 0.0
  %2224 = vadd.xlane.f32.xlu0 %v2223
  %v2225 = vpop.xlane.xlu0 %2224
  %2226 = vrot.lane.b32.xlu0 %v2184, 16
  %v2227 = vpop.permute.xlu0 %2226
  %v2229 = vsel %vm2186, %v2227, 0.0
  %2230 = vadd.xlane.f32.xlu0 %v2229
  %v2231 = vpop.xlane.xlu0 %2230
  %vm2232 = vcmask 7168
  %v2233 = vsel %vm2232, %v2189, %v2195
  %vm2234 = vcmask 15360
  %v2235 = vsel %vm2234, %v2233, %v2201
  %vm2236 = vcmask 23552
  %v2237 = vsel %vm2236, %v2235, %v2207
  %vm2238 = vcmask 31744
  %v2239 = vsel %vm2238, %v2237, %v2213
  %vm2240 = vcmask 39936
  %v2241 = vsel %vm2240, %v2239, %v2219
  %vm2242 = vcmask 48128
  %v2243 = vsel %vm2242, %v2241, %v2225
  %vm2244 = vcmask 56320
  %v2245 = vsel %vm2244, %v2243, %v2231
  %v2246 = vadd.f32 %v845, %v846
  %v2247 = vrot.slane %v2246, 4
  %v2248 = vadd.f32 %v2246, %v2247
  %v2249 = vrot.slane %v2248, 2
  %v2250 = vadd.f32 %v2248, %v2249
  %v2251 = vrot.slane %v2250, 1
  %v2252 = vadd.f32 %v2250, %v2251
  %v2253 = vadd.f32 %v847, %v848
  %v2254 = vrot.slane %v2253, 4
  %v2255 = vadd.f32 %v2253, %v2254
  %v2256 = vrot.slane %v2255, 2
  %v2257 = vadd.f32 %v2255, %v2256
  %v2258 = vrot.slane %v2257, 1
  %v2259 = vadd.f32 %v2257, %v2258
  %v2260 = vadd.f32 %v849, %v850
  %v2261 = vrot.slane %v2260, 4
  %v2262 = vadd.f32 %v2260, %v2261
  %v2263 = vrot.slane %v2262, 2
  %v2264 = vadd.f32 %v2262, %v2263
  %v2265 = vrot.slane %v2264, 1
  %v2266 = vadd.f32 %v2264, %v2265
  %v2267 = vadd.f32 %v851, %v852
  %v2268 = vrot.slane %v2267, 4
  %v2269 = vadd.f32 %v2267, %v2268
  %v2270 = vrot.slane %v2269, 2
  %v2271 = vadd.f32 %v2269, %v2270
  %v2272 = vrot.slane %v2271, 1
  %v2273 = vadd.f32 %v2271, %v2272
  %v2274 = vadd.f32 %v853, %v854
  %v2275 = vrot.slane %v2274, 4
  %v2276 = vadd.f32 %v2274, %v2275
  %v2277 = vrot.slane %v2276, 2
  %v2278 = vadd.f32 %v2276, %v2277
  %v2279 = vrot.slane %v2278, 1
  %v2280 = vadd.f32 %v2278, %v2279
  %v2281 = vadd.f32 %v855, %v856
  %v2282 = vrot.slane %v2281, 4
  %v2283 = vadd.f32 %v2281, %v2282
  %v2284 = vrot.slane %v2283, 2
  %v2285 = vadd.f32 %v2283, %v2284
  %v2286 = vrot.slane %v2285, 1
  %v2287 = vadd.f32 %v2285, %v2286
  %v2288 = vadd.f32 %v857, %v858
  %v2289 = vrot.slane %v2288, 4
  %v2290 = vadd.f32 %v2288, %v2289
  %v2291 = vrot.slane %v2290, 2
  %v2292 = vadd.f32 %v2290, %v2291
  %v2293 = vrot.slane %v2292, 1
  %v2294 = vadd.f32 %v2292, %v2293
  %v2295 = vadd.f32 %v859, %v860
  %v2296 = vrot.slane %v2295, 4
  %v2297 = vadd.f32 %v2295, %v2296
  %v2298 = vrot.slane %v2297, 2
  %v2299 = vadd.f32 %v2297, %v2298
  %v2300 = vrot.slane %v2299, 1
  %v2301 = vadd.f32 %v2299, %v2300
  %v2310 = vsel %vm2171, %v2259, %v2252
  %v2311 = vsel %vm2173, %v2266, %v2310
  %v2312 = vsel %vm2175, %v2273, %v2311
  %v2313 = vsel %vm2177, %v2280, %v2312
  %v2314 = vsel %vm2179, %v2287, %v2313
  %v2315 = vsel %vm2181, %v2294, %v2314
  %v2316 = vsel %vm2183, %v2301, %v2315
  %v2318 = vsel %vm2186, %v2316, 0.0
  %2319 = vadd.xlane.f32.xlu0 %v2318
  %v2320 = vpop.xlane.xlu0 %2319
  %2321 = vrot.lane.b32.xlu0 %v2316, 112
  %v2322 = vpop.permute.xlu0 %2321
  %v2324 = vsel %vm2186, %v2322, 0.0
  %2325 = vadd.xlane.f32.xlu0 %v2324
  %v2326 = vpop.xlane.xlu0 %2325
  %2327 = vrot.lane.b32.xlu0 %v2316, 96
  %v2328 = vpop.permute.xlu0 %2327
  %v2330 = vsel %vm2186, %v2328, 0.0
  %2331 = vadd.xlane.f32.xlu0 %v2330
  %v2332 = vpop.xlane.xlu0 %2331
  %2333 = vrot.lane.b32.xlu0 %v2316, 80
  %v2334 = vpop.permute.xlu0 %2333
  %v2336 = vsel %vm2186, %v2334, 0.0
  %2337 = vadd.xlane.f32.xlu0 %v2336
  %v2338 = vpop.xlane.xlu0 %2337
  %2339 = vrot.lane.b32.xlu0 %v2316, 64
  %v2340 = vpop.permute.xlu0 %2339
  %v2342 = vsel %vm2186, %v2340, 0.0
  %2343 = vadd.xlane.f32.xlu0 %v2342
  %v2344 = vpop.xlane.xlu0 %2343
  %2345 = vrot.lane.b32.xlu0 %v2316, 48
  %v2346 = vpop.permute.xlu0 %2345
  %v2348 = vsel %vm2186, %v2346, 0.0
  %2349 = vadd.xlane.f32.xlu0 %v2348
  %v2350 = vpop.xlane.xlu0 %2349
  %2351 = vrot.lane.b32.xlu0 %v2316, 32
  %v2352 = vpop.permute.xlu0 %2351
  %v2354 = vsel %vm2186, %v2352, 0.0
  %2355 = vadd.xlane.f32.xlu0 %v2354
  %v2356 = vpop.xlane.xlu0 %2355
  %2357 = vrot.lane.b32.xlu0 %v2316, 16
  %v2358 = vpop.permute.xlu0 %2357
  %v2360 = vsel %vm2186, %v2358, 0.0
  %2361 = vadd.xlane.f32.xlu0 %v2360
  %v2362 = vpop.xlane.xlu0 %2361
  %v2363 = vsel %vm2232, %v2320, %v2326
  %v2364 = vsel %vm2234, %v2363, %v2332
  %v2365 = vsel %vm2236, %v2364, %v2338
  %v2366 = vsel %vm2238, %v2365, %v2344
  %v2367 = vsel %vm2240, %v2366, %v2350
  %v2368 = vsel %vm2242, %v2367, %v2356
  %v2369 = vsel %vm2244, %v2368, %v2362
  %v2370 = vmul.f32 %v2075, %v573
  %v2371 = vmul.f32 %v2076, %v574
  %v2372 = vmul.f32 %v2077, %v575
  %v2373 = vmul.f32 %v2078, %v576
  %v2374 = vmul.f32 %v2079, %v577
  %v2375 = vmul.f32 %v2080, %v578
  %v2376 = vmul.f32 %v2081, %v579
  %v2377 = vmul.f32 %v2082, %v580
  %v2378 = vmul.f32 %v2083, %v581
  %v2379 = vmul.f32 %v2084, %v582
  %v2380 = vmul.f32 %v2085, %v583
  %v2381 = vmul.f32 %v2086, %v584
  %v2382 = vmul.f32 %v2087, %v585
  %v2383 = vmul.f32 %v2088, %v586
  %v2384 = vmul.f32 %v2089, %v587
  %v2385 = vmul.f32 %v2090, %v588
  %v2386 = vadd.f32 %v2370, %v2371
  %v2387 = vrot.slane %v2386, 4
  %v2388 = vadd.f32 %v2386, %v2387
  %v2389 = vrot.slane %v2388, 2
  %v2390 = vadd.f32 %v2388, %v2389
  %v2391 = vrot.slane %v2390, 1
  %v2392 = vadd.f32 %v2390, %v2391
  %v2393 = vadd.f32 %v2372, %v2373
  %v2394 = vrot.slane %v2393, 4
  %v2395 = vadd.f32 %v2393, %v2394
  %v2396 = vrot.slane %v2395, 2
  %v2397 = vadd.f32 %v2395, %v2396
  %v2398 = vrot.slane %v2397, 1
  %v2399 = vadd.f32 %v2397, %v2398
  %v2400 = vadd.f32 %v2374, %v2375
  %v2401 = vrot.slane %v2400, 4
  %v2402 = vadd.f32 %v2400, %v2401
  %v2403 = vrot.slane %v2402, 2
  %v2404 = vadd.f32 %v2402, %v2403
  %v2405 = vrot.slane %v2404, 1
  %v2406 = vadd.f32 %v2404, %v2405
  %v2407 = vadd.f32 %v2376, %v2377
  %v2408 = vrot.slane %v2407, 4
  %v2409 = vadd.f32 %v2407, %v2408
  %v2410 = vrot.slane %v2409, 2
  %v2411 = vadd.f32 %v2409, %v2410
  %v2412 = vrot.slane %v2411, 1
  %v2413 = vadd.f32 %v2411, %v2412
  %v2414 = vadd.f32 %v2378, %v2379
  %v2415 = vrot.slane %v2414, 4
  %v2416 = vadd.f32 %v2414, %v2415
  %v2417 = vrot.slane %v2416, 2
  %v2418 = vadd.f32 %v2416, %v2417
  %v2419 = vrot.slane %v2418, 1
  %v2420 = vadd.f32 %v2418, %v2419
  %v2421 = vadd.f32 %v2380, %v2381
  %v2422 = vrot.slane %v2421, 4
  %v2423 = vadd.f32 %v2421, %v2422
  %v2424 = vrot.slane %v2423, 2
  %v2425 = vadd.f32 %v2423, %v2424
  %v2426 = vrot.slane %v2425, 1
  %v2427 = vadd.f32 %v2425, %v2426
  %v2428 = vadd.f32 %v2382, %v2383
  %v2429 = vrot.slane %v2428, 4
  %v2430 = vadd.f32 %v2428, %v2429
  %v2431 = vrot.slane %v2430, 2
  %v2432 = vadd.f32 %v2430, %v2431
  %v2433 = vrot.slane %v2432, 1
  %v2434 = vadd.f32 %v2432, %v2433
  %v2435 = vadd.f32 %v2384, %v2385
  %v2436 = vrot.slane %v2435, 4
  %v2437 = vadd.f32 %v2435, %v2436
  %v2438 = vrot.slane %v2437, 2
  %v2439 = vadd.f32 %v2437, %v2438
  %v2440 = vrot.slane %v2439, 1
  %v2441 = vadd.f32 %v2439, %v2440
  %v2450 = vsel %vm2171, %v2399, %v2392
  %v2451 = vsel %vm2173, %v2406, %v2450
  %v2452 = vsel %vm2175, %v2413, %v2451
  %v2453 = vsel %vm2177, %v2420, %v2452
  %v2454 = vsel %vm2179, %v2427, %v2453
  %v2455 = vsel %vm2181, %v2434, %v2454
  %v2456 = vsel %vm2183, %v2441, %v2455
  %v2458 = vsel %vm2186, %v2456, 0.0
  %2459 = vadd.xlane.f32.xlu0 %v2458
  %v2460 = vpop.xlane.xlu0 %2459
  %2461 = vrot.lane.b32.xlu0 %v2456, 112
  %v2462 = vpop.permute.xlu0 %2461
  %v2464 = vsel %vm2186, %v2462, 0.0
  %2465 = vadd.xlane.f32.xlu0 %v2464
  %v2466 = vpop.xlane.xlu0 %2465
  %2467 = vrot.lane.b32.xlu0 %v2456, 96
  %v2468 = vpop.permute.xlu0 %2467
  %v2470 = vsel %vm2186, %v2468, 0.0
  %2471 = vadd.xlane.f32.xlu0 %v2470
  %v2472 = vpop.xlane.xlu0 %2471
  %2473 = vrot.lane.b32.xlu0 %v2456, 80
  %v2474 = vpop.permute.xlu0 %2473
  %v2476 = vsel %vm2186, %v2474, 0.0
  %2477 = vadd.xlane.f32.xlu0 %v2476
  %v2478 = vpop.xlane.xlu0 %2477
  %2479 = vrot.lane.b32.xlu0 %v2456, 64
  %v2480 = vpop.permute.xlu0 %2479
  %v2482 = vsel %vm2186, %v2480, 0.0
  %2483 = vadd.xlane.f32.xlu0 %v2482
  %v2484 = vpop.xlane.xlu0 %2483
  %2485 = vrot.lane.b32.xlu0 %v2456, 48
  %v2486 = vpop.permute.xlu0 %2485
  %v2488 = vsel %vm2186, %v2486, 0.0
  %2489 = vadd.xlane.f32.xlu0 %v2488
  %v2490 = vpop.xlane.xlu0 %2489
  %2491 = vrot.lane.b32.xlu0 %v2456, 32
  %v2492 = vpop.permute.xlu0 %2491
  %v2494 = vsel %vm2186, %v2492, 0.0
  %2495 = vadd.xlane.f32.xlu0 %v2494
  %v2496 = vpop.xlane.xlu0 %2495
  %2497 = vrot.lane.b32.xlu0 %v2456, 16
  %v2498 = vpop.permute.xlu0 %2497
  %v2500 = vsel %vm2186, %v2498, 0.0
  %2501 = vadd.xlane.f32.xlu0 %v2500
  %v2502 = vpop.xlane.xlu0 %2501
  %v2503 = vsel %vm2232, %v2460, %v2466
  %v2504 = vsel %vm2234, %v2503, %v2472
  %v2505 = vsel %vm2236, %v2504, %v2478
  %v2506 = vsel %vm2238, %v2505, %v2484
  %v2507 = vsel %vm2240, %v2506, %v2490
  %v2508 = vsel %vm2242, %v2507, %v2496
  %v2509 = vsel %vm2244, %v2508, %v2502
  %v2510 = vadd.f32 %v573, %v574
  %v2511 = vrot.slane %v2510, 4
  %v2512 = vadd.f32 %v2510, %v2511
  %v2513 = vrot.slane %v2512, 2
  %v2514 = vadd.f32 %v2512, %v2513
  %v2515 = vrot.slane %v2514, 1
  %v2516 = vadd.f32 %v2514, %v2515
  %v2517 = vadd.f32 %v575, %v576
  %v2518 = vrot.slane %v2517, 4
  %v2519 = vadd.f32 %v2517, %v2518
  %v2520 = vrot.slane %v2519, 2
  %v2521 = vadd.f32 %v2519, %v2520
  %v2522 = vrot.slane %v2521, 1
  %v2523 = vadd.f32 %v2521, %v2522
  %v2524 = vadd.f32 %v577, %v578
  %v2525 = vrot.slane %v2524, 4
  %v2526 = vadd.f32 %v2524, %v2525
  %v2527 = vrot.slane %v2526, 2
  %v2528 = vadd.f32 %v2526, %v2527
  %v2529 = vrot.slane %v2528, 1
  %v2530 = vadd.f32 %v2528, %v2529
  %v2531 = vadd.f32 %v579, %v580
  %v2532 = vrot.slane %v2531, 4
  %v2533 = vadd.f32 %v2531, %v2532
  %v2534 = vrot.slane %v2533, 2
  %v2535 = vadd.f32 %v2533, %v2534
  %v2536 = vrot.slane %v2535, 1
  %v2537 = vadd.f32 %v2535, %v2536
  %v2538 = vadd.f32 %v581, %v582
  %v2539 = vrot.slane %v2538, 4
  %v2540 = vadd.f32 %v2538, %v2539
  %v2541 = vrot.slane %v2540, 2
  %v2542 = vadd.f32 %v2540, %v2541
  %v2543 = vrot.slane %v2542, 1
  %v2544 = vadd.f32 %v2542, %v2543
  %v2545 = vadd.f32 %v583, %v584
  %v2546 = vrot.slane %v2545, 4
  %v2547 = vadd.f32 %v2545, %v2546
  %v2548 = vrot.slane %v2547, 2
  %v2549 = vadd.f32 %v2547, %v2548
  %v2550 = vrot.slane %v2549, 1
  %v2551 = vadd.f32 %v2549, %v2550
  %v2552 = vadd.f32 %v585, %v586
  %v2553 = vrot.slane %v2552, 4
  %v2554 = vadd.f32 %v2552, %v2553
  %v2555 = vrot.slane %v2554, 2
  %v2556 = vadd.f32 %v2554, %v2555
  %v2557 = vrot.slane %v2556, 1
  %v2558 = vadd.f32 %v2556, %v2557
  %v2559 = vadd.f32 %v587, %v588
  %v2560 = vrot.slane %v2559, 4
  %v2561 = vadd.f32 %v2559, %v2560
  %v2562 = vrot.slane %v2561, 2
  %v2563 = vadd.f32 %v2561, %v2562
  %v2564 = vrot.slane %v2563, 1
  %v2565 = vadd.f32 %v2563, %v2564
  %v2574 = vsel %vm2171, %v2523, %v2516
  %v2575 = vsel %vm2173, %v2530, %v2574
  %v2576 = vsel %vm2175, %v2537, %v2575
  %v2577 = vsel %vm2177, %v2544, %v2576
  %v2578 = vsel %vm2179, %v2551, %v2577
  %v2579 = vsel %vm2181, %v2558, %v2578
  %v2580 = vsel %vm2183, %v2565, %v2579
  %v2582 = vsel %vm2186, %v2580, 0.0
  %2583 = vadd.xlane.f32.xlu0 %v2582
  %v2584 = vpop.xlane.xlu0 %2583
  %2585 = vrot.lane.b32.xlu0 %v2580, 112
  %v2586 = vpop.permute.xlu0 %2585
  %v2588 = vsel %vm2186, %v2586, 0.0
  %2589 = vadd.xlane.f32.xlu0 %v2588
  %v2590 = vpop.xlane.xlu0 %2589
  %2591 = vrot.lane.b32.xlu0 %v2580, 96
  %v2592 = vpop.permute.xlu0 %2591
  %v2594 = vsel %vm2186, %v2592, 0.0
  %2595 = vadd.xlane.f32.xlu0 %v2594
  %v2596 = vpop.xlane.xlu0 %2595
  %2597 = vrot.lane.b32.xlu0 %v2580, 80
  %v2598 = vpop.permute.xlu0 %2597
  %v2600 = vsel %vm2186, %v2598, 0.0
  %2601 = vadd.xlane.f32.xlu0 %v2600
  %v2602 = vpop.xlane.xlu0 %2601
  %2603 = vrot.lane.b32.xlu0 %v2580, 64
  %v2604 = vpop.permute.xlu0 %2603
  %v2606 = vsel %vm2186, %v2604, 0.0
  %2607 = vadd.xlane.f32.xlu0 %v2606
  %v2608 = vpop.xlane.xlu0 %2607
  %2609 = vrot.lane.b32.xlu0 %v2580, 48
  %v2610 = vpop.permute.xlu0 %2609
  %v2612 = vsel %vm2186, %v2610, 0.0
  %2613 = vadd.xlane.f32.xlu0 %v2612
  %v2614 = vpop.xlane.xlu0 %2613
  %2615 = vrot.lane.b32.xlu0 %v2580, 32
  %v2616 = vpop.permute.xlu0 %2615
  %v2618 = vsel %vm2186, %v2616, 0.0
  %2619 = vadd.xlane.f32.xlu0 %v2618
  %v2620 = vpop.xlane.xlu0 %2619
  %2621 = vrot.lane.b32.xlu0 %v2580, 16
  %v2622 = vpop.permute.xlu0 %2621
  %v2624 = vsel %vm2186, %v2622, 0.0
  %2625 = vadd.xlane.f32.xlu0 %v2624
  %v2626 = vpop.xlane.xlu0 %2625
  %v2627 = vsel %vm2232, %v2584, %v2590
  %v2628 = vsel %vm2234, %v2627, %v2596
  %v2629 = vsel %vm2236, %v2628, %v2602
  %v2630 = vsel %vm2238, %v2629, %v2608
  %v2631 = vsel %vm2240, %v2630, %v2614
  %v2632 = vsel %vm2242, %v2631, %v2620
  %v2633 = vsel %vm2244, %v2632, %v2626
  %2635 = vrot.lane.b32.xlu0 %v2369, 8
  %v2636 = vpop.permute.xlu0 %2635
  %2639 = vrot.lane.b32.xlu0 %v2509, 16
  %v2640 = vpop.permute.xlu0 %2639
  %2643 = vrot.lane.b32.xlu0 %v2633, 24
  %v2644 = vpop.permute.xlu0 %2643
  %vm2646 = vcmask 64512
  %v2647 = vsel %vm2646, %v2245, %v2636
  %v2648 = vsel %vm2186, %v2647, %v2640
  %vm2649 = vcmask 195584
  %v2650 = vsel %vm2649, %v2648, %v2644
  %vm2651 = vcmask 261120
  %v2652 = vsel %vm2651, %v2650, 0.0
  %2653 = vst [vmem:[%s2] sm:$0xff] %v2652
  // Predicated region
  $region10: #{boundary_loss.1} parent=0 // pred_check
    _
  $region11: #{boundary_loss.1} parent=0 // pred_check_branch
    %2655 = sbr.rel (0) target = $region13
  $region12: #{boundary_loss.1} parent=0 // pred_region
    _
  $region13: #{boundary_loss.1} parent=0 // pred_fallthru
    _
  // Predicated region
  $region14: #{boundary_loss.1} parent=0 // pred_check
    _
  $region15: #{boundary_loss.1} parent=0 // pred_check_branch
    %2657 = sbr.rel (0) target = $region17
  $region16: #{boundary_loss.1} parent=0 // pred_region
    _
  $region17: #{boundary_loss.1} parent=0 // pred_fallthru
    _

</llo_original>
